<compile_context>
chip_gen: v6e
topology: v6e:2x2x1
jax: 0.10.0
libtpu: 0.0.40
codegen_flags: <defaults>
</compile_context>

<pallas_src>
import math

import jax
import jax.numpy as jnp
from jax.experimental import pallas as pl
from jax.experimental.pallas import tpu as pltpu


# ----------------------------- kernel helpers ------------------------------

def _layer_norm(x, w, b, eps=1e-5):
    # nn.LayerNorm semantics: biased variance, eps inside rsqrt. f32 math.
    mu = jnp.mean(x, axis=-1, keepdims=True)
    xc = x - mu
    var = jnp.mean(xc * xc, axis=-1, keepdims=True)
    return xc * jax.lax.rsqrt(var + eps) * w + b


def make_encoder_kernel(n_heads):
    """Fused all-layer encoder kernel. Grid = (batch_blocks, n_layers)."""

    def kernel(x_ref, mask_ref,
               ln1w_ref, ln1b_ref, wqkv_ref, bqkv_ref, wo_ref, bo_ref,
               ln2w_ref, ln2b_ref, w1_ref, b1_ref, w2_ref, b2_ref,
               lnf_w_ref, lnf_b_ref,
               out_ref):
        layer = pl.program_id(1)
        n_layers = pl.num_programs(1)
        Bb, S, D = x_ref.shape
        H = n_heads
        dk = D // H
        M = Bb * S

        # Seed the VMEM-resident residual from the HBM input on the first layer.
        @pl.when(layer == 0)
        def _():
            out_ref[...] = x_ref[...]

        # Residual stream (f32) stays resident in VMEM across the layer axis.
        x = out_ref[...].reshape(M, D)

        # Additive key mask bias, computed once per layer.
        bias = jnp.where(mask_ref[...] == 0.0, -1e9, 0.0)            # [Bb, 1, S]

        # ---- sublayer 0: multi-head self-attention (pre-norm residual) ----
        h = _layer_norm(x, ln1w_ref[0], ln1b_ref[0])
        # Fused QKV projection; 1/sqrt(dk) already folded into the Q weights.
        qkv = (jnp.dot(h.astype(jnp.bfloat16), wqkv_ref[0],
                       preferred_element_type=jnp.float32)
               + bqkv_ref[0]).astype(jnp.bfloat16)                   # [M, 3D] bf16

        # One relayout to head-major batched form, then batched MXU einsums.
        qkv = qkv.reshape(Bb, S, 3 * H, dk)
        qkv = jnp.transpose(qkv, (0, 2, 1, 3))                       # [Bb, 3H, S, dk]
        qh = qkv[:, 0 * H:1 * H].reshape(Bb * H, S, dk)
        kh = qkv[:, 1 * H:2 * H].reshape(Bb * H, S, dk)
        vh = qkv[:, 2 * H:3 * H].reshape(Bb * H, S, dk)

        scores = jnp.einsum('nqd,nkd->nqk', qh, kh,
                            preferred_element_type=jnp.float32)      # [Bb*H, S, S]
        scores = scores.reshape(Bb, H, S, S) + bias[:, None, :, :]
        m = jnp.max(scores, axis=-1, keepdims=True)
        e = jnp.exp(scores - m)                                      # EUP, f32
        p = e * pl.reciprocal(jnp.sum(e, axis=-1, keepdims=True), approx=True)
        p = p.reshape(Bb * H, S, S).astype(jnp.bfloat16)

        ctx = jnp.einsum('nqk,nkd->nqd', p, vh,
                         preferred_element_type=jnp.float32)         # [Bb*H, S, dk]
        ctx = jnp.transpose(ctx.reshape(Bb, H, S, dk), (0, 2, 1, 3)).reshape(M, D)

        # Single full-K output projection (no per-head Wo row slices).
        attn = jnp.dot(ctx.astype(jnp.bfloat16), wo_ref[0],
                       preferred_element_type=jnp.float32)
        x = x + attn + bo_ref[0]            # dropout == identity (eval)

        # ---- sublayer 1: position-wise feed-forward (pre-norm residual) ----
        h2 = _layer_norm(x, ln2w_ref[0], ln2b_ref[0])
        ff = jnp.dot(h2.astype(jnp.bfloat16), w1_ref[0],
                     preferred_element_type=jnp.float32) + b1_ref[0]
        ff = jnp.maximum(ff, 0.0).astype(jnp.bfloat16)               # relu (lane-dense, padded)
        ff = jnp.dot(ff, w2_ref[0],
                     preferred_element_type=jnp.float32) + b2_ref[0]
        x = x + ff

        # Write residual back; fuse the final encoder LayerNorm into the last layer.
        @pl.when(layer == n_layers - 1)
        def _():
            out_ref[...] = _layer_norm(x, lnf_w_ref[...], lnf_b_ref[...]
                                       ).reshape(Bb, S, D)

        @pl.when(layer < n_layers - 1)
        def _():
            out_ref[...] = x.reshape(Bb, S, D)

    return kernel


# ------------------------------ host wrappers -------------------------------

_LAYER_KEYS = ('ln1_w', 'ln1_b', 'wqkv', 'bqkv', 'wo', 'bo',
               'ln2_w', 'ln2_b', 'w1', 'b1', 'w2', 'b2')


def _round_up(n, m):
    return ((n + m - 1) // m) * m


def _pick_block_b(B, S):
    # Target a well-filled flattened M (~512 rows) but keep >=2 steps on the
    # "parallel" batch axis so both v7x TensorCores get work.
    bb = min(B, max(1, 512 // S))
    if B >= 2:
        bb = min(bb, B // 2)
    bb = max(bb, 1)
    while B % bb:
        bb -= 1
    return bb


def _vmem_limit_bytes(packed, block_b, S, D, Fmax, n_heads):
    # One layer-slice of weights (double-buffered across the layer grid axis).
    layer_w = 0
    for a in packed.values():
        if a.ndim == 3:                       # stacked per-layer param
            layer_w += int(a[0].size) * a.dtype.itemsize
        else:                                 # final LN params (grid-invariant)
            layer_w += int(a.size) * a.dtype.itemsize
    M = block_b * S
    io = 2 * (2 * block_b * S * D * 4) + 2 * block_b * S * 4         # x in/out + mask
    act = M * 3 * D * 2 * 2                                          # qkv bf16 + head relayout
    act += n_heads * block_b * S * S * 4 * 3                          # scores / exp / probs f32
    act += M * (Fmax + 6 * D) * 4                                     # ffn + residual temps
    est = 2 * layer_w + io + act + (16 << 20)                         # headroom
    try:
        cap = int(pltpu.get_tpu_info().vmem_capacity_bytes)
    except Exception:
        cap = 128 << 20
    # ~96 MiB ceiling on v5e/v6e (128 MiB physical), ~48 MiB on v7x (64 MiB).
    return int(min(max(est, 32 << 20), (cap * 3) // 4))


def pack_params(params, n_heads):
    """Stack per-layer params with a leading layer dim, fold scale, pad ff, bf16 weights."""
    layers = params['layers']
    D = layers[0]['wq'].shape[0]
    dk = D // n_heads
    scale = 1.0 / math.sqrt(dk)
    Fmax = _round_up(max(p['w1'].shape[1] for p in layers), 128)

    def pad_cols(a, n):
        return jnp.pad(a, [(0, 0)] * (a.ndim - 1) + [(0, n - a.shape[-1])])

    def pad_rows(a, n):
        return jnp.pad(a, [(0, n - a.shape[0])] + [(0, 0)] * (a.ndim - 1))

    stk = lambda xs: jnp.stack(xs, axis=0)
    return dict(
        ln1_w=stk([p['ln1_w'] for p in layers]),
        ln1_b=stk([p['ln1_b'] for p in layers]),
        # fused QKV with 1/sqrt(dk) folded into the Q columns; weights in bf16.
        wqkv=stk([jnp.concatenate([p['wq'] * scale, p['wk'], p['wv']], axis=1)
                  for p in layers]).astype(jnp.bfloat16),
        bqkv=stk([jnp.concatenate([p['bq'] * scale, p['bk'], p['bv']], axis=1)
                  for p in layers]),
        wo=stk([p['wo'] for p in layers]).astype(jnp.bfloat16),
        bo=stk([p['bo'] for p in layers]),
        ln2_w=stk([p['ln2_w'] for p in layers]),
        ln2_b=stk([p['ln2_b'] for p in layers]),
        # zero-pad heterogeneous ff widths up to lane-dense Fmax (exact through relu).
        w1=stk([pad_cols(p['w1'], Fmax) for p in layers]).astype(jnp.bfloat16),
        b1=stk([pad_cols(p['b1'], Fmax) for p in layers]),
        w2=stk([pad_rows(p['w2'], Fmax) for p in layers]).astype(jnp.bfloat16),
        b2=stk([p['b2'] for p in layers]),
        norm_w=params['norm_w'],
        norm_b=params['norm_b'],
    )


def width_varying_encoder(x, mask, packed, n_heads):
    B, S, D = x.shape
    L = packed['wqkv'].shape[0]
    Fmax = packed['w1'].shape[-1]
    block_b = _pick_block_b(B, S)

    layer_args = [packed[k] for k in _LAYER_KEYS]
    final_args = [packed['norm_w'], packed['norm_b']]

    def layer_spec(a):          # per-layer stacked weight, indexed by layer coord
        return pl.BlockSpec((1,) + a.shape[1:], lambda b, l: (l, 0, 0))

    def const_spec(a):          # grid-invariant final LayerNorm params
        return pl.BlockSpec(a.shape, lambda b, l: (0,) * a.ndim)

    grid_spec = pltpu.PrefetchScalarGridSpec(
        num_scalar_prefetch=0,
        grid=(B // block_b, L),
        in_specs=[pl.BlockSpec((block_b, S, D), lambda b, l: (b, 0, 0)),
                  pl.BlockSpec((block_b, 1, S), lambda b, l: (b, 0, 0))]
                 + [layer_spec(a) for a in layer_args]
                 + [const_spec(a) for a in final_args],
        out_specs=pl.BlockSpec((block_b, S, D), lambda b, l: (b, 0, 0)),
    )
    return pl.pallas_call(
        make_encoder_kernel(n_heads),
        out_shape=jax.ShapeDtypeStruct((B, S, D), jnp.float32),
        grid_spec=grid_spec,
        compiler_params=pltpu.CompilerParams(
            dimension_semantics=("parallel", "arbitrary"),
            vmem_limit_bytes=_vmem_limit_bytes(packed, block_b, S, D, Fmax, n_heads)),
    )(x, mask, *layer_args, *final_args)


# --------------------------- deterministic params ---------------------------

def _linear_init(key, fan_in, fan_out):
    kw, kb = jax.random.split(key)
    bound = 1.0 / math.sqrt(fan_in)
    w = jax.random.uniform(kw, (fan_in, fan_out), jnp.float32, -bound, bound)
    b = jax.random.uniform(kb, (1, fan_out), jnp.float32, -bound, bound)
    return w, b


def init_params(key, d_model, ff_dims):
    """Logical (PyTorch-layout, f32) parameters; kernel consumes pack_params() of these."""
    layers = []
    for ff_dim in ff_dims:
        key, k1, k2, k3, k4, k5, k6 = jax.random.split(key, 7)
        wq, bq = _linear_init(k1, d_model, d_model)
        wk, bk = _linear_init(k2, d_model, d_model)
        wv, bv = _linear_init(k3, d_model, d_model)
        wo, bo = _linear_init(k4, d_model, d_model)
        w1, b1 = _linear_init(k5, d_model, ff_dim)
        w2, b2 = _linear_init(k6, ff_dim, d_model)
        layers.append(dict(
            ln1_w=jnp.ones((1, d_model), jnp.float32),
            ln1_b=jnp.zeros((1, d_model), jnp.float32),
            wq=wq, bq=bq, wk=wk, bk=bk, wv=wv, bv=bv, wo=wo, bo=bo,
            ln2_w=jnp.ones((1, d_model), jnp.float32),
            ln2_b=jnp.zeros((1, d_model), jnp.float32),
            w1=w1, b1=b1, w2=w2, b2=b2))
    return dict(layers=layers,
                norm_w=jnp.ones((1, d_model), jnp.float32),
                norm_b=jnp.zeros((1, d_model), jnp.float32))


# ------------------------------ pure-JAX ref --------------------------------

def ref_forward(x, mask, params, n_heads):
    hi = jax.lax.Precision.HIGHEST

    def ln(z, w, b, eps=1e-5):
        mu = jnp.mean(z, axis=-1, keepdims=True)
        zc = z - mu
        var = jnp.mean(zc * zc, axis=-1, keepdims=True)
        return zc * jax.lax.rsqrt(var + eps) * w + b

    B, S, D = x.shape
    dk = D // n_heads
    for p in params['layers']:
        h = ln(x, p['ln1_w'], p['ln1_b'])
        q = jnp.einsum('bsd,de->bse', h, p['wq'], precision=hi) + p['bq']
        k = jnp.einsum('bsd,de->bse', h, p['wk'], precision=hi) + p['bk']
        v = jnp.einsum('bsd,de->bse', h, p['wv'], precision=hi) + p['bv']
        qh = q.reshape(B, S, n_heads, dk).transpose(0, 2, 1, 3)
        kh = k.reshape(B, S, n_heads, dk).transpose(0, 2, 1, 3)
        vh = v.reshape(B, S, n_heads, dk).transpose(0, 2, 1, 3)
        scores = jnp.einsum('bhqd,bhkd->bhqk', qh, kh, precision=hi) / math.sqrt(dk)
        scores = jnp.where(mask[:, None, :, :] == 0.0, -1e9, scores)
        attn = jax.nn.softmax(scores, axis=-1)
        o = jnp.einsum('bhqk,bhkd->bhqd', attn, vh, precision=hi)
        o = o.transpose(0, 2, 1, 3).reshape(B, S, D)
        x = x + jnp.einsum('bsd,de->bse', o, p['wo'], precision=hi) + p['bo']
        h2 = ln(x, p['ln2_w'], p['ln2_b'])
        ff = jnp.maximum(jnp.einsum('bsd,df->bsf', h2, p['w1'], precision=hi) + p['b1'], 0.0)
        x = x + jnp.einsum('bsf,fd->bsd', ff, p['w2'], precision=hi) + p['b2']
    return ln(x, params['norm_w'], params['norm_b'])


# ---------------------------------- main -------------------------------------

if __name__ == "__main__":
    B, S, D = 2, 64, 128            # lane-dense D, S multiple of 8
    n_heads = 4
    ff_dims = [256, 192]            # heterogeneous FF widths ("width varying")

    key = jax.random.PRNGKey(0)
    key, kx, km, kp = jax.random.split(key, 4)
    x = jax.random.normal(kx, (B, S, D), jnp.float32)
    mask = (jax.random.uniform(km, (B, 1, S)) > 0.3).astype(jnp.float32)
    mask = mask.at[:, :, 0].set(1.0)        # at least one valid key position
    params = init_params(kp, D, ff_dims)
    packed = pack_params(params, n_heads)

    out = width_varying_encoder(x, mask, packed, n_heads)
    out = jax.block_until_ready(out)

    ref = ref_forward(x, mask, params, n_heads)
    assert out.shape == (B, S, D)
    # bf16 matmul weights/activations + approx reciprocal in the kernel vs. f32 reference.
    assert jnp.allclose(out, ref, atol=3e-2, rtol=3e-2), \
        f"max abs err {jnp.max(jnp.abs(out - ref))}"

    # TODO(synk): dropout / attn_dropout are training-time stochastic ops; they are
    # identity in eval mode and intentionally not implemented in the kernel.
    print("KERNEL_OK")
</pallas_src>

<mosaic_0001>
module attributes {stable_mosaic.version = 11 : i64} {
  func.func @kernel(%arg0: i32, %arg1: i32, %arg2: memref<1x64x128xf32, #tpu.memory_space<vmem>>, %arg3: memref<1x1x64xf32, #tpu.memory_space<vmem>>, %arg4: memref<1x1x128xf32, #tpu.memory_space<vmem>>, %arg5: memref<1x1x128xf32, #tpu.memory_space<vmem>>, %arg6: memref<1x128x384xbf16, #tpu.memory_space<vmem>>, %arg7: memref<1x1x384xf32, #tpu.memory_space<vmem>>, %arg8: memref<1x128x128xbf16, #tpu.memory_space<vmem>>, %arg9: memref<1x1x128xf32, #tpu.memory_space<vmem>>, %arg10: memref<1x1x128xf32, #tpu.memory_space<vmem>>, %arg11: memref<1x1x128xf32, #tpu.memory_space<vmem>>, %arg12: memref<1x128x256xbf16, #tpu.memory_space<vmem>>, %arg13: memref<1x1x256xf32, #tpu.memory_space<vmem>>, %arg14: memref<1x256x128xbf16, #tpu.memory_space<vmem>>, %arg15: memref<1x1x128xf32, #tpu.memory_space<vmem>>, %arg16: memref<1x128xf32, #tpu.memory_space<vmem>>, %arg17: memref<1x128xf32, #tpu.memory_space<vmem>>, %arg18: memref<1x64x128xf32, #tpu.memory_space<vmem>>) attributes {dimension_semantics = [#tpu.dimension_semantics<parallel>, #tpu.dimension_semantics<arbitrary>], iteration_bounds = array<i64: 2, 2>, scalar_prefetch = 0 : i64, scratch_operands = 0 : i64, tpu.core_type = #tpu.core_type<tc>, window_params = [{transform_indices = @transform_0, window_bounds = array<i64: 1, 64, 128>}, {transform_indices = @transform_1, window_bounds = array<i64: 1, 1, 64>}, {transform_indices = @transform_2, window_bounds = array<i64: 1, 1, 128>}, {transform_indices = @transform_3, window_bounds = array<i64: 1, 1, 128>}, {transform_indices = @transform_4, window_bounds = array<i64: 1, 128, 384>}, {transform_indices = @transform_5, window_bounds = array<i64: 1, 1, 384>}, {transform_indices = @transform_6, window_bounds = array<i64: 1, 128, 128>}, {transform_indices = @transform_7, window_bounds = array<i64: 1, 1, 128>}, {transform_indices = @transform_8, window_bounds = array<i64: 1, 1, 128>}, {transform_indices = @transform_9, window_bounds = array<i64: 1, 1, 128>}, {transform_indices = @transform_10, window_bounds = array<i64: 1, 128, 256>}, {transform_indices = @transform_11, window_bounds = array<i64: 1, 1, 256>}, {transform_indices = @transform_12, window_bounds = array<i64: 1, 256, 128>}, {transform_indices = @transform_13, window_bounds = array<i64: 1, 1, 128>}, {pipeline_mode = #tpu.pipeline_mode<synchronous>, transform_indices = @transform_14, window_bounds = array<i64: 1, 128>}, {pipeline_mode = #tpu.pipeline_mode<synchronous>, transform_indices = @transform_15, window_bounds = array<i64: 1, 128>}, {transform_indices = @transform_16, window_bounds = array<i64: 1, 64, 128>}]} {
    %c0_i32 = arith.constant 0 : i32
    %0 = arith.cmpi eq, %arg1, %c0_i32 : i32
    %1 = arith.extui %0 : i1 to i32
    %c0_i32_0 = arith.constant 0 : i32
    %2 = arith.cmpi ne, %1, %c0_i32_0 : i32
    scf.if %2 {
      %c0_66 = arith.constant 0 : index
      %c0_67 = arith.constant 0 : index
      %c0_68 = arith.constant 0 : index
      %131 = vector.load %arg2[%c0_66, %c0_67, %c0_68] : memref<1x64x128xf32, #tpu.memory_space<vmem>>, vector<1x64x128xf32>
      %c0_69 = arith.constant 0 : index
      %c0_70 = arith.constant 0 : index
      %c0_71 = arith.constant 0 : index
      %132 = vector.load %arg18[%c0_69, %c0_70, %c0_71] : memref<1x64x128xf32, #tpu.memory_space<vmem>>, vector<1x64x128xf32>
      tpu.vector_store %arg18[%c0_69, %c0_70, %c0_71], %131 {strides = array<i32>} : memref<1x64x128xf32, #tpu.memory_space<vmem>>, vector<1x64x128xf32>,
    } else {
    }
    %c0 = arith.constant 0 : index
    %c0_1 = arith.constant 0 : index
    %c0_2 = arith.constant 0 : index
    %3 = vector.load %arg18[%c0, %c0_1, %c0_2] : memref<1x64x128xf32, #tpu.memory_space<vmem>>, vector<1x64x128xf32>
    %4 = vector.shape_cast %3 : vector<1x64x128xf32> to vector<64x128xf32>
    %c0_3 = arith.constant 0 : index
    %c0_4 = arith.constant 0 : index
    %c0_5 = arith.constant 0 : index
    %5 = vector.load %arg3[%c0_3, %c0_4, %c0_5] : memref<1x1x64xf32, #tpu.memory_space<vmem>>, vector<1x1x64xf32>
    %cst = arith.constant 0.000000e+00 : f32
    %6 = vector.broadcast %cst : f32 to vector<1x1x64xf32>
    %7 = arith.cmpf oeq, %5, %6 : vector<1x1x64xf32>
    %cst_6 = arith.constant -1.000000e+09 : f32
    %cst_7 = arith.constant 0.000000e+00 : f32
    %8 = vector.broadcast %cst_6 : f32 to vector<1x1x64xf32>
    %9 = vector.broadcast %cst_7 : f32 to vector<1x1x64xf32>
    %10 = arith.select %7, %8, %9 : vector<1x1x64xi1>, vector<1x1x64xf32>
    %c0_8 = arith.constant 0 : index
    %c0_9 = arith.constant 0 : index
    %c0_10 = arith.constant 0 : index
    %11 = vector.load %arg4[%c0_8, %c0_9, %c0_10] : memref<1x1x128xf32, #tpu.memory_space<vmem>>, vector<1x1x128xf32>
    %12 = vector.shape_cast %11 : vector<1x1x128xf32> to vector<1x128xf32>
    %c0_11 = arith.constant 0 : index
    %c0_12 = arith.constant 0 : index
    %c0_13 = arith.constant 0 : index
    %13 = vector.load %arg5[%c0_11, %c0_12, %c0_13] : memref<1x1x128xf32, #tpu.memory_space<vmem>>, vector<1x1x128xf32>
    %14 = vector.shape_cast %13 : vector<1x1x128xf32> to vector<1x128xf32>
    %cst_14 = arith.constant dense<0.000000e+00> : vector<64xf32>
    %15 = vector.multi_reduction <add>, %4, %cst_14 [1] : vector<64x128xf32> to vector<64xf32>
    %16 = vector.shape_cast %15 : vector<64xf32> to vector<64x1xf32>
    %cst_15 = arith.constant 1.280000e+02 : f32
    %17 = vector.broadcast %cst_15 : f32 to vector<64x1xf32>
    %18 = arith.divf %16, %17 : vector<64x1xf32>
    %19 = vector.broadcast %18 : vector<64x1xf32> to vector<64x128xf32>
    %20 = arith.subf %4, %19 : vector<64x128xf32>
    %21 = arith.mulf %20, %20 : vector<64x128xf32>
    %cst_16 = arith.constant dense<0.000000e+00> : vector<64xf32>
    %22 = vector.multi_reduction <add>, %21, %cst_16 [1] : vector<64x128xf32> to vector<64xf32>
    %23 = vector.shape_cast %22 : vector<64xf32> to vector<64x1xf32>
    %cst_17 = arith.constant 1.280000e+02 : f32
    %24 = vector.broadcast %cst_17 : f32 to vector<64x1xf32>
    %25 = arith.divf %23, %24 : vector<64x1xf32>
    %cst_18 = arith.constant 9.99999974E-6 : f32
    %26 = vector.broadcast %cst_18 : f32 to vector<64x1xf32>
    %27 = arith.addf %25, %26 : vector<64x1xf32>
    %28 = math.rsqrt %27 : vector<64x1xf32>
    %29 = vector.broadcast %28 : vector<64x1xf32> to vector<64x128xf32>
    %30 = arith.mulf %20, %29 : vector<64x128xf32>
    %31 = vector.broadcast %12 : vector<1x128xf32> to vector<64x128xf32>
    %32 = arith.mulf %30, %31 : vector<64x128xf32>
    %33 = vector.broadcast %14 : vector<1x128xf32> to vector<64x128xf32>
    %34 = arith.addf %32, %33 : vector<64x128xf32>
    %35 = arith.truncf %34 : vector<64x128xf32> to vector<64x128xbf16>
    %c0_19 = arith.constant 0 : index
    %c0_20 = arith.constant 0 : index
    %c0_21 = arith.constant 0 : index
    %36 = vector.load %arg6[%c0_19, %c0_20, %c0_21] : memref<1x128x384xbf16, #tpu.memory_space<vmem>>, vector<1x128x384xbf16>
    %37 = vector.shape_cast %36 : vector<1x128x384xbf16> to vector<128x384xbf16>
    %cst_22 = arith.constant dense<0.000000e+00> : vector<64x384xf32>
    %38 = tpu.matmul %35, %37, %cst_22 {dimension_numbers = #tpu.dot_dimension_numbers<[1], [0], [0], [1], [0, 0, 1, 1], [], []>} : vector<64x128xbf16>, vector<128x384xbf16>, vector<64x384xf32> -> vector<64x384xf32>
    %c0_23 = arith.constant 0 : index
    %c0_24 = arith.constant 0 : index
    %c0_25 = arith.constant 0 : index
    %39 = vector.load %arg7[%c0_23, %c0_24, %c0_25] : memref<1x1x384xf32, #tpu.memory_space<vmem>>, vector<1x1x384xf32>
    %40 = vector.shape_cast %39 : vector<1x1x384xf32> to vector<1x384xf32>
    %41 = vector.broadcast %40 : vector<1x384xf32> to vector<64x384xf32>
    %42 = arith.addf %38, %41 : vector<64x384xf32>
    %43 = arith.truncf %42 : vector<64x384xf32> to vector<64x384xbf16>
    %44 = vector.shape_cast %43 : vector<64x384xbf16> to vector<1x64x12x32xbf16>
    %45 = tpu.transpose %44, [0, 2, 1, 3] : vector<1x64x12x32xbf16> -> vector<1x12x64x32xbf16>
    %46 = vector.extract_strided_slice %45 {offsets = [0, 0, 0, 0], sizes = [1, 4, 64, 32], strides = [1, 1, 1, 1]} : vector<1x12x64x32xbf16> to vector<1x4x64x32xbf16>
    %47 = vector.shape_cast %46 : vector<1x4x64x32xbf16> to vector<4x64x32xbf16>
    %48 = vector.extract_strided_slice %45 {offsets = [0, 4, 0, 0], sizes = [1, 4, 64, 32], strides = [1, 1, 1, 1]} : vector<1x12x64x32xbf16> to vector<1x4x64x32xbf16>
    %49 = vector.shape_cast %48 : vector<1x4x64x32xbf16> to vector<4x64x32xbf16>
    %50 = vector.extract_strided_slice %45 {offsets = [0, 8, 0, 0], sizes = [1, 4, 64, 32], strides = [1, 1, 1, 1]} : vector<1x12x64x32xbf16> to vector<1x4x64x32xbf16>
    %51 = vector.shape_cast %50 : vector<1x4x64x32xbf16> to vector<4x64x32xbf16>
    "tpu.trace_start"() <{level = 10 : i32, message = "nqd,nkd->nqk"}> : () -> ()
    %cst_26 = arith.constant dense<0.000000e+00> : vector<4x64x64xf32>
    %52 = tpu.matmul %47, %49, %cst_26 {dimension_numbers = #tpu.dot_dimension_numbers<[2], [2], [1], [1], [0, 0, 0, 1, 1, 1], [0], [0]>} : vector<4x64x32xbf16>, vector<4x64x32xbf16>, vector<4x64x64xf32> -> vector<4x64x64xf32>
    "tpu.trace_stop"() : () -> ()
    %53 = vector.shape_cast %52 : vector<4x64x64xf32> to vector<1x4x64x64xf32>
    %54 = vector.shape_cast %10 : vector<1x1x64xf32> to vector<1x1x1x64xf32>
    %55 = vector.broadcast %54 : vector<1x1x1x64xf32> to vector<1x4x64x64xf32>
    %56 = arith.addf %53, %55 : vector<1x4x64x64xf32>
    %cst_27 = arith.constant dense<0xFF800000> : vector<1x4x64xf32>
    %57 = vector.multi_reduction <maximumf>, %56, %cst_27 [3] : vector<1x4x64x64xf32> to vector<1x4x64xf32>
    %58 = vector.shape_cast %57 : vector<1x4x64xf32> to vector<1x4x64x1xf32>
    %59 = vector.broadcast %58 : vector<1x4x64x1xf32> to vector<1x4x64x64xf32>
    %60 = arith.subf %56, %59 : vector<1x4x64x64xf32>
    %61 = math.exp %60 : vector<1x4x64x64xf32>
    %cst_28 = arith.constant dense<0.000000e+00> : vector<1x4x64xf32>
    %62 = vector.multi_reduction <add>, %61, %cst_28 [3] : vector<1x4x64x64xf32> to vector<1x4x64xf32>
    %63 = vector.shape_cast %62 : vector<1x4x64xf32> to vector<1x4x64x1xf32>
    %64 = tpu.reciprocal %63 {approx = true} : vector<1x4x64x1xf32> -> vector<1x4x64x1xf32>
    %65 = vector.broadcast %64 : vector<1x4x64x1xf32> to vector<1x4x64x64xf32>
    %66 = arith.mulf %61, %65 : vector<1x4x64x64xf32>
    %67 = vector.shape_cast %66 : vector<1x4x64x64xf32> to vector<4x64x64xf32>
    %68 = arith.truncf %67 : vector<4x64x64xf32> to vector<4x64x64xbf16>
    "tpu.trace_start"() <{level = 10 : i32, message = "nqk,nkd->nqd"}> : () -> ()
    %cst_29 = arith.constant dense<0.000000e+00> : vector<4x64x32xf32>
    %69 = tpu.matmul %68, %51, %cst_29 {dimension_numbers = #tpu.dot_dimension_numbers<[2], [1], [1], [2], [0, 0, 0, 1, 1, 2], [0], [0]>} : vector<4x64x64xbf16>, vector<4x64x32xbf16>, vector<4x64x32xf32> -> vector<4x64x32xf32>
    "tpu.trace_stop"() : () -> ()
    %70 = vector.shape_cast %69 : vector<4x64x32xf32> to vector<1x4x64x32xf32>
    %71 = tpu.transpose %70, [0, 2, 1, 3] : vector<1x4x64x32xf32> -> vector<1x64x4x32xf32>
    %72 = vector.shape_cast %71 : vector<1x64x4x32xf32> to vector<64x128xf32>
    %73 = arith.truncf %72 : vector<64x128xf32> to vector<64x128xbf16>
    %c0_30 = arith.constant 0 : index
    %c0_31 = arith.constant 0 : index
    %c0_32 = arith.constant 0 : index
    %74 = vector.load %arg8[%c0_30, %c0_31, %c0_32] : memref<1x128x128xbf16, #tpu.memory_space<vmem>>, vector<1x128x128xbf16>
    %75 = vector.shape_cast %74 : vector<1x128x128xbf16> to vector<128x128xbf16>
    %cst_33 = arith.constant dense<0.000000e+00> : vector<64x128xf32>
    %76 = tpu.matmul %73, %75, %cst_33 {dimension_numbers = #tpu.dot_dimension_numbers<[1], [0], [0], [1], [0, 0, 1, 1], [], []>} : vector<64x128xbf16>, vector<128x128xbf16>, vector<64x128xf32> -> vector<64x128xf32>
    %77 = arith.addf %4, %76 : vector<64x128xf32>
    %c0_34 = arith.constant 0 : index
    %c0_35 = arith.constant 0 : index
    %c0_36 = arith.constant 0 : index
    %78 = vector.load %arg9[%c0_34, %c0_35, %c0_36] : memref<1x1x128xf32, #tpu.memory_space<vmem>>, vector<1x1x128xf32>
    %79 = vector.shape_cast %78 : vector<1x1x128xf32> to vector<1x128xf32>
    %80 = vector.broadcast %79 : vector<1x128xf32> to vector<64x128xf32>
    %81 = arith.addf %77, %80 : vector<64x128xf32>
    %c0_37 = arith.constant 0 : index
    %c0_38 = arith.constant 0 : index
    %c0_39 = arith.constant 0 : index
    %82 = vector.load %arg10[%c0_37, %c0_38, %c0_39] : memref<1x1x128xf32, #tpu.memory_space<vmem>>, vector<1x1x128xf32>
    %83 = vector.shape_cast %82 : vector<1x1x128xf32> to vector<1x128xf32>
    %c0_40 = arith.constant 0 : index
    %c0_41 = arith.constant 0 : index
    %c0_42 = arith.constant 0 : index
    %84 = vector.load %arg11[%c0_40, %c0_41, %c0_42] : memref<1x1x128xf32, #tpu.memory_space<vmem>>, vector<1x1x128xf32>
    %85 = vector.shape_cast %84 : vector<1x1x128xf32> to vector<1x128xf32>
    %cst_43 = arith.constant dense<0.000000e+00> : vector<64xf32>
    %86 = vector.multi_reduction <add>, %81, %cst_43 [1] : vector<64x128xf32> to vector<64xf32>
    %87 = vector.shape_cast %86 : vector<64xf32> to vector<64x1xf32>
    %cst_44 = arith.constant 1.280000e+02 : f32
    %88 = vector.broadcast %cst_44 : f32 to vector<64x1xf32>
    %89 = arith.divf %87, %88 : vector<64x1xf32>
    %90 = vector.broadcast %89 : vector<64x1xf32> to vector<64x128xf32>
    %91 = arith.subf %81, %90 : vector<64x128xf32>
    %92 = arith.mulf %91, %91 : vector<64x128xf32>
    %cst_45 = arith.constant dense<0.000000e+00> : vector<64xf32>
    %93 = vector.multi_reduction <add>, %92, %cst_45 [1] : vector<64x128xf32> to vector<64xf32>
    %94 = vector.shape_cast %93 : vector<64xf32> to vector<64x1xf32>
    %cst_46 = arith.constant 1.280000e+02 : f32
    %95 = vector.broadcast %cst_46 : f32 to vector<64x1xf32>
    %96 = arith.divf %94, %95 : vector<64x1xf32>
    %cst_47 = arith.constant 9.99999974E-6 : f32
    %97 = vector.broadcast %cst_47 : f32 to vector<64x1xf32>
    %98 = arith.addf %96, %97 : vector<64x1xf32>
    %99 = math.rsqrt %98 : vector<64x1xf32>
    %100 = vector.broadcast %99 : vector<64x1xf32> to vector<64x128xf32>
    %101 = arith.mulf %91, %100 : vector<64x128xf32>
    %102 = vector.broadcast %83 : vector<1x128xf32> to vector<64x128xf32>
    %103 = arith.mulf %101, %102 : vector<64x128xf32>
    %104 = vector.broadcast %85 : vector<1x128xf32> to vector<64x128xf32>
    %105 = arith.addf %103, %104 : vector<64x128xf32>
    %106 = arith.truncf %105 : vector<64x128xf32> to vector<64x128xbf16>
    %c0_48 = arith.constant 0 : index
    %c0_49 = arith.constant 0 : index
    %c0_50 = arith.constant 0 : index
    %107 = vector.load %arg12[%c0_48, %c0_49, %c0_50] : memref<1x128x256xbf16, #tpu.memory_space<vmem>>, vector<1x128x256xbf16>
    %108 = vector.shape_cast %107 : vector<1x128x256xbf16> to vector<128x256xbf16>
    %cst_51 = arith.constant dense<0.000000e+00> : vector<64x256xf32>
    %109 = tpu.matmul %106, %108, %cst_51 {dimension_numbers = #tpu.dot_dimension_numbers<[1], [0], [0], [1], [0, 0, 1, 1], [], []>} : vector<64x128xbf16>, vector<128x256xbf16>, vector<64x256xf32> -> vector<64x256xf32>
    %c0_52 = arith.constant 0 : index
    %c0_53 = arith.constant 0 : index
    %c0_54 = arith.constant 0 : index
    %110 = vector.load %arg13[%c0_52, %c0_53, %c0_54] : memref<1x1x256xf32, #tpu.memory_space<vmem>>, vector<1x1x256xf32>
    %111 = vector.shape_cast %110 : vector<1x1x256xf32> to vector<1x256xf32>
    %112 = vector.broadcast %111 : vector<1x256xf32> to vector<64x256xf32>
    %113 = arith.addf %109, %112 : vector<64x256xf32>
    %cst_55 = arith.constant 0.000000e+00 : f32
    %114 = vector.broadcast %cst_55 : f32 to vector<64x256xf32>
    %115 = arith.maximumf %113, %114 : vector<64x256xf32>
    %116 = arith.truncf %115 : vector<64x256xf32> to vector<64x256xbf16>
    %c0_56 = arith.constant 0 : index
    %c0_57 = arith.constant 0 : index
    %c0_58 = arith.constant 0 : index
    %117 = vector.load %arg14[%c0_56, %c0_57, %c0_58] : memref<1x256x128xbf16, #tpu.memory_space<vmem>>, vector<1x256x128xbf16>
    %118 = vector.shape_cast %117 : vector<1x256x128xbf16> to vector<256x128xbf16>
    %cst_59 = arith.constant dense<0.000000e+00> : vector<64x128xf32>
    %119 = tpu.matmul %116, %118, %cst_59 {dimension_numbers = #tpu.dot_dimension_numbers<[1], [0], [0], [1], [0, 0, 1, 1], [], []>} : vector<64x256xbf16>, vector<256x128xbf16>, vector<64x128xf32> -> vector<64x128xf32>
    %c0_60 = arith.constant 0 : index
    %c0_61 = arith.constant 0 : index
    %c0_62 = arith.constant 0 : index
    %120 = vector.load %arg15[%c0_60, %c0_61, %c0_62] : memref<1x1x128xf32, #tpu.memory_space<vmem>>, vector<1x1x128xf32>
    %121 = vector.shape_cast %120 : vector<1x1x128xf32> to vector<1x128xf32>
    %122 = vector.broadcast %121 : vector<1x128xf32> to vector<64x128xf32>
    %123 = arith.addf %119, %122 : vector<64x128xf32>
    %124 = arith.addf %81, %123 : vector<64x128xf32>
    %c1_i32 = arith.constant 1 : i32
    %125 = arith.cmpi eq, %arg1, %c1_i32 : i32
    %126 = arith.extui %125 : i1 to i32
    %c0_i32_63 = arith.constant 0 : i32
    %127 = arith.cmpi ne, %126, %c0_i32_63 : i32
    scf.if %127 {
      %c0_66 = arith.constant 0 : index
      %c0_67 = arith.constant 0 : index
      %131 = vector.load %arg16[%c0_66, %c0_67] : memref<1x128xf32, #tpu.memory_space<vmem>>, vector<1x128xf32>
      %c0_68 = arith.constant 0 : index
      %c0_69 = arith.constant 0 : index
      %132 = vector.load %arg17[%c0_68, %c0_69] : memref<1x128xf32, #tpu.memory_space<vmem>>, vector<1x128xf32>
      %cst_70 = arith.constant dense<0.000000e+00> : vector<64xf32>
      %133 = vector.multi_reduction <add>, %124, %cst_70 [1] : vector<64x128xf32> to vector<64xf32>
      %134 = vector.shape_cast %133 : vector<64xf32> to vector<64x1xf32>
      %cst_71 = arith.constant 1.280000e+02 : f32
      %135 = vector.broadcast %cst_71 : f32 to vector<64x1xf32>
      %136 = arith.divf %134, %135 : vector<64x1xf32>
      %137 = vector.broadcast %136 : vector<64x1xf32> to vector<64x128xf32>
      %138 = arith.subf %124, %137 : vector<64x128xf32>
      %139 = arith.mulf %138, %138 : vector<64x128xf32>
      %cst_72 = arith.constant dense<0.000000e+00> : vector<64xf32>
      %140 = vector.multi_reduction <add>, %139, %cst_72 [1] : vector<64x128xf32> to vector<64xf32>
      %141 = vector.shape_cast %140 : vector<64xf32> to vector<64x1xf32>
      %cst_73 = arith.constant 1.280000e+02 : f32
      %142 = vector.broadcast %cst_73 : f32 to vector<64x1xf32>
      %143 = arith.divf %141, %142 : vector<64x1xf32>
      %cst_74 = arith.constant 9.99999974E-6 : f32
      %144 = vector.broadcast %cst_74 : f32 to vector<64x1xf32>
      %145 = arith.addf %143, %144 : vector<64x1xf32>
      %146 = math.rsqrt %145 : vector<64x1xf32>
      %147 = vector.broadcast %146 : vector<64x1xf32> to vector<64x128xf32>
      %148 = arith.mulf %138, %147 : vector<64x128xf32>
      %149 = vector.broadcast %131 : vector<1x128xf32> to vector<64x128xf32>
      %150 = arith.mulf %148, %149 : vector<64x128xf32>
      %151 = vector.broadcast %132 : vector<1x128xf32> to vector<64x128xf32>
      %152 = arith.addf %150, %151 : vector<64x128xf32>
      %153 = vector.shape_cast %152 : vector<64x128xf32> to vector<1x64x128xf32>
      %c0_75 = arith.constant 0 : index
      %c0_76 = arith.constant 0 : index
      %c0_77 = arith.constant 0 : index
      %154 = vector.load %arg18[%c0_75, %c0_76, %c0_77] : memref<1x64x128xf32, #tpu.memory_space<vmem>>, vector<1x64x128xf32>
      tpu.vector_store %arg18[%c0_75, %c0_76, %c0_77], %153 {strides = array<i32>} : memref<1x64x128xf32, #tpu.memory_space<vmem>>, vector<1x64x128xf32>,
    } else {
    }
    %c1_i32_64 = arith.constant 1 : i32
    %128 = arith.cmpi slt, %arg1, %c1_i32_64 : i32
    %129 = arith.extui %128 : i1 to i32
    %c0_i32_65 = arith.constant 0 : i32
    %130 = arith.cmpi ne, %129, %c0_i32_65 : i32
    scf.if %130 {
      %131 = vector.shape_cast %124 : vector<64x128xf32> to vector<1x64x128xf32>
      %c0_66 = arith.constant 0 : index
      %c0_67 = arith.constant 0 : index
      %c0_68 = arith.constant 0 : index
      %132 = vector.load %arg18[%c0_66, %c0_67, %c0_68] : memref<1x64x128xf32, #tpu.memory_space<vmem>>, vector<1x64x128xf32>
      tpu.vector_store %arg18[%c0_66, %c0_67, %c0_68], %131 {strides = array<i32>} : memref<1x64x128xf32, #tpu.memory_space<vmem>>, vector<1x64x128xf32>,
    } else {
    }
    return
  }
  func.func @transform_0(%arg0: i32, %arg1: i32) -> (i32, i32, i32) {
    %c0_i32 = arith.constant 0 : i32
    %c0_i32_0 = arith.constant 0 : i32
    %c0_i32_1 = arith.constant 0 : i32
    return %arg0, %c0_i32, %c0_i32_0 : i32, i32, i32
  }
  func.func @transform_1(%arg0: i32, %arg1: i32) -> (i32, i32, i32) {
    %c0_i32 = arith.constant 0 : i32
    %c0_i32_0 = arith.constant 0 : i32
    %c0_i32_1 = arith.constant 0 : i32
    return %arg0, %c0_i32, %c0_i32_0 : i32, i32, i32
  }
  func.func @transform_2(%arg0: i32, %arg1: i32) -> (i32, i32, i32) {
    %c0_i32 = arith.constant 0 : i32
    %c0_i32_0 = arith.constant 0 : i32
    %c0_i32_1 = arith.constant 0 : i32
    return %arg1, %c0_i32, %c0_i32_0 : i32, i32, i32
  }
  func.func @transform_3(%arg0: i32, %arg1: i32) -> (i32, i32, i32) {
    %c0_i32 = arith.constant 0 : i32
    %c0_i32_0 = arith.constant 0 : i32
    %c0_i32_1 = arith.constant 0 : i32
    return %arg1, %c0_i32, %c0_i32_0 : i32, i32, i32
  }
  func.func @transform_4(%arg0: i32, %arg1: i32) -> (i32, i32, i32) {
    %c0_i32 = arith.constant 0 : i32
    %c0_i32_0 = arith.constant 0 : i32
    %c0_i32_1 = arith.constant 0 : i32
    return %arg1, %c0_i32, %c0_i32_0 : i32, i32, i32
  }
  func.func @transform_5(%arg0: i32, %arg1: i32) -> (i32, i32, i32) {
    %c0_i32 = arith.constant 0 : i32
    %c0_i32_0 = arith.constant 0 : i32
    %c0_i32_1 = arith.constant 0 : i32
    return %arg1, %c0_i32, %c0_i32_0 : i32, i32, i32
  }
  func.func @transform_6(%arg0: i32, %arg1: i32) -> (i32, i32, i32) {
    %c0_i32 = arith.constant 0 : i32
    %c0_i32_0 = arith.constant 0 : i32
    %c0_i32_1 = arith.constant 0 : i32
    return %arg1, %c0_i32, %c0_i32_0 : i32, i32, i32
  }
  func.func @transform_7(%arg0: i32, %arg1: i32) -> (i32, i32, i32) {
    %c0_i32 = arith.constant 0 : i32
    %c0_i32_0 = arith.constant 0 : i32
    %c0_i32_1 = arith.constant 0 : i32
    return %arg1, %c0_i32, %c0_i32_0 : i32, i32, i32
  }
  func.func @transform_8(%arg0: i32, %arg1: i32) -> (i32, i32, i32) {
    %c0_i32 = arith.constant 0 : i32
    %c0_i32_0 = arith.constant 0 : i32
    %c0_i32_1 = arith.constant 0 : i32
    return %arg1, %c0_i32, %c0_i32_0 : i32, i32, i32
  }
  func.func @transform_9(%arg0: i32, %arg1: i32) -> (i32, i32, i32) {
    %c0_i32 = arith.constant 0 : i32
    %c0_i32_0 = arith.constant 0 : i32
    %c0_i32_1 = arith.constant 0 : i32
    return %arg1, %c0_i32, %c0_i32_0 : i32, i32, i32
  }
  func.func @transform_10(%arg0: i32, %arg1: i32) -> (i32, i32, i32) {
    %c0_i32 = arith.constant 0 : i32
    %c0_i32_0 = arith.constant 0 : i32
    %c0_i32_1 = arith.constant 0 : i32
    return %arg1, %c0_i32, %c0_i32_0 : i32, i32, i32
  }
  func.func @transform_11(%arg0: i32, %arg1: i32) -> (i32, i32, i32) {
    %c0_i32 = arith.constant 0 : i32
    %c0_i32_0 = arith.constant 0 : i32
    %c0_i32_1 = arith.constant 0 : i32
    return %arg1, %c0_i32, %c0_i32_0 : i32, i32, i32
  }
  func.func @transform_12(%arg0: i32, %arg1: i32) -> (i32, i32, i32) {
    %c0_i32 = arith.constant 0 : i32
    %c0_i32_0 = arith.constant 0 : i32
    %c0_i32_1 = arith.constant 0 : i32
    return %arg1, %c0_i32, %c0_i32_0 : i32, i32, i32
  }
  func.func @transform_13(%arg0: i32, %arg1: i32) -> (i32, i32, i32) {
    %c0_i32 = arith.constant 0 : i32
    %c0_i32_0 = arith.constant 0 : i32
    %c0_i32_1 = arith.constant 0 : i32
    return %arg1, %c0_i32, %c0_i32_0 : i32, i32, i32
  }
  func.func @transform_14(%arg0: i32, %arg1: i32) -> (i32, i32) {
    %c0_i32 = arith.constant 0 : i32
    %c0_i32_0 = arith.constant 0 : i32
    %c0_i32_1 = arith.constant 0 : i32
    return %c0_i32, %c0_i32_0 : i32, i32
  }
  func.func @transform_15(%arg0: i32, %arg1: i32) -> (i32, i32) {
    %c0_i32 = arith.constant 0 : i32
    %c0_i32_0 = arith.constant 0 : i32
    %c0_i32_1 = arith.constant 0 : i32
    return %c0_i32, %c0_i32_0 : i32, i32
  }
  func.func @transform_16(%arg0: i32, %arg1: i32) -> (i32, i32, i32) {
    %c0_i32 = arith.constant 0 : i32
    %c0_i32_0 = arith.constant 0 : i32
    %c0_i32_1 = arith.constant 0 : i32
    return %arg0, %c0_i32, %c0_i32_0 : i32, i32, i32
  }
}

</mosaic_0001>

<llo_original>
// kernel: tpu_custom_call.1
$region0: #{tpu_custom_call.1}
  #allocation0 [shape = 'u32[]', space=smem, size = 0x4, offset = 0x4, fixed_abs, tag = 'smem constant byte address 0x4 - core index']
  #allocation1 [shape = 'u32[144,128]{1,0:T(1,128)}', space=vmem, size = 0x12000, scoped, tag = 'internal scratch']
  %s0 = inlined_call_operand.hbm [shape: f32[2,64,128], index: 0, kind: input, shape index: {}]
  %s1 = inlined_call_operand.hbm [shape: f32[2,1,64], index: 1, kind: input, shape index: {}]
  %s2 = inlined_call_operand.hbm [shape: f32[2,1,128], index: 2, kind: input, shape index: {}]
  %s3 = inlined_call_operand.hbm [shape: f32[2,1,128], index: 3, kind: input, shape index: {}]
  %s4 = inlined_call_operand.hbm [shape: bf16[2,128,384], index: 4, kind: input, shape index: {}]
  %s5 = inlined_call_operand.vmem [shape: f32[2,1,384], index: 5, kind: input, shape index: {}]
  %s6 = inlined_call_operand.hbm [shape: bf16[2,128,128], index: 6, kind: input, shape index: {}]
  %s7 = inlined_call_operand.vmem [shape: f32[2,1,128], index: 7, kind: input, shape index: {}]
  %s8 = inlined_call_operand.vmem [shape: f32[2,1,128], index: 8, kind: input, shape index: {}]
  %s9 = inlined_call_operand.vmem [shape: f32[2,1,128], index: 9, kind: input, shape index: {}]
  %s10 = inlined_call_operand.hbm [shape: bf16[2,128,256], index: 10, kind: input, shape index: {}]
  %s11 = inlined_call_operand.vmem [shape: f32[2,1,256], index: 11, kind: input, shape index: {}]
  %s12 = inlined_call_operand.hbm [shape: bf16[2,256,128], index: 12, kind: input, shape index: {}]
  %s13 = inlined_call_operand.vmem [shape: f32[2,1,128], index: 13, kind: input, shape index: {}]
  %s14 = inlined_call_operand.vmem [shape: f32[1,128], index: 14, kind: input, shape index: {}]
  %s15 = inlined_call_operand.vmem [shape: f32[1,128], index: 15, kind: input, shape index: {}]
  %s16 = inlined_call_operand.hbm [shape: f32[2,64,128], index: 16, kind: output, shape index: {}]
  %s17 = sld [smem:[#allocation0]]
  $region141: #{tpu_custom_call.1} parent=0
    _
  %s19 = ssub.s32 1, %s17
  %s20 = scalar_select 0, %s19, %s17
  $region1: #{tpu_custom_call.1} parent=0
    #allocation2 [shape = 'u8[65536]{0}', space=vmem, size = 0x10000, scoped, tag = 'input window, operand 0']
    #allocation3 [shape = 's32[2]{0}', space=sflag, size = 0x8, scoped, tag = 'scoped memory for tpu_custom_call.1']
    #allocation4 [shape = 's32[2]{0}', space=sflag, size = 0x8, scoped, tag = 'scoped memory for tpu_custom_call.1']
    #allocation5 [shape = 'u8[1024]{0}', space=vmem, size = 0x400, scoped, tag = 'input window, operand 1']
    #allocation6 [shape = 's32[2]{0}', space=sflag, size = 0x8, scoped, tag = 'scoped memory for tpu_custom_call.1']
    #allocation7 [shape = 'u8[1024]{0}', space=vmem, size = 0x400, scoped, tag = 'input window, operand 2']
    #allocation8 [shape = 'u8[1024]{0}', space=vmem, size = 0x400, scoped, tag = 'input window, operand 3']
    #allocation9 [shape = 's32[2]{0}', space=sflag, size = 0x8, scoped, tag = 'scoped memory for tpu_custom_call.1']
    #allocation10 [shape = 'u8[196608]{0}', space=vmem, size = 0x30000, scoped, tag = 'input window, operand 4']
    #allocation11 [shape = 'u8[65536]{0}', space=vmem, size = 0x10000, scoped, tag = 'input window, operand 6']
    #allocation12 [shape = 's32[2]{0}', space=sflag, size = 0x8, scoped, tag = 'scoped memory for tpu_custom_call.1']
    #allocation13 [shape = 'u8[131072]{0}', space=vmem, size = 0x20000, scoped, tag = 'input window, operand 10']
    #allocation14 [shape = 'u8[131072]{0}', space=vmem, size = 0x20000, scoped, tag = 'input window, operand 12']
    #allocation15 [shape = 's32[2]{0}', space=sflag, size = 0x8, scoped, tag = 'scoped memory for tpu_custom_call.1']
    #allocation16 [shape = 'u8[65536]{0}', space=vmem, size = 0x10000, scoped, tag = 'output window, operand 0']
    %21 = vsyncpa [#allocation3], 0
    %s22 = scalar_lea.sflag [#allocation3], 1
    %23 = vsyncpa %s22, 0
    %24 = vsyncpa [#allocation6], 0
    %s25 = scalar_lea.sflag [#allocation6], 1
    %26 = vsyncpa %s25, 0
    %27 = vsyncpa [#allocation9], 0
    %s28 = scalar_lea.sflag [#allocation9], 1
    %29 = vsyncpa %s28, 0
    %30 = vsyncpa [#allocation12], 0
    %s31 = scalar_lea.sflag [#allocation12], 1
    %32 = vsyncpa %s31, 0
    %33 = vsyncpa [#allocation15], 0
    %s34 = scalar_lea.sflag [#allocation15], 1
    %35 = vsyncpa %s34, 0
    %36 = vsyncpa [#allocation4], 0
    %s37 = scalar_lea.sflag [#allocation4], 1
    %38 = vsyncpa %s37, 0
    loop: start=0, step=1, limit=6
    $region2: #{tpu_custom_call.1} parent=1 // loop_pre_header
      _
    $region3: #{tpu_custom_call.1} parent=1 // loop_header
      %s40 = sphi 0, %s44
      %p41 = scmp.ge.s32.totalorder %s40, 6
      %s47 = sphi 0, %s59
      %s48 = sphi 0, %s55
      %s49 = sphi 0, %s47
      %s50 = sphi 0, %s48
      %s51 = sphi 0, %s49
      %s52 = sphi 0, %s50
      %s62 = sphi 0, %s64
      %s65 = sphi 0, %s62
      %s66 = sphi 0, %s65
      %s82 = sphi 0, %s66
      %s88 = sphi 0, %s90
      %s91 = sphi 0, %s88
      %s92 = sphi 0, %s91
      %s108 = sphi 0, %s92
      %s114 = sphi 0, %s116
      %s117 = sphi 0, %s114
      %s118 = sphi 0, %s117
      %s134 = sphi 0, %s118
      %s140 = sphi 0, %s142
      %s143 = sphi 0, %s140
      %s144 = sphi 0, %s143
      %s160 = sphi 0, %s144
      %s166 = sphi 0, %s168
      %s169 = sphi 0, %s166
      %s170 = sphi 0, %s169
      %s186 = sphi 0, %s170
      %s192 = sphi 0, %s194
      %s195 = sphi 0, %s192
      %s196 = sphi 0, %s195
      %s212 = sphi 0, %s196
      %s218 = sphi 0, %s220
      %s221 = sphi 0, %s218
      %s222 = sphi 0, %s221
      %s238 = sphi 0, %s222
      %s244 = sphi 0, %s246
      %s247 = sphi 0, %s244
      %s248 = sphi 0, %s247
      %s264 = sphi 0, %s248
      %s270 = sphi 0, %s272
      %s273 = sphi 0, %s270
      %s274 = sphi 0, %s273
      %s290 = sphi 0, %s274
      %s296 = sphi 0, %s298
      %s299 = sphi 0, %s296
      %s300 = sphi 0, %s299
      %s316 = sphi 0, %s300
      %s322 = sphi 0, %s324
      %s325 = sphi 0, %s322
      %s326 = sphi 0, %s325
      %s342 = sphi 0, %s326
      %s348 = sphi 0, %s350
      %s351 = sphi 0, %s348
      %s352 = sphi 0, %s351
      %s368 = sphi 0, %s352
      %s374 = sphi 0, %s376
      %s377 = sphi 0, %s374
      %s378 = sphi 0, %s377
      %s394 = sphi 0, %s378
      %s400 = sphi 0, %s402
      %s403 = sphi 0, %s400
      %s404 = sphi 0, %s403
      %s420 = sphi 0, %s404
      %s424 = sphi 0, %s424
      %s426 = sphi 0, %s424
      %s427 = sphi 0, %s426
      %s441 = sphi 0, %s427
      %s445 = sphi 0, %s445
      %s447 = sphi 0, %s445
      %s448 = sphi 0, %s447
      %s462 = sphi 0, %s448
      %s468 = sphi 0, %s470
      %s471 = sphi 0, %s468
      %s472 = sphi 0, %s471
      %s488 = sphi 0, %s472
    $region4: #{tpu_custom_call.1} parent=1 // loop_header_branch
      %43 = sbr.rel (%p41) target = $region8
    $region5: #{tpu_custom_call.1} parent=1 // loop_body
      %s45 = ssub.s32 %s40, 1
      %s46 = ssub.s32 %s40, 2
      %s53 = sadd.s32 1, %s48
      %p54 = scmp.ge.s32.totalorder %s53, 2
      %s55 = scalar_select %p54, 0, %s53
      %s56 = sadd.s32 1, %s47
      %s57 = scalar_select %p54, %s56, %s47
      %p58 = scmp.ge.s32.totalorder %s57, 2
      %s59 = scalar_select %p58, 0, %s57
      %s60 = ssub.s32 %s47, %s59
      %p61 = scmp.eq.s32.totalorder %s60, 0
      %s63 = sadd.s32 %s62, 1
      %s64 = scalar_select %p61, %s62, %s63
      %p67 = pneg %p61
      %p68 = scmp.eq.s32.totalorder %s40, 3
      %p69 = por %p67, %p68
      %p70 = scmp.ne.s32.totalorder %s62, %s65
      %p71 = scmp.eq.s32.totalorder %s40, 0
      %p72 = por %p70, %p71
      %p73 = scmp.ne.s32.totalorder %s62, %s65
      %p74 = scmp.eq.s32.totalorder %s45, 3
      %p75 = por %p73, %p74
      %p76 = scmp.ne.s32.totalorder %s65, %s66
      %p77 = scmp.eq.s32.totalorder %s45, 0
      %p78 = por %p76, %p77
      %p79 = scmp.ne.s32.totalorder %s65, %s66
      %p80 = scmp.eq.s32.totalorder %s46, 3
      %p81 = por %p79, %p80
      %p83 = scmp.ne.s32.totalorder %s66, %s82
      %p84 = scmp.eq.s32.totalorder %s46, 0
      %p85 = por %p83, %p84
      %s86 = ssub.s32 %s47, %s59
      %p87 = scmp.eq.s32.totalorder %s86, 0
      %s89 = sadd.s32 %s88, 1
      %s90 = scalar_select %p87, %s88, %s89
      %p93 = pneg %p87
      %p94 = scmp.eq.s32.totalorder %s40, 3
      %p95 = por %p93, %p94
      %p96 = scmp.ne.s32.totalorder %s88, %s91
      %p97 = scmp.eq.s32.totalorder %s40, 0
      %p98 = por %p96, %p97
      %p99 = scmp.ne.s32.totalorder %s88, %s91
      %p100 = scmp.eq.s32.totalorder %s45, 3
      %p101 = por %p99, %p100
      %p102 = scmp.ne.s32.totalorder %s91, %s92
      %p103 = scmp.eq.s32.totalorder %s45, 0
      %p104 = por %p102, %p103
      %p105 = scmp.ne.s32.totalorder %s91, %s92
      %p106 = scmp.eq.s32.totalorder %s46, 3
      %p107 = por %p105, %p106
      %p109 = scmp.ne.s32.totalorder %s92, %s108
      %p110 = scmp.eq.s32.totalorder %s46, 0
      %p111 = por %p109, %p110
      %s112 = ssub.s32 %s48, %s55
      %p113 = scmp.eq.s32.totalorder %s112, 0
      %s115 = sadd.s32 %s114, 1
      %s116 = scalar_select %p113, %s114, %s115
      %p119 = pneg %p113
      %p120 = scmp.eq.s32.totalorder %s40, 3
      %p121 = por %p119, %p120
      %p122 = scmp.ne.s32.totalorder %s114, %s117
      %p123 = scmp.eq.s32.totalorder %s40, 0
      %p124 = por %p122, %p123
      %p125 = scmp.ne.s32.totalorder %s114, %s117
      %p126 = scmp.eq.s32.totalorder %s45, 3
      %p127 = por %p125, %p126
      %p128 = scmp.ne.s32.totalorder %s117, %s118
      %p129 = scmp.eq.s32.totalorder %s45, 0
      %p130 = por %p128, %p129
      %p131 = scmp.ne.s32.totalorder %s117, %s118
      %p132 = scmp.eq.s32.totalorder %s46, 3
      %p133 = por %p131, %p132
      %p135 = scmp.ne.s32.totalorder %s118, %s134
      %p136 = scmp.eq.s32.totalorder %s46, 0
      %p137 = por %p135, %p136
      %s138 = ssub.s32 %s48, %s55
      %p139 = scmp.eq.s32.totalorder %s138, 0
      %s141 = sadd.s32 %s140, 1
      %s142 = scalar_select %p139, %s140, %s141
      %p145 = pneg %p139
      %p146 = scmp.eq.s32.totalorder %s40, 3
      %p147 = por %p145, %p146
      %p148 = scmp.ne.s32.totalorder %s140, %s143
      %p149 = scmp.eq.s32.totalorder %s40, 0
      %p150 = por %p148, %p149
      %p151 = scmp.ne.s32.totalorder %s140, %s143
      %p152 = scmp.eq.s32.totalorder %s45, 3
      %p153 = por %p151, %p152
      %p154 = scmp.ne.s32.totalorder %s143, %s144
      %p155 = scmp.eq.s32.totalorder %s45, 0
      %p156 = por %p154, %p155
      %p157 = scmp.ne.s32.totalorder %s143, %s144
      %p158 = scmp.eq.s32.totalorder %s46, 3
      %p159 = por %p157, %p158
      %p161 = scmp.ne.s32.totalorder %s144, %s160
      %p162 = scmp.eq.s32.totalorder %s46, 0
      %p163 = por %p161, %p162
      %s164 = ssub.s32 %s48, %s55
      %p165 = scmp.eq.s32.totalorder %s164, 0
      %s167 = sadd.s32 %s166, 1
      %s168 = scalar_select %p165, %s166, %s167
      %p171 = pneg %p165
      %p172 = scmp.eq.s32.totalorder %s40, 3
      %p173 = por %p171, %p172
      %p174 = scmp.ne.s32.totalorder %s166, %s169
      %p175 = scmp.eq.s32.totalorder %s40, 0
      %p176 = por %p174, %p175
      %p177 = scmp.ne.s32.totalorder %s166, %s169
      %p178 = scmp.eq.s32.totalorder %s45, 3
      %p179 = por %p177, %p178
      %p180 = scmp.ne.s32.totalorder %s169, %s170
      %p181 = scmp.eq.s32.totalorder %s45, 0
      %p182 = por %p180, %p181
      %p183 = scmp.ne.s32.totalorder %s169, %s170
      %p184 = scmp.eq.s32.totalorder %s46, 3
      %p185 = por %p183, %p184
      %p187 = scmp.ne.s32.totalorder %s170, %s186
      %p188 = scmp.eq.s32.totalorder %s46, 0
      %p189 = por %p187, %p188
      %s190 = ssub.s32 %s48, %s55
      %p191 = scmp.eq.s32.totalorder %s190, 0
      %s193 = sadd.s32 %s192, 1
      %s194 = scalar_select %p191, %s192, %s193
      %p197 = pneg %p191
      %p198 = scmp.eq.s32.totalorder %s40, 3
      %p199 = por %p197, %p198
      %p200 = scmp.ne.s32.totalorder %s192, %s195
      %p201 = scmp.eq.s32.totalorder %s40, 0
      %p202 = por %p200, %p201
      %p203 = scmp.ne.s32.totalorder %s192, %s195
      %p204 = scmp.eq.s32.totalorder %s45, 3
      %p205 = por %p203, %p204
      %p206 = scmp.ne.s32.totalorder %s195, %s196
      %p207 = scmp.eq.s32.totalorder %s45, 0
      %p208 = por %p206, %p207
      %p209 = scmp.ne.s32.totalorder %s195, %s196
      %p210 = scmp.eq.s32.totalorder %s46, 3
      %p211 = por %p209, %p210
      %p213 = scmp.ne.s32.totalorder %s196, %s212
      %p214 = scmp.eq.s32.totalorder %s46, 0
      %p215 = por %p213, %p214
      %s216 = ssub.s32 %s48, %s55
      %p217 = scmp.eq.s32.totalorder %s216, 0
      %s219 = sadd.s32 %s218, 1
      %s220 = scalar_select %p217, %s218, %s219
      %p223 = pneg %p217
      %p224 = scmp.eq.s32.totalorder %s40, 3
      %p225 = por %p223, %p224
      %p226 = scmp.ne.s32.totalorder %s218, %s221
      %p227 = scmp.eq.s32.totalorder %s40, 0
      %p228 = por %p226, %p227
      %p229 = scmp.ne.s32.totalorder %s218, %s221
      %p230 = scmp.eq.s32.totalorder %s45, 3
      %p231 = por %p229, %p230
      %p232 = scmp.ne.s32.totalorder %s221, %s222
      %p233 = scmp.eq.s32.totalorder %s45, 0
      %p234 = por %p232, %p233
      %p235 = scmp.ne.s32.totalorder %s221, %s222
      %p236 = scmp.eq.s32.totalorder %s46, 3
      %p237 = por %p235, %p236
      %p239 = scmp.ne.s32.totalorder %s222, %s238
      %p240 = scmp.eq.s32.totalorder %s46, 0
      %p241 = por %p239, %p240
      %s242 = ssub.s32 %s48, %s55
      %p243 = scmp.eq.s32.totalorder %s242, 0
      %s245 = sadd.s32 %s244, 1
      %s246 = scalar_select %p243, %s244, %s245
      %p249 = pneg %p243
      %p250 = scmp.eq.s32.totalorder %s40, 3
      %p251 = por %p249, %p250
      %p252 = scmp.ne.s32.totalorder %s244, %s247
      %p253 = scmp.eq.s32.totalorder %s40, 0
      %p254 = por %p252, %p253
      %p255 = scmp.ne.s32.totalorder %s244, %s247
      %p256 = scmp.eq.s32.totalorder %s45, 3
      %p257 = por %p255, %p256
      %p258 = scmp.ne.s32.totalorder %s247, %s248
      %p259 = scmp.eq.s32.totalorder %s45, 0
      %p260 = por %p258, %p259
      %p261 = scmp.ne.s32.totalorder %s247, %s248
      %p262 = scmp.eq.s32.totalorder %s46, 3
      %p263 = por %p261, %p262
      %p265 = scmp.ne.s32.totalorder %s248, %s264
      %p266 = scmp.eq.s32.totalorder %s46, 0
      %p267 = por %p265, %p266
      %s268 = ssub.s32 %s48, %s55
      %p269 = scmp.eq.s32.totalorder %s268, 0
      %s271 = sadd.s32 %s270, 1
      %s272 = scalar_select %p269, %s270, %s271
      %p275 = pneg %p269
      %p276 = scmp.eq.s32.totalorder %s40, 3
      %p277 = por %p275, %p276
      %p278 = scmp.ne.s32.totalorder %s270, %s273
      %p279 = scmp.eq.s32.totalorder %s40, 0
      %p280 = por %p278, %p279
      %p281 = scmp.ne.s32.totalorder %s270, %s273
      %p282 = scmp.eq.s32.totalorder %s45, 3
      %p283 = por %p281, %p282
      %p284 = scmp.ne.s32.totalorder %s273, %s274
      %p285 = scmp.eq.s32.totalorder %s45, 0
      %p286 = por %p284, %p285
      %p287 = scmp.ne.s32.totalorder %s273, %s274
      %p288 = scmp.eq.s32.totalorder %s46, 3
      %p289 = por %p287, %p288
      %p291 = scmp.ne.s32.totalorder %s274, %s290
      %p292 = scmp.eq.s32.totalorder %s46, 0
      %p293 = por %p291, %p292
      %s294 = ssub.s32 %s48, %s55
      %p295 = scmp.eq.s32.totalorder %s294, 0
      %s297 = sadd.s32 %s296, 1
      %s298 = scalar_select %p295, %s296, %s297
      %p301 = pneg %p295
      %p302 = scmp.eq.s32.totalorder %s40, 3
      %p303 = por %p301, %p302
      %p304 = scmp.ne.s32.totalorder %s296, %s299
      %p305 = scmp.eq.s32.totalorder %s40, 0
      %p306 = por %p304, %p305
      %p307 = scmp.ne.s32.totalorder %s296, %s299
      %p308 = scmp.eq.s32.totalorder %s45, 3
      %p309 = por %p307, %p308
      %p310 = scmp.ne.s32.totalorder %s299, %s300
      %p311 = scmp.eq.s32.totalorder %s45, 0
      %p312 = por %p310, %p311
      %p313 = scmp.ne.s32.totalorder %s299, %s300
      %p314 = scmp.eq.s32.totalorder %s46, 3
      %p315 = por %p313, %p314
      %p317 = scmp.ne.s32.totalorder %s300, %s316
      %p318 = scmp.eq.s32.totalorder %s46, 0
      %p319 = por %p317, %p318
      %s320 = ssub.s32 %s48, %s55
      %p321 = scmp.eq.s32.totalorder %s320, 0
      %s323 = sadd.s32 %s322, 1
      %s324 = scalar_select %p321, %s322, %s323
      %p327 = pneg %p321
      %p328 = scmp.eq.s32.totalorder %s40, 3
      %p329 = por %p327, %p328
      %p330 = scmp.ne.s32.totalorder %s322, %s325
      %p331 = scmp.eq.s32.totalorder %s40, 0
      %p332 = por %p330, %p331
      %p333 = scmp.ne.s32.totalorder %s322, %s325
      %p334 = scmp.eq.s32.totalorder %s45, 3
      %p335 = por %p333, %p334
      %p336 = scmp.ne.s32.totalorder %s325, %s326
      %p337 = scmp.eq.s32.totalorder %s45, 0
      %p338 = por %p336, %p337
      %p339 = scmp.ne.s32.totalorder %s325, %s326
      %p340 = scmp.eq.s32.totalorder %s46, 3
      %p341 = por %p339, %p340
      %p343 = scmp.ne.s32.totalorder %s326, %s342
      %p344 = scmp.eq.s32.totalorder %s46, 0
      %p345 = por %p343, %p344
      %s346 = ssub.s32 %s48, %s55
      %p347 = scmp.eq.s32.totalorder %s346, 0
      %s349 = sadd.s32 %s348, 1
      %s350 = scalar_select %p347, %s348, %s349
      %p353 = pneg %p347
      %p354 = scmp.eq.s32.totalorder %s40, 3
      %p355 = por %p353, %p354
      %p356 = scmp.ne.s32.totalorder %s348, %s351
      %p357 = scmp.eq.s32.totalorder %s40, 0
      %p358 = por %p356, %p357
      %p359 = scmp.ne.s32.totalorder %s348, %s351
      %p360 = scmp.eq.s32.totalorder %s45, 3
      %p361 = por %p359, %p360
      %p362 = scmp.ne.s32.totalorder %s351, %s352
      %p363 = scmp.eq.s32.totalorder %s45, 0
      %p364 = por %p362, %p363
      %p365 = scmp.ne.s32.totalorder %s351, %s352
      %p366 = scmp.eq.s32.totalorder %s46, 3
      %p367 = por %p365, %p366
      %p369 = scmp.ne.s32.totalorder %s352, %s368
      %p370 = scmp.eq.s32.totalorder %s46, 0
      %p371 = por %p369, %p370
      %s372 = ssub.s32 %s48, %s55
      %p373 = scmp.eq.s32.totalorder %s372, 0
      %s375 = sadd.s32 %s374, 1
      %s376 = scalar_select %p373, %s374, %s375
      %p379 = pneg %p373
      %p380 = scmp.eq.s32.totalorder %s40, 3
      %p381 = por %p379, %p380
      %p382 = scmp.ne.s32.totalorder %s374, %s377
      %p383 = scmp.eq.s32.totalorder %s40, 0
      %p384 = por %p382, %p383
      %p385 = scmp.ne.s32.totalorder %s374, %s377
      %p386 = scmp.eq.s32.totalorder %s45, 3
      %p387 = por %p385, %p386
      %p388 = scmp.ne.s32.totalorder %s377, %s378
      %p389 = scmp.eq.s32.totalorder %s45, 0
      %p390 = por %p388, %p389
      %p391 = scmp.ne.s32.totalorder %s377, %s378
      %p392 = scmp.eq.s32.totalorder %s46, 3
      %p393 = por %p391, %p392
      %p395 = scmp.ne.s32.totalorder %s378, %s394
      %p396 = scmp.eq.s32.totalorder %s46, 0
      %p397 = por %p395, %p396
      %s398 = ssub.s32 %s48, %s55
      %p399 = scmp.eq.s32.totalorder %s398, 0
      %s401 = sadd.s32 %s400, 1
      %s402 = scalar_select %p399, %s400, %s401
      %p405 = pneg %p399
      %p406 = scmp.eq.s32.totalorder %s40, 3
      %p407 = por %p405, %p406
      %p408 = scmp.ne.s32.totalorder %s400, %s403
      %p409 = scmp.eq.s32.totalorder %s40, 0
      %p410 = por %p408, %p409
      %p411 = scmp.ne.s32.totalorder %s400, %s403
      %p412 = scmp.eq.s32.totalorder %s45, 3
      %p413 = por %p411, %p412
      %p414 = scmp.ne.s32.totalorder %s403, %s404
      %p415 = scmp.eq.s32.totalorder %s45, 0
      %p416 = por %p414, %p415
      %p417 = scmp.ne.s32.totalorder %s403, %s404
      %p418 = scmp.eq.s32.totalorder %s46, 3
      %p419 = por %p417, %p418
      %p421 = scmp.ne.s32.totalorder %s404, %s420
      %p422 = scmp.eq.s32.totalorder %s46, 0
      %p423 = por %p421, %p422
      %s425 = sadd.s32 %s424, 1
      %p428 = scmp.eq.s32.totalorder %s40, 3
      %p429 = scmp.ne.s32.totalorder %s424, %s426
      %p430 = scmp.eq.s32.totalorder %s40, 0
      %p431 = por %p429, %p430
      %p432 = scmp.ne.s32.totalorder %s424, %s426
      %p433 = scmp.eq.s32.totalorder %s45, 3
      %p434 = por %p432, %p433
      %p435 = scmp.ne.s32.totalorder %s426, %s427
      %p436 = scmp.eq.s32.totalorder %s45, 0
      %p437 = por %p435, %p436
      %p438 = scmp.ne.s32.totalorder %s426, %s427
      %p439 = scmp.eq.s32.totalorder %s46, 3
      %p440 = por %p438, %p439
      %p442 = scmp.ne.s32.totalorder %s427, %s441
      %p443 = scmp.eq.s32.totalorder %s46, 0
      %p444 = por %p442, %p443
      %s446 = sadd.s32 %s445, 1
      %p449 = scmp.eq.s32.totalorder %s40, 3
      %p450 = scmp.ne.s32.totalorder %s445, %s447
      %p451 = scmp.eq.s32.totalorder %s40, 0
      %p452 = por %p450, %p451
      %p453 = scmp.ne.s32.totalorder %s445, %s447
      %p454 = scmp.eq.s32.totalorder %s45, 3
      %p455 = por %p453, %p454
      %p456 = scmp.ne.s32.totalorder %s447, %s448
      %p457 = scmp.eq.s32.totalorder %s45, 0
      %p458 = por %p456, %p457
      %p459 = scmp.ne.s32.totalorder %s447, %s448
      %p460 = scmp.eq.s32.totalorder %s46, 3
      %p461 = por %p459, %p460
      %p463 = scmp.ne.s32.totalorder %s448, %s462
      %p464 = scmp.eq.s32.totalorder %s46, 0
      %p465 = por %p463, %p464
      %s466 = ssub.s32 %s47, %s59
      %p467 = scmp.eq.s32.totalorder %s466, 0
      %s469 = sadd.s32 %s468, 1
      %s470 = scalar_select %p467, %s468, %s469
      %p473 = pneg %p467
      %p474 = scmp.eq.s32.totalorder %s40, 3
      %p475 = por %p473, %p474
      %p476 = scmp.ne.s32.totalorder %s468, %s471
      %p477 = scmp.eq.s32.totalorder %s40, 0
      %p478 = por %p476, %p477
      %p479 = scmp.ne.s32.totalorder %s468, %s471
      %p480 = scmp.eq.s32.totalorder %s45, 3
      %p481 = por %p479, %p480
      %p482 = scmp.ne.s32.totalorder %s471, %s472
      %p483 = scmp.eq.s32.totalorder %s45, 0
      %p484 = por %p482, %p483
      %p485 = scmp.ne.s32.totalorder %s471, %s472
      %p486 = scmp.eq.s32.totalorder %s46, 3
      %p487 = por %p485, %p486
      %p489 = scmp.ne.s32.totalorder %s472, %s488
      %p490 = scmp.eq.s32.totalorder %s46, 0
      %p491 = por %p489, %p490
      %p492 = scmp.le.s32.totalorder 1, %s40
      %p493 = scmp.lt.s32.totalorder %s40, 5
      %p494 = pnand %p492, %p493
      %p495 = pneg %p494
      // Predicated region
      $region9: #{tpu_custom_call.1} parent=5 // pred_check
        _
      $region10: #{tpu_custom_call.1} parent=5 // pred_check_branch
        %497 = sbr.rel (%p494) target = $region12
      $region11: #{tpu_custom_call.1} parent=5 // pred_region
        %s498 = ssub.s32 %s40, 1
        // Predicated region
        $region13: #{tpu_custom_call.1} parent=11 // pred_check
          %p499 = pneg %p437
        $region14: #{tpu_custom_call.1} parent=11 // pred_check_branch
          %501 = sbr.rel (%p499) target = $region16
        $region15: #{tpu_custom_call.1} parent=11 // pred_region
          _
        $region16: #{tpu_custom_call.1} parent=11 // pred_fallthru
          _
        // Predicated region
        $region17: #{tpu_custom_call.1} parent=11 // pred_check
          %p502 = pneg %p458
        $region18: #{tpu_custom_call.1} parent=11 // pred_check_branch
          %504 = sbr.rel (%p502) target = $region20
        $region19: #{tpu_custom_call.1} parent=11 // pred_region
          _
        $region20: #{tpu_custom_call.1} parent=11 // pred_fallthru
          _
      $region12: #{tpu_custom_call.1} parent=5 // pred_fallthru
        _
      %p505 = scmp.lt.s32.totalorder %s40, 4
      // Predicated region
      $region21: #{tpu_custom_call.1} parent=5 // pred_check
        %p506 = pneg %p505
      $region22: #{tpu_custom_call.1} parent=5 // pred_check_branch
        %508 = sbr.rel (%p506) target = $region24
      $region23: #{tpu_custom_call.1} parent=5 // pred_region
        // Predicated region
        $region25: #{tpu_custom_call.1} parent=23 // pred_check
          %p509 = pneg %p72
        $region26: #{tpu_custom_call.1} parent=23 // pred_check_branch
          %511 = sbr.rel (%p509) target = $region28
        $region27: #{tpu_custom_call.1} parent=23 // pred_region
          %s512 = sand.u32 %s62, 1
          %s513 = scalar_lea.sflag [#allocation3], %s512
          %s514 = sand.u32 %s62, 1
          %s515 = smul.addr %s514, 64
          %s516 = scalar_lea.vmem [#allocation2], %s515
          %s518 = ssub.s32 1024, 1024
          %519 = vsyncadd %s513, %s518
          %s520 = smul.addr %s47, 8
          %s521 = smul.addr %s520, 128
          %s522 = scalar_lea.hbm %s0, %s521
          %s523 = sshll.u32 %s516, 4
          %s524 = int_to_ptr.vmem [resolvable:$true] %s523
          %529 = dma.hbm_to_vmem [thread:$0]  %s522, 1024, %s524, %s513, 128, 128, 8
        $region28: #{tpu_custom_call.1} parent=23 // pred_fallthru
          _
        // Predicated region
        $region29: #{tpu_custom_call.1} parent=23 // pred_check
          %p530 = pneg %p98
        $region30: #{tpu_custom_call.1} parent=23 // pred_check_branch
          %532 = sbr.rel (%p530) target = $region32
        $region31: #{tpu_custom_call.1} parent=23 // pred_region
          %s533 = sand.u32 %s40, 1
          %s534 = scalar_lea.sflag [#allocation6], %s533
          %s535 = sand.u32 %s88, 1
          %s536 = scalar_lea.vmem [#allocation5], %s535
          %s538 = ssub.s32 16, 16
          %539 = vsyncadd %s534, %s538
          %s540 = smul.addr %s47, 16
          %s541 = scalar_lea.hbm %s1, %s540
          %s543 = sshll.u32 %s536, 4
          %s544 = int_to_ptr.vmem [resolvable:$true] %s543
          %546 = dma.hbm_to_vmem [thread:$0]  %s541, 16, %s544, %s534
        $region32: #{tpu_custom_call.1} parent=23 // pred_fallthru
          _
        // Predicated region
        $region33: #{tpu_custom_call.1} parent=23 // pred_check
          %p547 = pneg %p124
        $region34: #{tpu_custom_call.1} parent=23 // pred_check_branch
          %549 = sbr.rel (%p547) target = $region36
        $region35: #{tpu_custom_call.1} parent=23 // pred_region
          %s550 = sand.u32 %s40, 1
          %s551 = scalar_lea.sflag [#allocation6], %s550
          %s552 = sand.u32 %s114, 1
          %s553 = scalar_lea.vmem [#allocation7], %s552
          %s555 = ssub.s32 16, 16
          %556 = vsyncadd %s551, %s555
          %s557 = smul.addr %s48, 16
          %s558 = scalar_lea.hbm %s2, %s557
          %s560 = sshll.u32 %s553, 4
          %s561 = int_to_ptr.vmem [resolvable:$true] %s560
          %563 = dma.hbm_to_vmem [thread:$0]  %s558, 16, %s561, %s551
        $region36: #{tpu_custom_call.1} parent=23 // pred_fallthru
          _
        // Predicated region
        $region37: #{tpu_custom_call.1} parent=23 // pred_check
          %p564 = pneg %p150
        $region38: #{tpu_custom_call.1} parent=23 // pred_check_branch
          %566 = sbr.rel (%p564) target = $region40
        $region39: #{tpu_custom_call.1} parent=23 // pred_region
          %s567 = sand.u32 %s40, 1
          %s568 = scalar_lea.sflag [#allocation9], %s567
          %s569 = sand.u32 %s140, 1
          %s570 = scalar_lea.vmem [#allocation8], %s569
          %s572 = ssub.s32 16, 16
          %573 = vsyncadd %s568, %s572
          %s574 = smul.addr %s48, 16
          %s575 = scalar_lea.hbm %s3, %s574
          %s577 = sshll.u32 %s570, 4
          %s578 = int_to_ptr.vmem [resolvable:$true] %s577
          %580 = dma.hbm_to_vmem [thread:$0]  %s575, 16, %s578, %s568
        $region40: #{tpu_custom_call.1} parent=23 // pred_fallthru
          _
        // Predicated region
        $region41: #{tpu_custom_call.1} parent=23 // pred_check
          %p581 = pneg %p176
        $region42: #{tpu_custom_call.1} parent=23 // pred_check_branch
          %583 = sbr.rel (%p581) target = $region44
        $region43: #{tpu_custom_call.1} parent=23 // pred_region
          %s584 = sand.u32 %s40, 1
          %s585 = scalar_lea.sflag [#allocation9], %s584
          %s586 = sand.u32 %s166, 1
          %s587 = smul.addr %s586, 192
          %s588 = scalar_lea.vmem [#allocation10], %s587
          %s590 = ssub.s32 3072, 3072
          %591 = vsyncadd %s585, %s590
          %s592 = smul.addr %s48, 48
          %s593 = smul.addr %s592, 64
          %s594 = scalar_lea.hbm %s4, %s593
          %s595 = sshll.u32 %s588, 4
          %s596 = int_to_ptr.vmem [resolvable:$true] %s595
          %601 = dma.hbm_to_vmem [thread:$0]  %s594, 3072, %s596, %s585, 192, 192, 12
        $region44: #{tpu_custom_call.1} parent=23 // pred_fallthru
          _
        // Predicated region
        $region45: #{tpu_custom_call.1} parent=23 // pred_check
          %p602 = pneg %p202
        $region46: #{tpu_custom_call.1} parent=23 // pred_check_branch
          %604 = sbr.rel (%p602) target = $region48
        $region47: #{tpu_custom_call.1} parent=23 // pred_region
          %p605 = scmp.lt.s32.totalorder %s48, 1
          %s606 = scalar_select %p605, %s48, 1
          %s607 = smul.addr %s606, 3
          %s608 = scalar_lea.vmem %s5, %s607
        $region48: #{tpu_custom_call.1} parent=23 // pred_fallthru
          _
        // Predicated region
        $region49: #{tpu_custom_call.1} parent=23 // pred_check
          %p609 = pneg %p228
        $region50: #{tpu_custom_call.1} parent=23 // pred_check_branch
          %611 = sbr.rel (%p609) target = $region52
        $region51: #{tpu_custom_call.1} parent=23 // pred_region
          %s612 = sand.u32 %s40, 1
          %s613 = scalar_lea.sflag [#allocation12], %s612
          %s614 = sand.u32 %s218, 1
          %s615 = smul.addr %s614, 64
          %s616 = scalar_lea.vmem [#allocation11], %s615
          %s618 = ssub.s32 1024, 1024
          %619 = vsyncadd %s613, %s618
          %s620 = smul.addr %s48, 16
          %s621 = smul.addr %s620, 64
          %s622 = scalar_lea.hbm %s6, %s621
          %s623 = sshll.u32 %s616, 4
          %s624 = int_to_ptr.vmem [resolvable:$true] %s623
          %629 = dma.hbm_to_vmem [thread:$0]  %s622, 1024, %s624, %s613, 64, 64, 4
        $region52: #{tpu_custom_call.1} parent=23 // pred_fallthru
          _
        // Predicated region
        $region53: #{tpu_custom_call.1} parent=23 // pred_check
          %p630 = pneg %p254
        $region54: #{tpu_custom_call.1} parent=23 // pred_check_branch
          %632 = sbr.rel (%p630) target = $region56
        $region55: #{tpu_custom_call.1} parent=23 // pred_region
          %p633 = scmp.lt.s32.totalorder %s48, 1
          %s634 = scalar_select %p633, %s48, 1
          %s635 = scalar_lea.vmem %s7, %s634
        $region56: #{tpu_custom_call.1} parent=23 // pred_fallthru
          _
        // Predicated region
        $region57: #{tpu_custom_call.1} parent=23 // pred_check
          %p636 = pneg %p280
        $region58: #{tpu_custom_call.1} parent=23 // pred_check_branch
          %638 = sbr.rel (%p636) target = $region60
        $region59: #{tpu_custom_call.1} parent=23 // pred_region
          %p639 = scmp.lt.s32.totalorder %s48, 1
          %s640 = scalar_select %p639, %s48, 1
          %s641 = scalar_lea.vmem %s8, %s640
        $region60: #{tpu_custom_call.1} parent=23 // pred_fallthru
          _
        // Predicated region
        $region61: #{tpu_custom_call.1} parent=23 // pred_check
          %p642 = pneg %p306
        $region62: #{tpu_custom_call.1} parent=23 // pred_check_branch
          %644 = sbr.rel (%p642) target = $region64
        $region63: #{tpu_custom_call.1} parent=23 // pred_region
          %p645 = scmp.lt.s32.totalorder %s48, 1
          %s646 = scalar_select %p645, %s48, 1
          %s647 = scalar_lea.vmem %s9, %s646
        $region64: #{tpu_custom_call.1} parent=23 // pred_fallthru
          _
        // Predicated region
        $region65: #{tpu_custom_call.1} parent=23 // pred_check
          %p648 = pneg %p332
        $region66: #{tpu_custom_call.1} parent=23 // pred_check_branch
          %650 = sbr.rel (%p648) target = $region68
        $region67: #{tpu_custom_call.1} parent=23 // pred_region
          %s651 = sand.u32 %s40, 1
          %s652 = scalar_lea.sflag [#allocation12], %s651
          %s653 = sand.u32 %s322, 1
          %s654 = smul.addr %s653, 128
          %s655 = scalar_lea.vmem [#allocation13], %s654
          %s657 = ssub.s32 2048, 2048
          %658 = vsyncadd %s652, %s657
          %s659 = smul.addr %s48, 32
          %s660 = smul.addr %s659, 64
          %s661 = scalar_lea.hbm %s10, %s660
          %s662 = sshll.u32 %s655, 4
          %s663 = int_to_ptr.vmem [resolvable:$true] %s662
          %668 = dma.hbm_to_vmem [thread:$0]  %s661, 2048, %s663, %s652, 128, 128, 8
        $region68: #{tpu_custom_call.1} parent=23 // pred_fallthru
          _
        // Predicated region
        $region69: #{tpu_custom_call.1} parent=23 // pred_check
          %p669 = pneg %p358
        $region70: #{tpu_custom_call.1} parent=23 // pred_check_branch
          %671 = sbr.rel (%p669) target = $region72
        $region71: #{tpu_custom_call.1} parent=23 // pred_region
          %p672 = scmp.lt.s32.totalorder %s48, 1
          %s673 = scalar_select %p672, %s48, 1
          %s674 = smul.addr %s673, 2
          %s675 = scalar_lea.vmem %s11, %s674
        $region72: #{tpu_custom_call.1} parent=23 // pred_fallthru
          _
        // Predicated region
        $region73: #{tpu_custom_call.1} parent=23 // pred_check
          %p676 = pneg %p384
        $region74: #{tpu_custom_call.1} parent=23 // pred_check_branch
          %678 = sbr.rel (%p676) target = $region76
        $region75: #{tpu_custom_call.1} parent=23 // pred_region
          %s679 = sand.u32 %s374, 1
          %s680 = scalar_lea.sflag [#allocation15], %s679
          %s681 = sand.u32 %s374, 1
          %s682 = smul.addr %s681, 128
          %s683 = scalar_lea.vmem [#allocation14], %s682
          %s685 = ssub.s32 2048, 2048
          %686 = vsyncadd %s680, %s685
          %s687 = smul.addr %s48, 32
          %s688 = smul.addr %s687, 64
          %s689 = scalar_lea.hbm %s12, %s688
          %s690 = sshll.u32 %s683, 4
          %s691 = int_to_ptr.vmem [resolvable:$true] %s690
          %696 = dma.hbm_to_vmem [thread:$0]  %s689, 2048, %s691, %s680, 64, 64, 4
        $region76: #{tpu_custom_call.1} parent=23 // pred_fallthru
          _
        // Predicated region
        $region77: #{tpu_custom_call.1} parent=23 // pred_check
          %p697 = pneg %p410
        $region78: #{tpu_custom_call.1} parent=23 // pred_check_branch
          %699 = sbr.rel (%p697) target = $region80
        $region79: #{tpu_custom_call.1} parent=23 // pred_region
          %p700 = scmp.lt.s32.totalorder %s48, 1
          %s701 = scalar_select %p700, %s48, 1
          %s702 = scalar_lea.vmem %s13, %s701
        $region80: #{tpu_custom_call.1} parent=23 // pred_fallthru
          _
      $region24: #{tpu_custom_call.1} parent=5 // pred_fallthru
        _
      %p703 = scmp.le.s32.totalorder 1, %s40
      %p704 = scmp.lt.s32.totalorder %s40, 5
      %p705 = pnand %p703, %p704
      %p706 = pneg %p705
      // Predicated region
      $region81: #{tpu_custom_call.1} parent=5 // pred_check
        _
      $region82: #{tpu_custom_call.1} parent=5 // pred_check_branch
        %708 = sbr.rel (%p705) target = $region84
      $region83: #{tpu_custom_call.1} parent=5 // pred_region
        %s709 = ssub.s32 %s40, 1
        %s710 = sand.u32 %s65, 1
        %s711 = scalar_lea.sflag [#allocation3], %s710
        %s712 = sand.u32 %s65, 1
        %s713 = smul.addr %s712, 64
        %s714 = scalar_lea.vmem [#allocation2], %s713
        // Predicated region
        $region85: #{tpu_custom_call.1} parent=83 // pred_check
          %p715 = pneg %p78
        $region86: #{tpu_custom_call.1} parent=83 // pred_check_branch
          %717 = sbr.rel (%p715) target = $region88
        $region87: #{tpu_custom_call.1} parent=83 // pred_region
          %718 = dma.done %s711, 1024
        $region88: #{tpu_custom_call.1} parent=83 // pred_fallthru
          _
        %s719 = sand.u32 %s45, 1
        %s720 = scalar_lea.sflag [#allocation6], %s719
        %s721 = sand.u32 %s91, 1
        %s722 = scalar_lea.vmem [#allocation5], %s721
        // Predicated region
        $region89: #{tpu_custom_call.1} parent=83 // pred_check
          %p723 = pneg %p104
        $region90: #{tpu_custom_call.1} parent=83 // pred_check_branch
          %725 = sbr.rel (%p723) target = $region92
        $region91: #{tpu_custom_call.1} parent=83 // pred_region
          %726 = dma.done %s720, 16
        $region92: #{tpu_custom_call.1} parent=83 // pred_fallthru
          _
        %s727 = sand.u32 %s45, 1
        %s728 = scalar_lea.sflag [#allocation6], %s727
        %s729 = sand.u32 %s117, 1
        %s730 = scalar_lea.vmem [#allocation7], %s729
        // Predicated region
        $region93: #{tpu_custom_call.1} parent=83 // pred_check
          %p731 = pneg %p130
        $region94: #{tpu_custom_call.1} parent=83 // pred_check_branch
          %733 = sbr.rel (%p731) target = $region96
        $region95: #{tpu_custom_call.1} parent=83 // pred_region
          %734 = dma.done %s728, 16
        $region96: #{tpu_custom_call.1} parent=83 // pred_fallthru
          _
        %s735 = sand.u32 %s45, 1
        %s736 = scalar_lea.sflag [#allocation9], %s735
        %s737 = sand.u32 %s143, 1
        %s738 = scalar_lea.vmem [#allocation8], %s737
        // Predicated region
        $region97: #{tpu_custom_call.1} parent=83 // pred_check
          %p739 = pneg %p156
        $region98: #{tpu_custom_call.1} parent=83 // pred_check_branch
          %741 = sbr.rel (%p739) target = $region100
        $region99: #{tpu_custom_call.1} parent=83 // pred_region
          %742 = dma.done %s736, 16
        $region100: #{tpu_custom_call.1} parent=83 // pred_fallthru
          _
        %s743 = sand.u32 %s45, 1
        %s744 = scalar_lea.sflag [#allocation9], %s743
        %s745 = sand.u32 %s169, 1
        %s746 = smul.addr %s745, 192
        %s747 = scalar_lea.vmem [#allocation10], %s746
        // Predicated region
        $region101: #{tpu_custom_call.1} parent=83 // pred_check
          %p748 = pneg %p182
        $region102: #{tpu_custom_call.1} parent=83 // pred_check_branch
          %750 = sbr.rel (%p748) target = $region104
        $region103: #{tpu_custom_call.1} parent=83 // pred_region
          %751 = dma.done %s744, 3072
        $region104: #{tpu_custom_call.1} parent=83 // pred_fallthru
          _
        %s752 = sand.u32 %s45, 1
        %s753 = scalar_lea.sflag [#allocation12], %s752
        %s754 = sand.u32 %s221, 1
        %s755 = smul.addr %s754, 64
        %s756 = scalar_lea.vmem [#allocation11], %s755
        // Predicated region
        $region105: #{tpu_custom_call.1} parent=83 // pred_check
          %p757 = pneg %p234
        $region106: #{tpu_custom_call.1} parent=83 // pred_check_branch
          %759 = sbr.rel (%p757) target = $region108
        $region107: #{tpu_custom_call.1} parent=83 // pred_region
          %760 = dma.done %s753, 1024
        $region108: #{tpu_custom_call.1} parent=83 // pred_fallthru
          _
        %s761 = sand.u32 %s45, 1
        %s762 = scalar_lea.sflag [#allocation12], %s761
        %s763 = sand.u32 %s325, 1
        %s764 = smul.addr %s763, 128
        %s765 = scalar_lea.vmem [#allocation13], %s764
        // Predicated region
        $region109: #{tpu_custom_call.1} parent=83 // pred_check
          %p766 = pneg %p338
        $region110: #{tpu_custom_call.1} parent=83 // pred_check_branch
          %768 = sbr.rel (%p766) target = $region112
        $region111: #{tpu_custom_call.1} parent=83 // pred_region
          %769 = dma.done %s762, 2048
        $region112: #{tpu_custom_call.1} parent=83 // pred_fallthru
          _
        %s770 = sand.u32 %s377, 1
        %s771 = scalar_lea.sflag [#allocation15], %s770
        %s772 = sand.u32 %s377, 1
        %s773 = smul.addr %s772, 128
        %s774 = scalar_lea.vmem [#allocation14], %s773
        // Predicated region
        $region113: #{tpu_custom_call.1} parent=83 // pred_check
          %p775 = pneg %p390
        $region114: #{tpu_custom_call.1} parent=83 // pred_check_branch
          %777 = sbr.rel (%p775) target = $region116
        $region115: #{tpu_custom_call.1} parent=83 // pred_region
          %778 = dma.done %s771, 2048
        $region116: #{tpu_custom_call.1} parent=83 // pred_fallthru
          _
        %s779 = sand.u32 %s65, 1
        %s780 = scalar_lea.sflag [#allocation3], %s779
        %s781 = sand.u32 %s65, 1
        %s782 = smul.addr %s781, 64
        %s783 = scalar_lea.vmem [#allocation2], %s782
        %p784 = pneg %p78
        %p785 = pneg %p75
        %s786 = sand.u32 %s45, 1
        %s787 = scalar_lea.sflag [#allocation6], %s786
        %s788 = sand.u32 %s91, 1
        %s789 = scalar_lea.vmem [#allocation5], %s788
        %p790 = pneg %p104
        %p791 = pneg %p101
        %s792 = sand.u32 %s45, 1
        %s793 = scalar_lea.sflag [#allocation6], %s792
        %s794 = sand.u32 %s117, 1
        %s795 = scalar_lea.vmem [#allocation7], %s794
        %p796 = pneg %p130
        %p797 = pneg %p127
        %s798 = sand.u32 %s45, 1
        %s799 = scalar_lea.sflag [#allocation9], %s798
        %s800 = sand.u32 %s143, 1
        %s801 = scalar_lea.vmem [#allocation8], %s800
        %p802 = pneg %p156
        %p803 = pneg %p153
        %s804 = sand.u32 %s45, 1
        %s805 = scalar_lea.sflag [#allocation9], %s804
        %s806 = sand.u32 %s169, 1
        %s807 = smul.addr %s806, 192
        %s808 = scalar_lea.vmem [#allocation10], %s807
        %p809 = pneg %p182
        %p810 = pneg %p179
        %p811 = scmp.lt.s32.totalorder %s50, 1
        %s812 = scalar_select %p811, %s50, 1
        %s813 = smul.addr %s812, 3
        %s814 = scalar_lea.vmem %s5, %s813
        %p815 = pneg %p208
        %p816 = pneg %p205
        %s817 = sand.u32 %s45, 1
        %s818 = scalar_lea.sflag [#allocation12], %s817
        %s819 = sand.u32 %s221, 1
        %s820 = smul.addr %s819, 64
        %s821 = scalar_lea.vmem [#allocation11], %s820
        %p822 = pneg %p234
        %p823 = pneg %p231
        %p824 = scmp.lt.s32.totalorder %s50, 1
        %s825 = scalar_select %p824, %s50, 1
        %s826 = scalar_lea.vmem %s7, %s825
        %p827 = pneg %p260
        %p828 = pneg %p257
        %p829 = scmp.lt.s32.totalorder %s50, 1
        %s830 = scalar_select %p829, %s50, 1
        %s831 = scalar_lea.vmem %s8, %s830
        %p832 = pneg %p286
        %p833 = pneg %p283
        %p834 = scmp.lt.s32.totalorder %s50, 1
        %s835 = scalar_select %p834, %s50, 1
        %s836 = scalar_lea.vmem %s9, %s835
        %p837 = pneg %p312
        %p838 = pneg %p309
        %s839 = sand.u32 %s45, 1
        %s840 = scalar_lea.sflag [#allocation12], %s839
        %s841 = sand.u32 %s325, 1
        %s842 = smul.addr %s841, 128
        %s843 = scalar_lea.vmem [#allocation13], %s842
        %p844 = pneg %p338
        %p845 = pneg %p335
        %p846 = scmp.lt.s32.totalorder %s50, 1
        %s847 = scalar_select %p846, %s50, 1
        %s848 = smul.addr %s847, 2
        %s849 = scalar_lea.vmem %s11, %s848
        %p850 = pneg %p364
        %p851 = pneg %p361
        %s852 = sand.u32 %s377, 1
        %s853 = scalar_lea.sflag [#allocation15], %s852
        %s854 = sand.u32 %s377, 1
        %s855 = smul.addr %s854, 128
        %s856 = scalar_lea.vmem [#allocation14], %s855
        %p857 = pneg %p390
        %p858 = pneg %p387
        %p859 = scmp.lt.s32.totalorder %s50, 1
        %s860 = scalar_select %p859, %s50, 1
        %s861 = scalar_lea.vmem %s13, %s860
        %p862 = pneg %p416
        %p863 = pneg %p413
        %p864 = pneg %p437
        %p865 = pneg %p434
        %p866 = pneg %p458
        %p867 = pneg %p455
        %p868 = pneg %p484
        %p869 = pneg %p481
        %s870 = sand.u32 %s471, 1
        %s871 = scalar_lea.sflag [#allocation4], %s870
        %s872 = sand.u32 %s471, 1
        %s873 = smul.addr %s872, 64
        %s874 = scalar_lea.vmem [#allocation16], %s873
        %p875 = scmp.lt.s32.totalorder %s50, 1
        %s876 = scalar_select %p875, %s50, 1
        %s877 = smul.addr %s876, 3
        %s878 = scalar_lea.vmem %s5, %s877
        %p879 = scmp.lt.s32.totalorder %s50, 1
        %s880 = scalar_select %p879, %s50, 1
        %s881 = scalar_lea.vmem %s7, %s880
        %p882 = scmp.lt.s32.totalorder %s50, 1
        %s883 = scalar_select %p882, %s50, 1
        %s884 = scalar_lea.vmem %s8, %s883
        %p885 = scmp.lt.s32.totalorder %s50, 1
        %s886 = scalar_select %p885, %s50, 1
        %s887 = scalar_lea.vmem %s9, %s886
        %p888 = scmp.lt.s32.totalorder %s50, 1
        %s889 = scalar_select %p888, %s50, 1
        %s890 = smul.addr %s889, 2
        %s891 = scalar_lea.vmem %s11, %s890
        %p892 = scmp.lt.s32.totalorder %s50, 1
        %s893 = scalar_select %p892, %s50, 1
        %s894 = scalar_lea.vmem %s13, %s893
        %p896 = scmp.eq.s32.totalorder %s50, 0
        // Predicated region
        $region117: #{tpu_custom_call.1} parent=83 // pred_check
          %p897 = pneg %p896
        $region118: #{tpu_custom_call.1} parent=83 // pred_check_branch
          %899 = sbr.rel (%p897) target = $region120
        $region119: #{tpu_custom_call.1} parent=83 // pred_region
          %v900 = vld [vmem:[%s714] sm:$0xff]
          %v901 = vld [vmem:[%s714 + $0x8] sm:$0xff]
          %v902 = vld [vmem:[%s714 + $0x10] sm:$0xff]
          %v903 = vld [vmem:[%s714 + $0x18] sm:$0xff]
          %v904 = vld [vmem:[%s714 + $0x20] sm:$0xff]
          %v905 = vld [vmem:[%s714 + $0x28] sm:$0xff]
          %v906 = vld [vmem:[%s714 + $0x30] sm:$0xff]
          %v907 = vld [vmem:[%s714 + $0x38] sm:$0xff]
          %908 = vst [vmem:[%s874] sm:$0xff] %v900
          %909 = vst [vmem:[%s874 + $0x8] sm:$0xff] %v901
          %910 = vst [vmem:[%s874 + $0x10] sm:$0xff] %v902
          %911 = vst [vmem:[%s874 + $0x18] sm:$0xff] %v903
          %912 = vst [vmem:[%s874 + $0x20] sm:$0xff] %v904
          %913 = vst [vmem:[%s874 + $0x28] sm:$0xff] %v905
          %914 = vst [vmem:[%s874 + $0x30] sm:$0xff] %v906
          %915 = vst [vmem:[%s874 + $0x38] sm:$0xff] %v907
        $region120: #{tpu_custom_call.1} parent=83 // pred_fallthru
          _
        %v916 = vld [vmem:[%s874] sm:$0xff]
        %v917 = vld [vmem:[%s874 + $0x8] sm:$0xff]
        %v918 = vld [vmem:[%s874 + $0x10] sm:$0xff]
        %v919 = vld [vmem:[%s874 + $0x18] sm:$0xff]
        %v920 = vld [vmem:[%s874 + $0x20] sm:$0xff]
        %v921 = vld [vmem:[%s874 + $0x28] sm:$0xff]
        %v922 = vld [vmem:[%s874 + $0x30] sm:$0xff]
        %v923 = vld [vmem:[%s874 + $0x38] sm:$0xff]
        %v924 = vld [vmem:[%s722] sm:$0x1]
        %vm925 = vcmp.eq.f32.partialorder %v924, 0.0
        %v926 = vsel %vm925, -1e+09, 0.0
        %v927 = vld [vmem:[%s730] sm:$0x1]
        %v928 = vld [vmem:[%s738] sm:$0x1]
        %929 = vadd.xlane.f32.xlu0 %v916
        %v930 = vpop.xlane.xlu0 %929
        %931 = vadd.xlane.f32.xlu0 %v917
        %v932 = vpop.xlane.xlu0 %931
        %933 = vadd.xlane.f32.xlu0 %v918
        %v934 = vpop.xlane.xlu0 %933
        %935 = vadd.xlane.f32.xlu0 %v919
        %v936 = vpop.xlane.xlu0 %935
        %937 = vadd.xlane.f32.xlu0 %v920
        %v938 = vpop.xlane.xlu0 %937
        %939 = vadd.xlane.f32.xlu0 %v921
        %v940 = vpop.xlane.xlu0 %939
        %941 = vadd.xlane.f32.xlu0 %v922
        %v942 = vpop.xlane.xlu0 %941
        %943 = vadd.xlane.f32.xlu0 %v923
        %v944 = vpop.xlane.xlu0 %943
        %v945 = vrcp.pop 128.0
        %v946 = vmul.f32 %v930, %v945
        %v947 = vmul.f32 %v932, %v945
        %v948 = vmul.f32 %v934, %v945
        %v949 = vmul.f32 %v936, %v945
        %v950 = vmul.f32 %v938, %v945
        %v951 = vmul.f32 %v940, %v945
        %v952 = vmul.f32 %v942, %v945
        %v953 = vmul.f32 %v944, %v945
        %v954 = vsub.f32 %v916, %v946
        %v955 = vsub.f32 %v917, %v947
        %v956 = vsub.f32 %v918, %v948
        %v957 = vsub.f32 %v919, %v949
        %v958 = vsub.f32 %v920, %v950
        %v959 = vsub.f32 %v921, %v951
        %v960 = vsub.f32 %v922, %v952
        %v961 = vsub.f32 %v923, %v953
        %v962 = vmul.f32 %v954, %v954
        %v963 = vmul.f32 %v955, %v955
        %v964 = vmul.f32 %v956, %v956
        %v965 = vmul.f32 %v957, %v957
        %v966 = vmul.f32 %v958, %v958
        %v967 = vmul.f32 %v959, %v959
        %v968 = vmul.f32 %v960, %v960
        %v969 = vmul.f32 %v961, %v961
        %970 = vadd.xlane.f32.xlu0 %v962
        %v971 = vpop.xlane.xlu0 %970
        %972 = vadd.xlane.f32.xlu0 %v963
        %v973 = vpop.xlane.xlu0 %972
        %974 = vadd.xlane.f32.xlu0 %v964
        %v975 = vpop.xlane.xlu0 %974
        %976 = vadd.xlane.f32.xlu0 %v965
        %v977 = vpop.xlane.xlu0 %976
        %978 = vadd.xlane.f32.xlu0 %v966
        %v979 = vpop.xlane.xlu0 %978
        %980 = vadd.xlane.f32.xlu0 %v967
        %v981 = vpop.xlane.xlu0 %980
        %982 = vadd.xlane.f32.xlu0 %v968
        %v983 = vpop.xlane.xlu0 %982
        %984 = vadd.xlane.f32.xlu0 %v969
        %v985 = vpop.xlane.xlu0 %984
        %v986 = vmul.f32 %v971, %v945
        %v987 = vmul.f32 %v973, %v945
        %v988 = vmul.f32 %v975, %v945
        %v989 = vmul.f32 %v977, %v945
        %v990 = vmul.f32 %v979, %v945
        %v991 = vmul.f32 %v981, %v945
        %v992 = vmul.f32 %v983, %v945
        %v993 = vmul.f32 %v985, %v945
        %v994 = vadd.f32 %v986, 1e-05
        %v995 = vadd.f32 %v987, 1e-05
        %v996 = vadd.f32 %v988, 1e-05
        %v997 = vadd.f32 %v989, 1e-05
        %v998 = vadd.f32 %v990, 1e-05
        %v999 = vadd.f32 %v991, 1e-05
        %v1000 = vadd.f32 %v992, 1e-05
        %v1001 = vadd.f32 %v993, 1e-05
        %v1002 = vrsqrt.pop %v994
        %v1003 = vrsqrt.pop %v995
        %v1004 = vrsqrt.pop %v996
        %v1005 = vrsqrt.pop %v997
        %v1006 = vrsqrt.pop %v998
        %v1007 = vrsqrt.pop %v999
        %v1008 = vrsqrt.pop %v1000
        %v1009 = vrsqrt.pop %v1001
        %v1010 = vmul.f32 %v954, %v1002
        %v1011 = vmul.f32 %v955, %v1003
        %v1012 = vmul.f32 %v956, %v1004
        %v1013 = vmul.f32 %v957, %v1005
        %v1014 = vmul.f32 %v958, %v1006
        %v1015 = vmul.f32 %v959, %v1007
        %v1016 = vmul.f32 %v960, %v1008
        %v1017 = vmul.f32 %v961, %v1009
        %v1019 = vlaneseq
        %v1020 = vshrl.u32 %v1019, 7
        %v1021 = vsub.s32 0, %v1020
        %v1022 = vrot.slane %v927, %v1021
        %v1024 = vmul.f32 %v1010, %v1022
        %v1025 = vmul.f32 %v1011, %v1022
        %v1026 = vmul.f32 %v1012, %v1022
        %v1027 = vmul.f32 %v1013, %v1022
        %v1028 = vmul.f32 %v1014, %v1022
        %v1029 = vmul.f32 %v1015, %v1022
        %v1030 = vmul.f32 %v1016, %v1022
        %v1031 = vmul.f32 %v1017, %v1022
        %v1033 = vlaneseq
        %v1034 = vshrl.u32 %v1033, 7
        %v1035 = vsub.s32 0, %v1034
        %v1036 = vrot.slane %v928, %v1035
        %v1038 = vadd.f32 %v1024, %v1036
        %v1039 = vadd.f32 %v1025, %v1036
        %v1040 = vadd.f32 %v1026, %v1036
        %v1041 = vadd.f32 %v1027, %v1036
        %v1042 = vadd.f32 %v1028, %v1036
        %v1043 = vadd.f32 %v1029, %v1036
        %v1044 = vadd.f32 %v1030, %v1036
        %v1045 = vadd.f32 %v1031, %v1036
        %v1046 = vpack.c.bf16 %v1039, %v1038
        %v1047 = vpack.c.bf16 %v1041, %v1040
        %v1048 = vpack.c.bf16 %v1043, %v1042
        %v1049 = vpack.c.bf16 %v1045, %v1044
        %v1050 = vld [vmem:[%s747] sm:$0xff]
        %v1051 = vld [vmem:[%s747 + $0x8] sm:$0xf]
        %v1052 = vld [vmem:[%s747 + $0xc] sm:$0xff]
        %v1053 = vld [vmem:[%s747 + $0x14] sm:$0xf]
        %v1054 = vld [vmem:[%s747 + $0x18] sm:$0xff]
        %v1055 = vld [vmem:[%s747 + $0x20] sm:$0xf]
        %v1056 = vld [vmem:[%s747 + $0x24] sm:$0xff]
        %v1057 = vld [vmem:[%s747 + $0x2c] sm:$0xf]
        %v1058 = vld [vmem:[%s747 + $0x30] sm:$0xff]
        %v1059 = vld [vmem:[%s747 + $0x38] sm:$0xf]
        %v1060 = vld [vmem:[%s747 + $0x3c] sm:$0xff]
        %v1061 = vld [vmem:[%s747 + $0x44] sm:$0xf]
        %v1062 = vld [vmem:[%s747 + $0x48] sm:$0xff]
        %v1063 = vld [vmem:[%s747 + $0x50] sm:$0xf]
        %v1064 = vld [vmem:[%s747 + $0x54] sm:$0xff]
        %v1065 = vld [vmem:[%s747 + $0x5c] sm:$0xf]
        %v1066 = vld [vmem:[%s747 + $0x60] sm:$0xff]
        %v1067 = vld [vmem:[%s747 + $0x68] sm:$0xf]
        %v1068 = vld [vmem:[%s747 + $0x6c] sm:$0xff]
        %v1069 = vld [vmem:[%s747 + $0x74] sm:$0xf]
        %v1070 = vld [vmem:[%s747 + $0x78] sm:$0xff]
        %v1071 = vld [vmem:[%s747 + $0x80] sm:$0xf]
        %v1072 = vld [vmem:[%s747 + $0x84] sm:$0xff]
        %v1073 = vld [vmem:[%s747 + $0x8c] sm:$0xf]
        %v1074 = vld [vmem:[%s747 + $0x90] sm:$0xff]
        %v1075 = vld [vmem:[%s747 + $0x98] sm:$0xf]
        %v1076 = vld [vmem:[%s747 + $0x9c] sm:$0xff]
        %v1077 = vld [vmem:[%s747 + $0xa4] sm:$0xf]
        %v1078 = vld [vmem:[%s747 + $0xa8] sm:$0xff]
        %v1079 = vld [vmem:[%s747 + $0xb0] sm:$0xf]
        %v1080 = vld [vmem:[%s747 + $0xb4] sm:$0xff]
        %v1081 = vld [vmem:[%s747 + $0xbc] sm:$0xf]
        %v1082 = vld [vmem:[%s878] sm:$0x7]
        %v1084 = vlaneseq
        %v1085 = vshrl.u32 %v1084, 7
        %v1086 = vsub.s32 0, %v1085
        %v1087 = vrot.slane %v1082, %v1086
        %v1088 = vlaneseq
        %v1089 = vshrl.u32 %v1088, 7
        %v1090 = vsub.s32 1, %v1089
        %v1091 = vrot.slane %v1082, %v1090
        %v1092 = vlaneseq
        %v1093 = vshrl.u32 %v1092, 7
        %v1094 = vsub.s32 2, %v1093
        %v1095 = vrot.slane %v1082, %v1094
        %v1131 = vunpack.c.l.b16 %v1050
        %v1132 = vunpack.c.h.b16 %v1050
        %v1133 = vunpack.c.l.b16 %v1051
        %v1134 = vunpack.c.l.b16 %v1052
        %v1135 = vunpack.c.h.b16 %v1052
        %v1136 = vunpack.c.l.b16 %v1053
        %v1137 = vunpack.c.l.b16 %v1054
        %v1138 = vunpack.c.h.b16 %v1054
        %v1139 = vunpack.c.l.b16 %v1055
        %v1140 = vunpack.c.l.b16 %v1056
        %v1141 = vunpack.c.h.b16 %v1056
        %v1142 = vunpack.c.l.b16 %v1057
        %v1143 = vunpack.c.l.b16 %v1058
        %v1144 = vunpack.c.h.b16 %v1058
        %v1145 = vunpack.c.l.b16 %v1059
        %v1146 = vunpack.c.l.b16 %v1060
        %v1147 = vunpack.c.h.b16 %v1060
        %v1148 = vunpack.c.l.b16 %v1061
        %v1149 = vunpack.c.l.b16 %v1062
        %v1150 = vunpack.c.h.b16 %v1062
        %v1151 = vunpack.c.l.b16 %v1063
        %v1152 = vunpack.c.l.b16 %v1064
        %v1153 = vunpack.c.h.b16 %v1064
        %v1154 = vunpack.c.l.b16 %v1065
        %v1155 = vunpack.c.l.b16 %v1066
        %v1156 = vunpack.c.h.b16 %v1066
        %v1157 = vunpack.c.l.b16 %v1067
        %v1158 = vunpack.c.l.b16 %v1068
        %v1159 = vunpack.c.h.b16 %v1068
        %v1160 = vunpack.c.l.b16 %v1069
        %v1161 = vunpack.c.l.b16 %v1070
        %v1162 = vunpack.c.h.b16 %v1070
        %v1163 = vunpack.c.l.b16 %v1071
        %v1164 = vunpack.c.l.b16 %v1072
        %v1165 = vunpack.c.h.b16 %v1072
        %v1166 = vunpack.c.l.b16 %v1073
        %v1167 = vunpack.c.l.b16 %v1074
        %v1168 = vunpack.c.h.b16 %v1074
        %v1169 = vunpack.c.l.b16 %v1075
        %v1170 = vunpack.c.l.b16 %v1076
        %v1171 = vunpack.c.h.b16 %v1076
        %v1172 = vunpack.c.l.b16 %v1077
        %v1173 = vunpack.c.l.b16 %v1078
        %v1174 = vunpack.c.h.b16 %v1078
        %v1175 = vunpack.c.l.b16 %v1079
        %v1176 = vunpack.c.l.b16 %v1080
        %v1177 = vunpack.c.h.b16 %v1080
        %v1178 = vunpack.c.l.b16 %v1081
        %v1179 = vpack.c.b16 %v1134, %v1131
        %v1180 = vpack.c.b16 %v1135, %v1132
        %v1181 = vpack.c.b16 %v1136, %v1133
        %v1182 = vpack.c.b16 %v1140, %v1137
        %v1183 = vpack.c.b16 %v1141, %v1138
        %v1184 = vpack.c.b16 %v1142, %v1139
        %v1185 = vpack.c.b16 %v1146, %v1143
        %v1186 = vpack.c.b16 %v1147, %v1144
        %v1187 = vpack.c.b16 %v1148, %v1145
        %v1188 = vpack.c.b16 %v1152, %v1149
        %v1189 = vpack.c.b16 %v1153, %v1150
        %v1190 = vpack.c.b16 %v1154, %v1151
        %v1191 = vpack.c.b16 %v1158, %v1155
        %v1192 = vpack.c.b16 %v1159, %v1156
        %v1193 = vpack.c.b16 %v1160, %v1157
        %v1194 = vpack.c.b16 %v1164, %v1161
        %v1195 = vpack.c.b16 %v1165, %v1162
        %v1196 = vpack.c.b16 %v1166, %v1163
        %v1197 = vpack.c.b16 %v1170, %v1167
        %v1198 = vpack.c.b16 %v1171, %v1168
        %v1199 = vpack.c.b16 %v1172, %v1169
        %v1200 = vpack.c.b16 %v1176, %v1173
        %v1201 = vpack.c.b16 %v1177, %v1174
        %v1202 = vpack.c.b16 %v1178, %v1175
        %1227 = vmatprep.subr.bf16.mxu0 %v1201
        %1228 = vmatpush1.bf16.msra.mxu0 %v1200
        %1229 = vmatprep.subr.bf16.mxu0 %v1198
        %1230 = vmatpush1.bf16.msra.mxu0 %v1197
        %1231 = vmatprep.subr.bf16.mxu0 %v1195
        %1232 = vmatpush1.bf16.msra.mxu0 %v1194
        %1233 = vmatprep.subr.bf16.mxu0 %v1192
        %1234 = vmatpush1.bf16.msra.mxu0 %v1191
        %1235 = vmatprep.subr.bf16.mxu0 %v1189
        %1236 = vmatpush1.bf16.msra.mxu0 %v1188
        %1237 = vmatprep.subr.bf16.mxu0 %v1186
        %1238 = vmatpush1.bf16.msra.mxu0 %v1185
        %1239 = vmatprep.subr.bf16.mxu0 %v1183
        %1240 = vmatpush1.bf16.msra.mxu0 %v1182
        %1241 = vmatprep.subr.bf16.mxu0 %v1180
        %1242 = vmatpush1.bf16.msra.mxu0 %v1179
        %1243 = vmatprep.subr.bf16.mxu0 0
        %1244 = vmatpush2.bf16.msra.mxu0 0
        %1245 = vmatprep.subr.bf16.mxu0 0
        %1246 = vmatpush2.bf16.msra.mxu0 0
        %1247 = vmatprep.subr.bf16.mxu0 0
        %1248 = vmatpush2.bf16.msra.mxu0 0
        %1249 = vmatprep.subr.bf16.mxu0 0
        %1250 = vmatpush2.bf16.msra.mxu0 0
        %1251 = vmatprep.subr.bf16.mxu0 0
        %1252 = vmatpush2.bf16.msra.mxu0 0
        %1253 = vmatprep.subr.bf16.mxu0 0
        %1254 = vmatpush2.bf16.msra.mxu0 0
        %1255 = vmatprep.subr.bf16.mxu0 0
        %1256 = vmatpush2.bf16.msra.mxu0 0
        %1257 = vmatprep.subr.bf16.mxu0 0
        %1258 = vmatpush2.bf16.msra.mxu0 0
        %1259 = vmatprep.mubr.bf16.mxu0 0
        %1260 = vmatmul.mubr.bf16.gmra.mxu0 %v1046
        %v1261 = vpop.f32.mrf.mxu0
        %v1262 = vadd.f32 %v1087, %v1261
        %v1263 = vpop.f32.mrf.mxu0
        %v1264 = vadd.f32 %v1091, %v1263
        %v1265 = vpop.f32.mrf.mxu0
        %v1266 = vadd.f32 %v1087, %v1265
        %v1267 = vpop.f32.mrf.mxu0
        %v1268 = vadd.f32 %v1091, %v1267
        %1269 = vmatprep.mubr.bf16.mxu0 0
        %1270 = vmatmul.mubr.bf16.gmra.mxu0 %v1047
        %v1271 = vpop.f32.mrf.mxu0
        %v1272 = vadd.f32 %v1087, %v1271
        %v1273 = vpop.f32.mrf.mxu0
        %v1274 = vadd.f32 %v1091, %v1273
        %v1275 = vpop.f32.mrf.mxu0
        %v1276 = vadd.f32 %v1087, %v1275
        %v1277 = vpop.f32.mrf.mxu0
        %v1278 = vadd.f32 %v1091, %v1277
        %1279 = vmatprep.mubr.bf16.mxu0 0
        %1280 = vmatmul.mubr.bf16.gmra.mxu0 %v1048
        %v1281 = vpop.f32.mrf.mxu0
        %v1282 = vadd.f32 %v1087, %v1281
        %v1283 = vpop.f32.mrf.mxu0
        %v1284 = vadd.f32 %v1091, %v1283
        %v1285 = vpop.f32.mrf.mxu0
        %v1286 = vadd.f32 %v1087, %v1285
        %v1287 = vpop.f32.mrf.mxu0
        %v1288 = vadd.f32 %v1091, %v1287
        %1289 = vmatprep.mubr.bf16.mxu0 0
        %1290 = vmatmul.mubr.bf16.gmra.mxu0 %v1049
        %v1291 = vpop.f32.mrf.mxu0
        %v1292 = vadd.f32 %v1087, %v1291
        %v1293 = vpop.f32.mrf.mxu0
        %v1294 = vadd.f32 %v1091, %v1293
        %v1295 = vpop.f32.mrf.mxu0
        %v1296 = vadd.f32 %v1087, %v1295
        %v1297 = vpop.f32.mrf.mxu0
        %v1298 = vadd.f32 %v1091, %v1297
        %1299 = vdwg.mxu0
        %1300 = vmatprep.subr.bf16.mxu0 0
        %1301 = vmatpush1.bf16.msra.mxu0 %v1202
        %1302 = vmatprep.subr.bf16.mxu0 0
        %1303 = vmatpush1.bf16.msra.mxu0 %v1199
        %1304 = vmatprep.subr.bf16.mxu0 0
        %1305 = vmatpush1.bf16.msra.mxu0 %v1196
        %1306 = vmatprep.subr.bf16.mxu0 0
        %1307 = vmatpush1.bf16.msra.mxu0 %v1193
        %1308 = vmatprep.subr.bf16.mxu0 0
        %1309 = vmatpush1.bf16.msra.mxu0 %v1190
        %1310 = vmatprep.subr.bf16.mxu0 0
        %1311 = vmatpush1.bf16.msra.mxu0 %v1187
        %1312 = vmatprep.subr.bf16.mxu0 0
        %1313 = vmatpush1.bf16.msra.mxu0 %v1184
        %1314 = vmatprep.subr.bf16.mxu0 0
        %1315 = vmatpush1.bf16.msra.mxu0 %v1181
        %1316 = vmatprep.subr.bf16.mxu0 0
        %1317 = vmatpush2.bf16.msra.mxu0 0
        %1318 = vmatprep.subr.bf16.mxu0 0
        %1319 = vmatpush2.bf16.msra.mxu0 0
        %1320 = vmatprep.subr.bf16.mxu0 0
        %1321 = vmatpush2.bf16.msra.mxu0 0
        %1322 = vmatprep.subr.bf16.mxu0 0
        %1323 = vmatpush2.bf16.msra.mxu0 0
        %1324 = vmatprep.subr.bf16.mxu0 0
        %1325 = vmatpush2.bf16.msra.mxu0 0
        %1326 = vmatprep.subr.bf16.mxu0 0
        %1327 = vmatpush2.bf16.msra.mxu0 0
        %1328 = vmatprep.subr.bf16.mxu0 0
        %1329 = vmatpush2.bf16.msra.mxu0 0
        %1330 = vmatprep.subr.bf16.mxu0 0
        %1331 = vmatpush2.bf16.msra.mxu0 0
        %1332 = vmatprep.mubr.bf16.mxu0 0
        %1333 = vmatmul.mubr.bf16.gmra.mxu0 %v1046
        %v1334 = vpop.f32.mrf.mxu0
        %v1335 = vadd.f32 %v1095, %v1334
        %v1336 = vpop.f32.mrf.mxu0
        %v1337 = vpop.f32.mrf.mxu0
        %v1338 = vadd.f32 %v1095, %v1337
        %v1339 = vpop.f32.mrf.mxu0
        %1340 = vmatprep.mubr.bf16.mxu0 0
        %1341 = vmatmul.mubr.bf16.gmra.mxu0 %v1047
        %v1342 = vpop.f32.mrf.mxu0
        %v1343 = vadd.f32 %v1095, %v1342
        %v1344 = vpop.f32.mrf.mxu0
        %v1345 = vpop.f32.mrf.mxu0
        %v1346 = vadd.f32 %v1095, %v1345
        %v1347 = vpop.f32.mrf.mxu0
        %1348 = vmatprep.mubr.bf16.mxu0 0
        %1349 = vmatmul.mubr.bf16.gmra.mxu0 %v1048
        %v1350 = vpop.f32.mrf.mxu0
        %v1351 = vadd.f32 %v1095, %v1350
        %v1352 = vpop.f32.mrf.mxu0
        %v1353 = vpop.f32.mrf.mxu0
        %v1354 = vadd.f32 %v1095, %v1353
        %v1355 = vpop.f32.mrf.mxu0
        %1356 = vmatprep.mubr.bf16.mxu0 0
        %1357 = vmatmul.mubr.bf16.gmra.mxu0 %v1049
        %v1358 = vpop.f32.mrf.mxu0
        %v1359 = vadd.f32 %v1095, %v1358
        %v1360 = vpop.f32.mrf.mxu0
        %v1361 = vpop.f32.mrf.mxu0
        %v1362 = vadd.f32 %v1095, %v1361
        %v1363 = vpop.f32.mrf.mxu0
        %1364 = vdwg.mxu0
        %v1365 = vpack.c.bf16 %v1266, %v1262
        %v1366 = vpack.c.bf16 %v1268, %v1264
        %v1367 = vpack.c.bf16 %v1338, %v1335
        %v1368 = vpack.c.bf16 %v1276, %v1272
        %v1369 = vpack.c.bf16 %v1278, %v1274
        %v1370 = vpack.c.bf16 %v1346, %v1343
        %v1371 = vpack.c.bf16 %v1286, %v1282
        %v1372 = vpack.c.bf16 %v1288, %v1284
        %v1373 = vpack.c.bf16 %v1354, %v1351
        %v1374 = vpack.c.bf16 %v1296, %v1292
        %v1375 = vpack.c.bf16 %v1298, %v1294
        %v1376 = vpack.c.bf16 %v1362, %v1359
        %1381 = vrot.lane.b32.xlu0 %v1365, 96
        %v1382 = vpop.permute.xlu0 %1381
        %1383 = vrot.lane.b32.xlu0 %v1368, 96
        %v1384 = vpop.permute.xlu0 %1383
        %1385 = vrot.lane.b32.xlu0 %v1371, 96
        %v1386 = vpop.permute.xlu0 %1385
        %1387 = vrot.lane.b32.xlu0 %v1374, 96
        %v1388 = vpop.permute.xlu0 %1387
        %1389 = vrot.lane.b32.xlu0 %v1365, 64
        %v1390 = vpop.permute.xlu0 %1389
        %1391 = vrot.lane.b32.xlu0 %v1368, 64
        %v1392 = vpop.permute.xlu0 %1391
        %1393 = vrot.lane.b32.xlu0 %v1371, 64
        %v1394 = vpop.permute.xlu0 %1393
        %1395 = vrot.lane.b32.xlu0 %v1374, 64
        %v1396 = vpop.permute.xlu0 %1395
        %1397 = vrot.lane.b32.xlu0 %v1365, 32
        %v1398 = vpop.permute.xlu0 %1397
        %1399 = vrot.lane.b32.xlu0 %v1368, 32
        %v1400 = vpop.permute.xlu0 %1399
        %1401 = vrot.lane.b32.xlu0 %v1371, 32
        %v1402 = vpop.permute.xlu0 %1401
        %1403 = vrot.lane.b32.xlu0 %v1374, 32
        %v1404 = vpop.permute.xlu0 %1403
        %1409 = vrot.lane.b32.xlu0 %v1366, 96
        %v1410 = vpop.permute.xlu0 %1409
        %1411 = vrot.lane.b32.xlu0 %v1369, 96
        %v1412 = vpop.permute.xlu0 %1411
        %1413 = vrot.lane.b32.xlu0 %v1372, 96
        %v1414 = vpop.permute.xlu0 %1413
        %1415 = vrot.lane.b32.xlu0 %v1375, 96
        %v1416 = vpop.permute.xlu0 %1415
        %1417 = vrot.lane.b32.xlu0 %v1366, 64
        %v1418 = vpop.permute.xlu0 %1417
        %1419 = vrot.lane.b32.xlu0 %v1369, 64
        %v1420 = vpop.permute.xlu0 %1419
        %1421 = vrot.lane.b32.xlu0 %v1372, 64
        %v1422 = vpop.permute.xlu0 %1421
        %1423 = vrot.lane.b32.xlu0 %v1375, 64
        %v1424 = vpop.permute.xlu0 %1423
        %1425 = vrot.lane.b32.xlu0 %v1366, 32
        %v1426 = vpop.permute.xlu0 %1425
        %1427 = vrot.lane.b32.xlu0 %v1369, 32
        %v1428 = vpop.permute.xlu0 %1427
        %1429 = vrot.lane.b32.xlu0 %v1372, 32
        %v1430 = vpop.permute.xlu0 %1429
        %1431 = vrot.lane.b32.xlu0 %v1375, 32
        %v1432 = vpop.permute.xlu0 %1431
        %1437 = vrot.lane.b32.xlu0 %v1367, 96
        %v1438 = vpop.permute.xlu0 %1437
        %1439 = vrot.lane.b32.xlu0 %v1370, 96
        %v1440 = vpop.permute.xlu0 %1439
        %1441 = vrot.lane.b32.xlu0 %v1373, 96
        %v1442 = vpop.permute.xlu0 %1441
        %1443 = vrot.lane.b32.xlu0 %v1376, 96
        %v1444 = vpop.permute.xlu0 %1443
        %1445 = vrot.lane.b32.xlu0 %v1367, 64
        %v1446 = vpop.permute.xlu0 %1445
        %1447 = vrot.lane.b32.xlu0 %v1370, 64
        %v1448 = vpop.permute.xlu0 %1447
        %1449 = vrot.lane.b32.xlu0 %v1373, 64
        %v1450 = vpop.permute.xlu0 %1449
        %1451 = vrot.lane.b32.xlu0 %v1376, 64
        %v1452 = vpop.permute.xlu0 %1451
        %1453 = vrot.lane.b32.xlu0 %v1367, 32
        %v1454 = vpop.permute.xlu0 %1453
        %1455 = vrot.lane.b32.xlu0 %v1370, 32
        %v1456 = vpop.permute.xlu0 %1455
        %1457 = vrot.lane.b32.xlu0 %v1373, 32
        %v1458 = vpop.permute.xlu0 %1457
        %1459 = vrot.lane.b32.xlu0 %v1376, 32
        %v1460 = vpop.permute.xlu0 %1459
        %v1463 = vpack.i.b16 %v1382, %v1365
        %v1465 = vshrl.u32 %v1365, 16
        %v1466 = vshrl.u32 %v1382, 16
        %v1467 = vpack.i.b16 %v1466, %v1465
        %v1471 = vpack.i.b16 %v1398, %v1390
        %v1473 = vshrl.u32 %v1390, 16
        %v1474 = vshrl.u32 %v1398, 16
        %v1475 = vpack.i.b16 %v1474, %v1473
        %v1479 = vpack.i.b16 %v1410, %v1366
        %v1481 = vshrl.u32 %v1366, 16
        %v1482 = vshrl.u32 %v1410, 16
        %v1483 = vpack.i.b16 %v1482, %v1481
        %v1487 = vpack.i.b16 %v1426, %v1418
        %v1489 = vshrl.u32 %v1418, 16
        %v1490 = vshrl.u32 %v1426, 16
        %v1491 = vpack.i.b16 %v1490, %v1489
        %v1495 = vpack.i.b16 %v1438, %v1367
        %v1497 = vshrl.u32 %v1367, 16
        %v1498 = vshrl.u32 %v1438, 16
        %v1499 = vpack.i.b16 %v1498, %v1497
        %v1503 = vpack.i.b16 %v1454, %v1446
        %v1505 = vshrl.u32 %v1446, 16
        %v1506 = vshrl.u32 %v1454, 16
        %v1507 = vpack.i.b16 %v1506, %v1505
        %v1510 = vpack.i.b16 0, 0
        %v1512 = vshrl.u32 0, 16
        %v1513 = vpack.i.b16 %v1512, %v1512
        %v1517 = vpack.i.b16 %v1384, %v1368
        %v1519 = vshrl.u32 %v1368, 16
        %v1520 = vshrl.u32 %v1384, 16
        %v1521 = vpack.i.b16 %v1520, %v1519
        %v1525 = vpack.i.b16 %v1400, %v1392
        %v1527 = vshrl.u32 %v1392, 16
        %v1528 = vshrl.u32 %v1400, 16
        %v1529 = vpack.i.b16 %v1528, %v1527
        %v1533 = vpack.i.b16 %v1412, %v1369
        %v1535 = vshrl.u32 %v1369, 16
        %v1536 = vshrl.u32 %v1412, 16
        %v1537 = vpack.i.b16 %v1536, %v1535
        %v1541 = vpack.i.b16 %v1428, %v1420
        %v1543 = vshrl.u32 %v1420, 16
        %v1544 = vshrl.u32 %v1428, 16
        %v1545 = vpack.i.b16 %v1544, %v1543
        %v1549 = vpack.i.b16 %v1440, %v1370
        %v1551 = vshrl.u32 %v1370, 16
        %v1552 = vshrl.u32 %v1440, 16
        %v1553 = vpack.i.b16 %v1552, %v1551
        %v1557 = vpack.i.b16 %v1456, %v1448
        %v1559 = vshrl.u32 %v1448, 16
        %v1560 = vshrl.u32 %v1456, 16
        %v1561 = vpack.i.b16 %v1560, %v1559
        %v1565 = vpack.i.b16 %v1386, %v1371
        %v1567 = vshrl.u32 %v1371, 16
        %v1568 = vshrl.u32 %v1386, 16
        %v1569 = vpack.i.b16 %v1568, %v1567
        %v1573 = vpack.i.b16 %v1402, %v1394
        %v1575 = vshrl.u32 %v1394, 16
        %v1576 = vshrl.u32 %v1402, 16
        %v1577 = vpack.i.b16 %v1576, %v1575
        %v1581 = vpack.i.b16 %v1414, %v1372
        %v1583 = vshrl.u32 %v1372, 16
        %v1584 = vshrl.u32 %v1414, 16
        %v1585 = vpack.i.b16 %v1584, %v1583
        %v1589 = vpack.i.b16 %v1430, %v1422
        %v1591 = vshrl.u32 %v1422, 16
        %v1592 = vshrl.u32 %v1430, 16
        %v1593 = vpack.i.b16 %v1592, %v1591
        %v1597 = vpack.i.b16 %v1442, %v1373
        %v1599 = vshrl.u32 %v1373, 16
        %v1600 = vshrl.u32 %v1442, 16
        %v1601 = vpack.i.b16 %v1600, %v1599
        %v1605 = vpack.i.b16 %v1458, %v1450
        %v1607 = vshrl.u32 %v1450, 16
        %v1608 = vshrl.u32 %v1458, 16
        %v1609 = vpack.i.b16 %v1608, %v1607
        %v1613 = vpack.i.b16 %v1388, %v1374
        %v1615 = vshrl.u32 %v1374, 16
        %v1616 = vshrl.u32 %v1388, 16
        %v1617 = vpack.i.b16 %v1616, %v1615
        %v1621 = vpack.i.b16 %v1404, %v1396
        %v1623 = vshrl.u32 %v1396, 16
        %v1624 = vshrl.u32 %v1404, 16
        %v1625 = vpack.i.b16 %v1624, %v1623
        %v1629 = vpack.i.b16 %v1416, %v1375
        %v1631 = vshrl.u32 %v1375, 16
        %v1632 = vshrl.u32 %v1416, 16
        %v1633 = vpack.i.b16 %v1632, %v1631
        %v1637 = vpack.i.b16 %v1432, %v1424
        %v1639 = vshrl.u32 %v1424, 16
        %v1640 = vshrl.u32 %v1432, 16
        %v1641 = vpack.i.b16 %v1640, %v1639
        %v1645 = vpack.i.b16 %v1444, %v1376
        %v1647 = vshrl.u32 %v1376, 16
        %v1648 = vshrl.u32 %v1444, 16
        %v1649 = vpack.i.b16 %v1648, %v1647
        %v1653 = vpack.i.b16 %v1460, %v1452
        %v1655 = vshrl.u32 %v1452, 16
        %v1656 = vshrl.u32 %v1460, 16
        %v1657 = vpack.i.b16 %v1656, %v1655
        %v1659 = vcombine.low %v1463, %v1479
        %v1660 = vcombine.high %v1463, %v1479
        %v1662 = vunpack.c.l.s4 1983009808
        %v1663 = vunpack.c.0.s8 %v1662
        %v1664 = vlaneseq
        %v1665 = vshrl.u32 %v1664, 7
        %v1666 = vsub.s32 %v1663, %v1665
        %v1667 = vrot.slane %v1659, %v1666
        %v1669 = vunpack.c.l.s4 1983009808
        %v1670 = vunpack.c.0.s8 %v1669
        %v1671 = vlaneseq
        %v1672 = vshrl.u32 %v1671, 7
        %v1673 = vsub.s32 %v1670, %v1672
        %v1674 = vrot.slane %v1660, %v1673
        %v1675 = vcombine.low %v1471, %v1487
        %v1676 = vcombine.high %v1471, %v1487
        %v1678 = vunpack.c.l.s4 1983009808
        %v1679 = vunpack.c.0.s8 %v1678
        %v1680 = vlaneseq
        %v1681 = vshrl.u32 %v1680, 7
        %v1682 = vsub.s32 %v1679, %v1681
        %v1683 = vrot.slane %v1675, %v1682
        %v1685 = vunpack.c.l.s4 1983009808
        %v1686 = vunpack.c.0.s8 %v1685
        %v1687 = vlaneseq
        %v1688 = vshrl.u32 %v1687, 7
        %v1689 = vsub.s32 %v1686, %v1688
        %v1690 = vrot.slane %v1676, %v1689
        %v1691 = vcombine.high %v1495, %v1510
        %v1693 = vunpack.c.l.s4 1983009808
        %v1694 = vunpack.c.0.s8 %v1693
        %v1695 = vlaneseq
        %v1696 = vshrl.u32 %v1695, 7
        %v1697 = vsub.s32 %v1694, %v1696
        %v1698 = vrot.slane %v1495, %v1697
        %v1700 = vunpack.c.l.s4 1983009808
        %v1701 = vunpack.c.0.s8 %v1700
        %v1702 = vlaneseq
        %v1703 = vshrl.u32 %v1702, 7
        %v1704 = vsub.s32 %v1701, %v1703
        %v1705 = vrot.slane %v1691, %v1704
        %v1706 = vcombine.high %v1503, %v1510
        %v1708 = vunpack.c.l.s4 1983009808
        %v1709 = vunpack.c.0.s8 %v1708
        %v1710 = vlaneseq
        %v1711 = vshrl.u32 %v1710, 7
        %v1712 = vsub.s32 %v1709, %v1711
        %v1713 = vrot.slane %v1503, %v1712
        %v1715 = vunpack.c.l.s4 1983009808
        %v1716 = vunpack.c.0.s8 %v1715
        %v1717 = vlaneseq
        %v1718 = vshrl.u32 %v1717, 7
        %v1719 = vsub.s32 %v1716, %v1718
        %v1720 = vrot.slane %v1706, %v1719
        %v1721 = vcombine.low %v1667, %v1683
        %v1722 = vcombine.high %v1667, %v1683
        %v1724 = vunpack.c.l.s4 1934713408
        %v1725 = vunpack.c.0.s8 %v1724
        %v1726 = vlaneseq
        %v1727 = vshrl.u32 %v1726, 7
        %v1728 = vsub.s32 %v1725, %v1727
        %v1729 = vrot.slane %v1721, %v1728
        %v1731 = vunpack.c.l.s4 1934713408
        %v1732 = vunpack.c.0.s8 %v1731
        %v1733 = vlaneseq
        %v1734 = vshrl.u32 %v1733, 7
        %v1735 = vsub.s32 %v1732, %v1734
        %v1736 = vrot.slane %v1722, %v1735
        %v1737 = vcombine.low %v1674, %v1690
        %v1738 = vcombine.high %v1674, %v1690
        %v1740 = vunpack.c.l.s4 1934713408
        %v1741 = vunpack.c.0.s8 %v1740
        %v1742 = vlaneseq
        %v1743 = vshrl.u32 %v1742, 7
        %v1744 = vsub.s32 %v1741, %v1743
        %v1745 = vrot.slane %v1737, %v1744
        %v1747 = vunpack.c.l.s4 1934713408
        %v1748 = vunpack.c.0.s8 %v1747
        %v1749 = vlaneseq
        %v1750 = vshrl.u32 %v1749, 7
        %v1751 = vsub.s32 %v1748, %v1750
        %v1752 = vrot.slane %v1738, %v1751
        %v1753 = vcombine.low %v1698, %v1713
        %v1754 = vcombine.high %v1698, %v1713
        %v1756 = vunpack.c.l.s4 1934713408
        %v1757 = vunpack.c.0.s8 %v1756
        %v1758 = vlaneseq
        %v1759 = vshrl.u32 %v1758, 7
        %v1760 = vsub.s32 %v1757, %v1759
        %v1761 = vrot.slane %v1753, %v1760
        %v1763 = vunpack.c.l.s4 1934713408
        %v1764 = vunpack.c.0.s8 %v1763
        %v1765 = vlaneseq
        %v1766 = vshrl.u32 %v1765, 7
        %v1767 = vsub.s32 %v1764, %v1766
        %v1768 = vrot.slane %v1754, %v1767
        %v1769 = vcombine.low %v1705, %v1720
        %v1770 = vcombine.high %v1705, %v1720
        %v1772 = vunpack.c.l.s4 1934713408
        %v1773 = vunpack.c.0.s8 %v1772
        %v1774 = vlaneseq
        %v1775 = vshrl.u32 %v1774, 7
        %v1776 = vsub.s32 %v1773, %v1775
        %v1777 = vrot.slane %v1769, %v1776
        %v1779 = vunpack.c.l.s4 1934713408
        %v1780 = vunpack.c.0.s8 %v1779
        %v1781 = vlaneseq
        %v1782 = vshrl.u32 %v1781, 7
        %v1783 = vsub.s32 %v1780, %v1782
        %v1784 = vrot.slane %v1770, %v1783
        %v1785 = vcombine.low %v1729, %v1761
        %v1786 = vcombine.high %v1729, %v1761
        %v1787 = vcombine.low %v1736, %v1768
        %v1788 = vcombine.high %v1736, %v1768
        %v1789 = vcombine.low %v1745, %v1777
        %v1790 = vcombine.high %v1745, %v1777
        %v1791 = vcombine.low %v1752, %v1784
        %v1792 = vcombine.high %v1752, %v1784
        %v1793 = vcombine.low %v1467, %v1483
        %v1794 = vcombine.high %v1467, %v1483
        %v1796 = vunpack.c.l.s4 1983009808
        %v1797 = vunpack.c.0.s8 %v1796
        %v1798 = vlaneseq
        %v1799 = vshrl.u32 %v1798, 7
        %v1800 = vsub.s32 %v1797, %v1799
        %v1801 = vrot.slane %v1793, %v1800
        %v1803 = vunpack.c.l.s4 1983009808
        %v1804 = vunpack.c.0.s8 %v1803
        %v1805 = vlaneseq
        %v1806 = vshrl.u32 %v1805, 7
        %v1807 = vsub.s32 %v1804, %v1806
        %v1808 = vrot.slane %v1794, %v1807
        %v1809 = vcombine.low %v1475, %v1491
        %v1810 = vcombine.high %v1475, %v1491
        %v1812 = vunpack.c.l.s4 1983009808
        %v1813 = vunpack.c.0.s8 %v1812
        %v1814 = vlaneseq
        %v1815 = vshrl.u32 %v1814, 7
        %v1816 = vsub.s32 %v1813, %v1815
        %v1817 = vrot.slane %v1809, %v1816
        %v1819 = vunpack.c.l.s4 1983009808
        %v1820 = vunpack.c.0.s8 %v1819
        %v1821 = vlaneseq
        %v1822 = vshrl.u32 %v1821, 7
        %v1823 = vsub.s32 %v1820, %v1822
        %v1824 = vrot.slane %v1810, %v1823
        %v1825 = vcombine.high %v1499, %v1513
        %v1827 = vunpack.c.l.s4 1983009808
        %v1828 = vunpack.c.0.s8 %v1827
        %v1829 = vlaneseq
        %v1830 = vshrl.u32 %v1829, 7
        %v1831 = vsub.s32 %v1828, %v1830
        %v1832 = vrot.slane %v1499, %v1831
        %v1834 = vunpack.c.l.s4 1983009808
        %v1835 = vunpack.c.0.s8 %v1834
        %v1836 = vlaneseq
        %v1837 = vshrl.u32 %v1836, 7
        %v1838 = vsub.s32 %v1835, %v1837
        %v1839 = vrot.slane %v1825, %v1838
        %v1840 = vcombine.high %v1507, %v1513
        %v1842 = vunpack.c.l.s4 1983009808
        %v1843 = vunpack.c.0.s8 %v1842
        %v1844 = vlaneseq
        %v1845 = vshrl.u32 %v1844, 7
        %v1846 = vsub.s32 %v1843, %v1845
        %v1847 = vrot.slane %v1507, %v1846
        %v1849 = vunpack.c.l.s4 1983009808
        %v1850 = vunpack.c.0.s8 %v1849
        %v1851 = vlaneseq
        %v1852 = vshrl.u32 %v1851, 7
        %v1853 = vsub.s32 %v1850, %v1852
        %v1854 = vrot.slane %v1840, %v1853
        %v1855 = vcombine.low %v1801, %v1817
        %v1856 = vcombine.high %v1801, %v1817
        %v1858 = vunpack.c.l.s4 1934713408
        %v1859 = vunpack.c.0.s8 %v1858
        %v1860 = vlaneseq
        %v1861 = vshrl.u32 %v1860, 7
        %v1862 = vsub.s32 %v1859, %v1861
        %v1863 = vrot.slane %v1855, %v1862
        %v1865 = vunpack.c.l.s4 1934713408
        %v1866 = vunpack.c.0.s8 %v1865
        %v1867 = vlaneseq
        %v1868 = vshrl.u32 %v1867, 7
        %v1869 = vsub.s32 %v1866, %v1868
        %v1870 = vrot.slane %v1856, %v1869
        %v1871 = vcombine.low %v1808, %v1824
        %v1872 = vcombine.high %v1808, %v1824
        %v1874 = vunpack.c.l.s4 1934713408
        %v1875 = vunpack.c.0.s8 %v1874
        %v1876 = vlaneseq
        %v1877 = vshrl.u32 %v1876, 7
        %v1878 = vsub.s32 %v1875, %v1877
        %v1879 = vrot.slane %v1871, %v1878
        %v1881 = vunpack.c.l.s4 1934713408
        %v1882 = vunpack.c.0.s8 %v1881
        %v1883 = vlaneseq
        %v1884 = vshrl.u32 %v1883, 7
        %v1885 = vsub.s32 %v1882, %v1884
        %v1886 = vrot.slane %v1872, %v1885
        %v1887 = vcombine.low %v1832, %v1847
        %v1888 = vcombine.high %v1832, %v1847
        %v1890 = vunpack.c.l.s4 1934713408
        %v1891 = vunpack.c.0.s8 %v1890
        %v1892 = vlaneseq
        %v1893 = vshrl.u32 %v1892, 7
        %v1894 = vsub.s32 %v1891, %v1893
        %v1895 = vrot.slane %v1887, %v1894
        %v1897 = vunpack.c.l.s4 1934713408
        %v1898 = vunpack.c.0.s8 %v1897
        %v1899 = vlaneseq
        %v1900 = vshrl.u32 %v1899, 7
        %v1901 = vsub.s32 %v1898, %v1900
        %v1902 = vrot.slane %v1888, %v1901
        %v1903 = vcombine.low %v1839, %v1854
        %v1904 = vcombine.high %v1839, %v1854
        %v1906 = vunpack.c.l.s4 1934713408
        %v1907 = vunpack.c.0.s8 %v1906
        %v1908 = vlaneseq
        %v1909 = vshrl.u32 %v1908, 7
        %v1910 = vsub.s32 %v1907, %v1909
        %v1911 = vrot.slane %v1903, %v1910
        %v1913 = vunpack.c.l.s4 1934713408
        %v1914 = vunpack.c.0.s8 %v1913
        %v1915 = vlaneseq
        %v1916 = vshrl.u32 %v1915, 7
        %v1917 = vsub.s32 %v1914, %v1916
        %v1918 = vrot.slane %v1904, %v1917
        %v1919 = vcombine.low %v1863, %v1895
        %v1920 = vcombine.high %v1863, %v1895
        %v1921 = vcombine.low %v1870, %v1902
        %v1922 = vcombine.high %v1870, %v1902
        %v1923 = vcombine.low %v1879, %v1911
        %v1924 = vcombine.high %v1879, %v1911
        %v1925 = vcombine.low %v1886, %v1918
        %v1926 = vcombine.high %v1886, %v1918
        %v1927 = vcombine.low %v1517, %v1533
        %v1928 = vcombine.high %v1517, %v1533
        %v1930 = vunpack.c.l.s4 1983009808
        %v1931 = vunpack.c.0.s8 %v1930
        %v1932 = vlaneseq
        %v1933 = vshrl.u32 %v1932, 7
        %v1934 = vsub.s32 %v1931, %v1933
        %v1935 = vrot.slane %v1927, %v1934
        %v1937 = vunpack.c.l.s4 1983009808
        %v1938 = vunpack.c.0.s8 %v1937
        %v1939 = vlaneseq
        %v1940 = vshrl.u32 %v1939, 7
        %v1941 = vsub.s32 %v1938, %v1940
        %v1942 = vrot.slane %v1928, %v1941
        %v1943 = vcombine.low %v1525, %v1541
        %v1944 = vcombine.high %v1525, %v1541
        %v1946 = vunpack.c.l.s4 1983009808
        %v1947 = vunpack.c.0.s8 %v1946
        %v1948 = vlaneseq
        %v1949 = vshrl.u32 %v1948, 7
        %v1950 = vsub.s32 %v1947, %v1949
        %v1951 = vrot.slane %v1943, %v1950
        %v1953 = vunpack.c.l.s4 1983009808
        %v1954 = vunpack.c.0.s8 %v1953
        %v1955 = vlaneseq
        %v1956 = vshrl.u32 %v1955, 7
        %v1957 = vsub.s32 %v1954, %v1956
        %v1958 = vrot.slane %v1944, %v1957
        %v1959 = vcombine.high %v1549, %v1510
        %v1961 = vunpack.c.l.s4 1983009808
        %v1962 = vunpack.c.0.s8 %v1961
        %v1963 = vlaneseq
        %v1964 = vshrl.u32 %v1963, 7
        %v1965 = vsub.s32 %v1962, %v1964
        %v1966 = vrot.slane %v1549, %v1965
        %v1968 = vunpack.c.l.s4 1983009808
        %v1969 = vunpack.c.0.s8 %v1968
        %v1970 = vlaneseq
        %v1971 = vshrl.u32 %v1970, 7
        %v1972 = vsub.s32 %v1969, %v1971
        %v1973 = vrot.slane %v1959, %v1972
        %v1974 = vcombine.high %v1557, %v1510
        %v1976 = vunpack.c.l.s4 1983009808
        %v1977 = vunpack.c.0.s8 %v1976
        %v1978 = vlaneseq
        %v1979 = vshrl.u32 %v1978, 7
        %v1980 = vsub.s32 %v1977, %v1979
        %v1981 = vrot.slane %v1557, %v1980
        %v1983 = vunpack.c.l.s4 1983009808
        %v1984 = vunpack.c.0.s8 %v1983
        %v1985 = vlaneseq
        %v1986 = vshrl.u32 %v1985, 7
        %v1987 = vsub.s32 %v1984, %v1986
        %v1988 = vrot.slane %v1974, %v1987
        %v1989 = vcombine.low %v1935, %v1951
        %v1990 = vcombine.high %v1935, %v1951
        %v1992 = vunpack.c.l.s4 1934713408
        %v1993 = vunpack.c.0.s8 %v1992
        %v1994 = vlaneseq
        %v1995 = vshrl.u32 %v1994, 7
        %v1996 = vsub.s32 %v1993, %v1995
        %v1997 = vrot.slane %v1989, %v1996
        %v1999 = vunpack.c.l.s4 1934713408
        %v2000 = vunpack.c.0.s8 %v1999
        %v2001 = vlaneseq
        %v2002 = vshrl.u32 %v2001, 7
        %v2003 = vsub.s32 %v2000, %v2002
        %v2004 = vrot.slane %v1990, %v2003
        %v2005 = vcombine.low %v1942, %v1958
        %v2006 = vcombine.high %v1942, %v1958
        %v2008 = vunpack.c.l.s4 1934713408
        %v2009 = vunpack.c.0.s8 %v2008
        %v2010 = vlaneseq
        %v2011 = vshrl.u32 %v2010, 7
        %v2012 = vsub.s32 %v2009, %v2011
        %v2013 = vrot.slane %v2005, %v2012
        %v2015 = vunpack.c.l.s4 1934713408
        %v2016 = vunpack.c.0.s8 %v2015
        %v2017 = vlaneseq
        %v2018 = vshrl.u32 %v2017, 7
        %v2019 = vsub.s32 %v2016, %v2018
        %v2020 = vrot.slane %v2006, %v2019
        %v2021 = vcombine.low %v1966, %v1981
        %v2022 = vcombine.high %v1966, %v1981
        %v2024 = vunpack.c.l.s4 1934713408
        %v2025 = vunpack.c.0.s8 %v2024
        %v2026 = vlaneseq
        %v2027 = vshrl.u32 %v2026, 7
        %v2028 = vsub.s32 %v2025, %v2027
        %v2029 = vrot.slane %v2021, %v2028
        %v2031 = vunpack.c.l.s4 1934713408
        %v2032 = vunpack.c.0.s8 %v2031
        %v2033 = vlaneseq
        %v2034 = vshrl.u32 %v2033, 7
        %v2035 = vsub.s32 %v2032, %v2034
        %v2036 = vrot.slane %v2022, %v2035
        %v2037 = vcombine.low %v1973, %v1988
        %v2038 = vcombine.high %v1973, %v1988
        %v2040 = vunpack.c.l.s4 1934713408
        %v2041 = vunpack.c.0.s8 %v2040
        %v2042 = vlaneseq
        %v2043 = vshrl.u32 %v2042, 7
        %v2044 = vsub.s32 %v2041, %v2043
        %v2045 = vrot.slane %v2037, %v2044
        %v2047 = vunpack.c.l.s4 1934713408
        %v2048 = vunpack.c.0.s8 %v2047
        %v2049 = vlaneseq
        %v2050 = vshrl.u32 %v2049, 7
        %v2051 = vsub.s32 %v2048, %v2050
        %v2052 = vrot.slane %v2038, %v2051
        %v2053 = vcombine.low %v1997, %v2029
        %v2054 = vcombine.high %v1997, %v2029
        %v2055 = vcombine.low %v2004, %v2036
        %v2056 = vcombine.high %v2004, %v2036
        %v2057 = vcombine.low %v2013, %v2045
        %v2058 = vcombine.high %v2013, %v2045
        %v2059 = vcombine.low %v2020, %v2052
        %v2060 = vcombine.high %v2020, %v2052
        %v2061 = vcombine.low %v1521, %v1537
        %v2062 = vcombine.high %v1521, %v1537
        %v2064 = vunpack.c.l.s4 1983009808
        %v2065 = vunpack.c.0.s8 %v2064
        %v2066 = vlaneseq
        %v2067 = vshrl.u32 %v2066, 7
        %v2068 = vsub.s32 %v2065, %v2067
        %v2069 = vrot.slane %v2061, %v2068
        %v2071 = vunpack.c.l.s4 1983009808
        %v2072 = vunpack.c.0.s8 %v2071
        %v2073 = vlaneseq
        %v2074 = vshrl.u32 %v2073, 7
        %v2075 = vsub.s32 %v2072, %v2074
        %v2076 = vrot.slane %v2062, %v2075
        %v2077 = vcombine.low %v1529, %v1545
        %v2078 = vcombine.high %v1529, %v1545
        %v2080 = vunpack.c.l.s4 1983009808
        %v2081 = vunpack.c.0.s8 %v2080
        %v2082 = vlaneseq
        %v2083 = vshrl.u32 %v2082, 7
        %v2084 = vsub.s32 %v2081, %v2083
        %v2085 = vrot.slane %v2077, %v2084
        %v2087 = vunpack.c.l.s4 1983009808
        %v2088 = vunpack.c.0.s8 %v2087
        %v2089 = vlaneseq
        %v2090 = vshrl.u32 %v2089, 7
        %v2091 = vsub.s32 %v2088, %v2090
        %v2092 = vrot.slane %v2078, %v2091
        %v2093 = vcombine.high %v1553, %v1513
        %v2095 = vunpack.c.l.s4 1983009808
        %v2096 = vunpack.c.0.s8 %v2095
        %v2097 = vlaneseq
        %v2098 = vshrl.u32 %v2097, 7
        %v2099 = vsub.s32 %v2096, %v2098
        %v2100 = vrot.slane %v1553, %v2099
        %v2102 = vunpack.c.l.s4 1983009808
        %v2103 = vunpack.c.0.s8 %v2102
        %v2104 = vlaneseq
        %v2105 = vshrl.u32 %v2104, 7
        %v2106 = vsub.s32 %v2103, %v2105
        %v2107 = vrot.slane %v2093, %v2106
        %v2108 = vcombine.high %v1561, %v1513
        %v2110 = vunpack.c.l.s4 1983009808
        %v2111 = vunpack.c.0.s8 %v2110
        %v2112 = vlaneseq
        %v2113 = vshrl.u32 %v2112, 7
        %v2114 = vsub.s32 %v2111, %v2113
        %v2115 = vrot.slane %v1561, %v2114
        %v2117 = vunpack.c.l.s4 1983009808
        %v2118 = vunpack.c.0.s8 %v2117
        %v2119 = vlaneseq
        %v2120 = vshrl.u32 %v2119, 7
        %v2121 = vsub.s32 %v2118, %v2120
        %v2122 = vrot.slane %v2108, %v2121
        %v2123 = vcombine.low %v2069, %v2085
        %v2124 = vcombine.high %v2069, %v2085
        %v2126 = vunpack.c.l.s4 1934713408
        %v2127 = vunpack.c.0.s8 %v2126
        %v2128 = vlaneseq
        %v2129 = vshrl.u32 %v2128, 7
        %v2130 = vsub.s32 %v2127, %v2129
        %v2131 = vrot.slane %v2123, %v2130
        %v2133 = vunpack.c.l.s4 1934713408
        %v2134 = vunpack.c.0.s8 %v2133
        %v2135 = vlaneseq
        %v2136 = vshrl.u32 %v2135, 7
        %v2137 = vsub.s32 %v2134, %v2136
        %v2138 = vrot.slane %v2124, %v2137
        %v2139 = vcombine.low %v2076, %v2092
        %v2140 = vcombine.high %v2076, %v2092
        %v2142 = vunpack.c.l.s4 1934713408
        %v2143 = vunpack.c.0.s8 %v2142
        %v2144 = vlaneseq
        %v2145 = vshrl.u32 %v2144, 7
        %v2146 = vsub.s32 %v2143, %v2145
        %v2147 = vrot.slane %v2139, %v2146
        %v2149 = vunpack.c.l.s4 1934713408
        %v2150 = vunpack.c.0.s8 %v2149
        %v2151 = vlaneseq
        %v2152 = vshrl.u32 %v2151, 7
        %v2153 = vsub.s32 %v2150, %v2152
        %v2154 = vrot.slane %v2140, %v2153
        %v2155 = vcombine.low %v2100, %v2115
        %v2156 = vcombine.high %v2100, %v2115
        %v2158 = vunpack.c.l.s4 1934713408
        %v2159 = vunpack.c.0.s8 %v2158
        %v2160 = vlaneseq
        %v2161 = vshrl.u32 %v2160, 7
        %v2162 = vsub.s32 %v2159, %v2161
        %v2163 = vrot.slane %v2155, %v2162
        %v2165 = vunpack.c.l.s4 1934713408
        %v2166 = vunpack.c.0.s8 %v2165
        %v2167 = vlaneseq
        %v2168 = vshrl.u32 %v2167, 7
        %v2169 = vsub.s32 %v2166, %v2168
        %v2170 = vrot.slane %v2156, %v2169
        %v2171 = vcombine.low %v2107, %v2122
        %v2172 = vcombine.high %v2107, %v2122
        %v2174 = vunpack.c.l.s4 1934713408
        %v2175 = vunpack.c.0.s8 %v2174
        %v2176 = vlaneseq
        %v2177 = vshrl.u32 %v2176, 7
        %v2178 = vsub.s32 %v2175, %v2177
        %v2179 = vrot.slane %v2171, %v2178
        %v2181 = vunpack.c.l.s4 1934713408
        %v2182 = vunpack.c.0.s8 %v2181
        %v2183 = vlaneseq
        %v2184 = vshrl.u32 %v2183, 7
        %v2185 = vsub.s32 %v2182, %v2184
        %v2186 = vrot.slane %v2172, %v2185
        %v2187 = vcombine.low %v2131, %v2163
        %v2188 = vcombine.high %v2131, %v2163
        %v2189 = vcombine.low %v2138, %v2170
        %v2190 = vcombine.high %v2138, %v2170
        %v2191 = vcombine.low %v2147, %v2179
        %v2192 = vcombine.high %v2147, %v2179
        %v2193 = vcombine.low %v2154, %v2186
        %v2194 = vcombine.high %v2154, %v2186
        %v2195 = vcombine.low %v1565, %v1581
        %v2196 = vcombine.high %v1565, %v1581
        %v2198 = vunpack.c.l.s4 1983009808
        %v2199 = vunpack.c.0.s8 %v2198
        %v2200 = vlaneseq
        %v2201 = vshrl.u32 %v2200, 7
        %v2202 = vsub.s32 %v2199, %v2201
        %v2203 = vrot.slane %v2195, %v2202
        %v2205 = vunpack.c.l.s4 1983009808
        %v2206 = vunpack.c.0.s8 %v2205
        %v2207 = vlaneseq
        %v2208 = vshrl.u32 %v2207, 7
        %v2209 = vsub.s32 %v2206, %v2208
        %v2210 = vrot.slane %v2196, %v2209
        %v2211 = vcombine.low %v1573, %v1589
        %v2212 = vcombine.high %v1573, %v1589
        %v2214 = vunpack.c.l.s4 1983009808
        %v2215 = vunpack.c.0.s8 %v2214
        %v2216 = vlaneseq
        %v2217 = vshrl.u32 %v2216, 7
        %v2218 = vsub.s32 %v2215, %v2217
        %v2219 = vrot.slane %v2211, %v2218
        %v2221 = vunpack.c.l.s4 1983009808
        %v2222 = vunpack.c.0.s8 %v2221
        %v2223 = vlaneseq
        %v2224 = vshrl.u32 %v2223, 7
        %v2225 = vsub.s32 %v2222, %v2224
        %v2226 = vrot.slane %v2212, %v2225
        %v2227 = vcombine.high %v1597, %v1510
        %v2229 = vunpack.c.l.s4 1983009808
        %v2230 = vunpack.c.0.s8 %v2229
        %v2231 = vlaneseq
        %v2232 = vshrl.u32 %v2231, 7
        %v2233 = vsub.s32 %v2230, %v2232
        %v2234 = vrot.slane %v1597, %v2233
        %v2236 = vunpack.c.l.s4 1983009808
        %v2237 = vunpack.c.0.s8 %v2236
        %v2238 = vlaneseq
        %v2239 = vshrl.u32 %v2238, 7
        %v2240 = vsub.s32 %v2237, %v2239
        %v2241 = vrot.slane %v2227, %v2240
        %v2242 = vcombine.high %v1605, %v1510
        %v2244 = vunpack.c.l.s4 1983009808
        %v2245 = vunpack.c.0.s8 %v2244
        %v2246 = vlaneseq
        %v2247 = vshrl.u32 %v2246, 7
        %v2248 = vsub.s32 %v2245, %v2247
        %v2249 = vrot.slane %v1605, %v2248
        %v2251 = vunpack.c.l.s4 1983009808
        %v2252 = vunpack.c.0.s8 %v2251
        %v2253 = vlaneseq
        %v2254 = vshrl.u32 %v2253, 7
        %v2255 = vsub.s32 %v2252, %v2254
        %v2256 = vrot.slane %v2242, %v2255
        %v2257 = vcombine.low %v2203, %v2219
        %v2258 = vcombine.high %v2203, %v2219
        %v2260 = vunpack.c.l.s4 1934713408
        %v2261 = vunpack.c.0.s8 %v2260
        %v2262 = vlaneseq
        %v2263 = vshrl.u32 %v2262, 7
        %v2264 = vsub.s32 %v2261, %v2263
        %v2265 = vrot.slane %v2257, %v2264
        %v2267 = vunpack.c.l.s4 1934713408
        %v2268 = vunpack.c.0.s8 %v2267
        %v2269 = vlaneseq
        %v2270 = vshrl.u32 %v2269, 7
        %v2271 = vsub.s32 %v2268, %v2270
        %v2272 = vrot.slane %v2258, %v2271
        %v2273 = vcombine.low %v2210, %v2226
        %v2274 = vcombine.high %v2210, %v2226
        %v2276 = vunpack.c.l.s4 1934713408
        %v2277 = vunpack.c.0.s8 %v2276
        %v2278 = vlaneseq
        %v2279 = vshrl.u32 %v2278, 7
        %v2280 = vsub.s32 %v2277, %v2279
        %v2281 = vrot.slane %v2273, %v2280
        %v2283 = vunpack.c.l.s4 1934713408
        %v2284 = vunpack.c.0.s8 %v2283
        %v2285 = vlaneseq
        %v2286 = vshrl.u32 %v2285, 7
        %v2287 = vsub.s32 %v2284, %v2286
        %v2288 = vrot.slane %v2274, %v2287
        %v2289 = vcombine.low %v2234, %v2249
        %v2290 = vcombine.high %v2234, %v2249
        %v2292 = vunpack.c.l.s4 1934713408
        %v2293 = vunpack.c.0.s8 %v2292
        %v2294 = vlaneseq
        %v2295 = vshrl.u32 %v2294, 7
        %v2296 = vsub.s32 %v2293, %v2295
        %v2297 = vrot.slane %v2289, %v2296
        %v2299 = vunpack.c.l.s4 1934713408
        %v2300 = vunpack.c.0.s8 %v2299
        %v2301 = vlaneseq
        %v2302 = vshrl.u32 %v2301, 7
        %v2303 = vsub.s32 %v2300, %v2302
        %v2304 = vrot.slane %v2290, %v2303
        %v2305 = vcombine.low %v2241, %v2256
        %v2306 = vcombine.high %v2241, %v2256
        %v2308 = vunpack.c.l.s4 1934713408
        %v2309 = vunpack.c.0.s8 %v2308
        %v2310 = vlaneseq
        %v2311 = vshrl.u32 %v2310, 7
        %v2312 = vsub.s32 %v2309, %v2311
        %v2313 = vrot.slane %v2305, %v2312
        %v2315 = vunpack.c.l.s4 1934713408
        %v2316 = vunpack.c.0.s8 %v2315
        %v2317 = vlaneseq
        %v2318 = vshrl.u32 %v2317, 7
        %v2319 = vsub.s32 %v2316, %v2318
        %v2320 = vrot.slane %v2306, %v2319
        %v2321 = vcombine.low %v2265, %v2297
        %v2322 = vcombine.high %v2265, %v2297
        %v2323 = vcombine.low %v2272, %v2304
        %v2324 = vcombine.high %v2272, %v2304
        %v2325 = vcombine.low %v2281, %v2313
        %v2326 = vcombine.high %v2281, %v2313
        %v2327 = vcombine.low %v2288, %v2320
        %v2328 = vcombine.high %v2288, %v2320
        %v2329 = vcombine.low %v1569, %v1585
        %v2330 = vcombine.high %v1569, %v1585
        %v2332 = vunpack.c.l.s4 1983009808
        %v2333 = vunpack.c.0.s8 %v2332
        %v2334 = vlaneseq
        %v2335 = vshrl.u32 %v2334, 7
        %v2336 = vsub.s32 %v2333, %v2335
        %v2337 = vrot.slane %v2329, %v2336
        %v2339 = vunpack.c.l.s4 1983009808
        %v2340 = vunpack.c.0.s8 %v2339
        %v2341 = vlaneseq
        %v2342 = vshrl.u32 %v2341, 7
        %v2343 = vsub.s32 %v2340, %v2342
        %v2344 = vrot.slane %v2330, %v2343
        %v2345 = vcombine.low %v1577, %v1593
        %v2346 = vcombine.high %v1577, %v1593
        %v2348 = vunpack.c.l.s4 1983009808
        %v2349 = vunpack.c.0.s8 %v2348
        %v2350 = vlaneseq
        %v2351 = vshrl.u32 %v2350, 7
        %v2352 = vsub.s32 %v2349, %v2351
        %v2353 = vrot.slane %v2345, %v2352
        %v2355 = vunpack.c.l.s4 1983009808
        %v2356 = vunpack.c.0.s8 %v2355
        %v2357 = vlaneseq
        %v2358 = vshrl.u32 %v2357, 7
        %v2359 = vsub.s32 %v2356, %v2358
        %v2360 = vrot.slane %v2346, %v2359
        %v2361 = vcombine.high %v1601, %v1513
        %v2363 = vunpack.c.l.s4 1983009808
        %v2364 = vunpack.c.0.s8 %v2363
        %v2365 = vlaneseq
        %v2366 = vshrl.u32 %v2365, 7
        %v2367 = vsub.s32 %v2364, %v2366
        %v2368 = vrot.slane %v1601, %v2367
        %v2370 = vunpack.c.l.s4 1983009808
        %v2371 = vunpack.c.0.s8 %v2370
        %v2372 = vlaneseq
        %v2373 = vshrl.u32 %v2372, 7
        %v2374 = vsub.s32 %v2371, %v2373
        %v2375 = vrot.slane %v2361, %v2374
        %v2376 = vcombine.high %v1609, %v1513
        %v2378 = vunpack.c.l.s4 1983009808
        %v2379 = vunpack.c.0.s8 %v2378
        %v2380 = vlaneseq
        %v2381 = vshrl.u32 %v2380, 7
        %v2382 = vsub.s32 %v2379, %v2381
        %v2383 = vrot.slane %v1609, %v2382
        %v2385 = vunpack.c.l.s4 1983009808
        %v2386 = vunpack.c.0.s8 %v2385
        %v2387 = vlaneseq
        %v2388 = vshrl.u32 %v2387, 7
        %v2389 = vsub.s32 %v2386, %v2388
        %v2390 = vrot.slane %v2376, %v2389
        %v2391 = vcombine.low %v2337, %v2353
        %v2392 = vcombine.high %v2337, %v2353
        %v2394 = vunpack.c.l.s4 1934713408
        %v2395 = vunpack.c.0.s8 %v2394
        %v2396 = vlaneseq
        %v2397 = vshrl.u32 %v2396, 7
        %v2398 = vsub.s32 %v2395, %v2397
        %v2399 = vrot.slane %v2391, %v2398
        %v2401 = vunpack.c.l.s4 1934713408
        %v2402 = vunpack.c.0.s8 %v2401
        %v2403 = vlaneseq
        %v2404 = vshrl.u32 %v2403, 7
        %v2405 = vsub.s32 %v2402, %v2404
        %v2406 = vrot.slane %v2392, %v2405
        %v2407 = vcombine.low %v2344, %v2360
        %v2408 = vcombine.high %v2344, %v2360
        %v2410 = vunpack.c.l.s4 1934713408
        %v2411 = vunpack.c.0.s8 %v2410
        %v2412 = vlaneseq
        %v2413 = vshrl.u32 %v2412, 7
        %v2414 = vsub.s32 %v2411, %v2413
        %v2415 = vrot.slane %v2407, %v2414
        %v2417 = vunpack.c.l.s4 1934713408
        %v2418 = vunpack.c.0.s8 %v2417
        %v2419 = vlaneseq
        %v2420 = vshrl.u32 %v2419, 7
        %v2421 = vsub.s32 %v2418, %v2420
        %v2422 = vrot.slane %v2408, %v2421
        %v2423 = vcombine.low %v2368, %v2383
        %v2424 = vcombine.high %v2368, %v2383
        %v2426 = vunpack.c.l.s4 1934713408
        %v2427 = vunpack.c.0.s8 %v2426
        %v2428 = vlaneseq
        %v2429 = vshrl.u32 %v2428, 7
        %v2430 = vsub.s32 %v2427, %v2429
        %v2431 = vrot.slane %v2423, %v2430
        %v2433 = vunpack.c.l.s4 1934713408
        %v2434 = vunpack.c.0.s8 %v2433
        %v2435 = vlaneseq
        %v2436 = vshrl.u32 %v2435, 7
        %v2437 = vsub.s32 %v2434, %v2436
        %v2438 = vrot.slane %v2424, %v2437
        %v2439 = vcombine.low %v2375, %v2390
        %v2440 = vcombine.high %v2375, %v2390
        %v2442 = vunpack.c.l.s4 1934713408
        %v2443 = vunpack.c.0.s8 %v2442
        %v2444 = vlaneseq
        %v2445 = vshrl.u32 %v2444, 7
        %v2446 = vsub.s32 %v2443, %v2445
        %v2447 = vrot.slane %v2439, %v2446
        %v2449 = vunpack.c.l.s4 1934713408
        %v2450 = vunpack.c.0.s8 %v2449
        %v2451 = vlaneseq
        %v2452 = vshrl.u32 %v2451, 7
        %v2453 = vsub.s32 %v2450, %v2452
        %v2454 = vrot.slane %v2440, %v2453
        %v2455 = vcombine.low %v2399, %v2431
        %v2456 = vcombine.high %v2399, %v2431
        %v2457 = vcombine.low %v2406, %v2438
        %v2458 = vcombine.high %v2406, %v2438
        %v2459 = vcombine.low %v2415, %v2447
        %v2460 = vcombine.high %v2415, %v2447
        %v2461 = vcombine.low %v2422, %v2454
        %v2462 = vcombine.high %v2422, %v2454
        %v2463 = vcombine.low %v1613, %v1629
        %v2464 = vcombine.high %v1613, %v1629
        %v2466 = vunpack.c.l.s4 1983009808
        %v2467 = vunpack.c.0.s8 %v2466
        %v2468 = vlaneseq
        %v2469 = vshrl.u32 %v2468, 7
        %v2470 = vsub.s32 %v2467, %v2469
        %v2471 = vrot.slane %v2463, %v2470
        %v2473 = vunpack.c.l.s4 1983009808
        %v2474 = vunpack.c.0.s8 %v2473
        %v2475 = vlaneseq
        %v2476 = vshrl.u32 %v2475, 7
        %v2477 = vsub.s32 %v2474, %v2476
        %v2478 = vrot.slane %v2464, %v2477
        %v2479 = vcombine.low %v1621, %v1637
        %v2480 = vcombine.high %v1621, %v1637
        %v2482 = vunpack.c.l.s4 1983009808
        %v2483 = vunpack.c.0.s8 %v2482
        %v2484 = vlaneseq
        %v2485 = vshrl.u32 %v2484, 7
        %v2486 = vsub.s32 %v2483, %v2485
        %v2487 = vrot.slane %v2479, %v2486
        %v2489 = vunpack.c.l.s4 1983009808
        %v2490 = vunpack.c.0.s8 %v2489
        %v2491 = vlaneseq
        %v2492 = vshrl.u32 %v2491, 7
        %v2493 = vsub.s32 %v2490, %v2492
        %v2494 = vrot.slane %v2480, %v2493
        %v2495 = vcombine.high %v1645, %v1510
        %v2497 = vunpack.c.l.s4 1983009808
        %v2498 = vunpack.c.0.s8 %v2497
        %v2499 = vlaneseq
        %v2500 = vshrl.u32 %v2499, 7
        %v2501 = vsub.s32 %v2498, %v2500
        %v2502 = vrot.slane %v1645, %v2501
        %v2504 = vunpack.c.l.s4 1983009808
        %v2505 = vunpack.c.0.s8 %v2504
        %v2506 = vlaneseq
        %v2507 = vshrl.u32 %v2506, 7
        %v2508 = vsub.s32 %v2505, %v2507
        %v2509 = vrot.slane %v2495, %v2508
        %v2510 = vcombine.high %v1653, %v1510
        %v2512 = vunpack.c.l.s4 1983009808
        %v2513 = vunpack.c.0.s8 %v2512
        %v2514 = vlaneseq
        %v2515 = vshrl.u32 %v2514, 7
        %v2516 = vsub.s32 %v2513, %v2515
        %v2517 = vrot.slane %v1653, %v2516
        %v2519 = vunpack.c.l.s4 1983009808
        %v2520 = vunpack.c.0.s8 %v2519
        %v2521 = vlaneseq
        %v2522 = vshrl.u32 %v2521, 7
        %v2523 = vsub.s32 %v2520, %v2522
        %v2524 = vrot.slane %v2510, %v2523
        %v2525 = vcombine.low %v2471, %v2487
        %v2526 = vcombine.high %v2471, %v2487
        %v2528 = vunpack.c.l.s4 1934713408
        %v2529 = vunpack.c.0.s8 %v2528
        %v2530 = vlaneseq
        %v2531 = vshrl.u32 %v2530, 7
        %v2532 = vsub.s32 %v2529, %v2531
        %v2533 = vrot.slane %v2525, %v2532
        %v2535 = vunpack.c.l.s4 1934713408
        %v2536 = vunpack.c.0.s8 %v2535
        %v2537 = vlaneseq
        %v2538 = vshrl.u32 %v2537, 7
        %v2539 = vsub.s32 %v2536, %v2538
        %v2540 = vrot.slane %v2526, %v2539
        %v2541 = vcombine.low %v2478, %v2494
        %v2542 = vcombine.high %v2478, %v2494
        %v2544 = vunpack.c.l.s4 1934713408
        %v2545 = vunpack.c.0.s8 %v2544
        %v2546 = vlaneseq
        %v2547 = vshrl.u32 %v2546, 7
        %v2548 = vsub.s32 %v2545, %v2547
        %v2549 = vrot.slane %v2541, %v2548
        %v2551 = vunpack.c.l.s4 1934713408
        %v2552 = vunpack.c.0.s8 %v2551
        %v2553 = vlaneseq
        %v2554 = vshrl.u32 %v2553, 7
        %v2555 = vsub.s32 %v2552, %v2554
        %v2556 = vrot.slane %v2542, %v2555
        %v2557 = vcombine.low %v2502, %v2517
        %v2558 = vcombine.high %v2502, %v2517
        %v2560 = vunpack.c.l.s4 1934713408
        %v2561 = vunpack.c.0.s8 %v2560
        %v2562 = vlaneseq
        %v2563 = vshrl.u32 %v2562, 7
        %v2564 = vsub.s32 %v2561, %v2563
        %v2565 = vrot.slane %v2557, %v2564
        %v2567 = vunpack.c.l.s4 1934713408
        %v2568 = vunpack.c.0.s8 %v2567
        %v2569 = vlaneseq
        %v2570 = vshrl.u32 %v2569, 7
        %v2571 = vsub.s32 %v2568, %v2570
        %v2572 = vrot.slane %v2558, %v2571
        %v2573 = vcombine.low %v2509, %v2524
        %v2574 = vcombine.high %v2509, %v2524
        %v2576 = vunpack.c.l.s4 1934713408
        %v2577 = vunpack.c.0.s8 %v2576
        %v2578 = vlaneseq
        %v2579 = vshrl.u32 %v2578, 7
        %v2580 = vsub.s32 %v2577, %v2579
        %v2581 = vrot.slane %v2573, %v2580
        %v2583 = vunpack.c.l.s4 1934713408
        %v2584 = vunpack.c.0.s8 %v2583
        %v2585 = vlaneseq
        %v2586 = vshrl.u32 %v2585, 7
        %v2587 = vsub.s32 %v2584, %v2586
        %v2588 = vrot.slane %v2574, %v2587
        %v2589 = vcombine.low %v2533, %v2565
        %v2590 = vcombine.high %v2533, %v2565
        %v2591 = vcombine.low %v2540, %v2572
        %v2592 = vcombine.high %v2540, %v2572
        %v2593 = vcombine.low %v2549, %v2581
        %v2594 = vcombine.high %v2549, %v2581
        %v2595 = vcombine.low %v2556, %v2588
        %v2596 = vcombine.high %v2556, %v2588
        %v2597 = vcombine.low %v1617, %v1633
        %v2598 = vcombine.high %v1617, %v1633
        %v2600 = vunpack.c.l.s4 1983009808
        %v2601 = vunpack.c.0.s8 %v2600
        %v2602 = vlaneseq
        %v2603 = vshrl.u32 %v2602, 7
        %v2604 = vsub.s32 %v2601, %v2603
        %v2605 = vrot.slane %v2597, %v2604
        %v2607 = vunpack.c.l.s4 1983009808
        %v2608 = vunpack.c.0.s8 %v2607
        %v2609 = vlaneseq
        %v2610 = vshrl.u32 %v2609, 7
        %v2611 = vsub.s32 %v2608, %v2610
        %v2612 = vrot.slane %v2598, %v2611
        %v2613 = vcombine.low %v1625, %v1641
        %v2614 = vcombine.high %v1625, %v1641
        %v2616 = vunpack.c.l.s4 1983009808
        %v2617 = vunpack.c.0.s8 %v2616
        %v2618 = vlaneseq
        %v2619 = vshrl.u32 %v2618, 7
        %v2620 = vsub.s32 %v2617, %v2619
        %v2621 = vrot.slane %v2613, %v2620
        %v2623 = vunpack.c.l.s4 1983009808
        %v2624 = vunpack.c.0.s8 %v2623
        %v2625 = vlaneseq
        %v2626 = vshrl.u32 %v2625, 7
        %v2627 = vsub.s32 %v2624, %v2626
        %v2628 = vrot.slane %v2614, %v2627
        %v2629 = vcombine.high %v1649, %v1513
        %v2631 = vunpack.c.l.s4 1983009808
        %v2632 = vunpack.c.0.s8 %v2631
        %v2633 = vlaneseq
        %v2634 = vshrl.u32 %v2633, 7
        %v2635 = vsub.s32 %v2632, %v2634
        %v2636 = vrot.slane %v1649, %v2635
        %v2638 = vunpack.c.l.s4 1983009808
        %v2639 = vunpack.c.0.s8 %v2638
        %v2640 = vlaneseq
        %v2641 = vshrl.u32 %v2640, 7
        %v2642 = vsub.s32 %v2639, %v2641
        %v2643 = vrot.slane %v2629, %v2642
        %v2644 = vcombine.high %v1657, %v1513
        %v2646 = vunpack.c.l.s4 1983009808
        %v2647 = vunpack.c.0.s8 %v2646
        %v2648 = vlaneseq
        %v2649 = vshrl.u32 %v2648, 7
        %v2650 = vsub.s32 %v2647, %v2649
        %v2651 = vrot.slane %v1657, %v2650
        %v2653 = vunpack.c.l.s4 1983009808
        %v2654 = vunpack.c.0.s8 %v2653
        %v2655 = vlaneseq
        %v2656 = vshrl.u32 %v2655, 7
        %v2657 = vsub.s32 %v2654, %v2656
        %v2658 = vrot.slane %v2644, %v2657
        %v2659 = vcombine.low %v2605, %v2621
        %v2660 = vcombine.high %v2605, %v2621
        %v2662 = vunpack.c.l.s4 1934713408
        %v2663 = vunpack.c.0.s8 %v2662
        %v2664 = vlaneseq
        %v2665 = vshrl.u32 %v2664, 7
        %v2666 = vsub.s32 %v2663, %v2665
        %v2667 = vrot.slane %v2659, %v2666
        %v2669 = vunpack.c.l.s4 1934713408
        %v2670 = vunpack.c.0.s8 %v2669
        %v2671 = vlaneseq
        %v2672 = vshrl.u32 %v2671, 7
        %v2673 = vsub.s32 %v2670, %v2672
        %v2674 = vrot.slane %v2660, %v2673
        %v2675 = vcombine.low %v2612, %v2628
        %v2676 = vcombine.high %v2612, %v2628
        %v2678 = vunpack.c.l.s4 1934713408
        %v2679 = vunpack.c.0.s8 %v2678
        %v2680 = vlaneseq
        %v2681 = vshrl.u32 %v2680, 7
        %v2682 = vsub.s32 %v2679, %v2681
        %v2683 = vrot.slane %v2675, %v2682
        %v2685 = vunpack.c.l.s4 1934713408
        %v2686 = vunpack.c.0.s8 %v2685
        %v2687 = vlaneseq
        %v2688 = vshrl.u32 %v2687, 7
        %v2689 = vsub.s32 %v2686, %v2688
        %v2690 = vrot.slane %v2676, %v2689
        %v2691 = vcombine.low %v2636, %v2651
        %v2692 = vcombine.high %v2636, %v2651
        %v2694 = vunpack.c.l.s4 1934713408
        %v2695 = vunpack.c.0.s8 %v2694
        %v2696 = vlaneseq
        %v2697 = vshrl.u32 %v2696, 7
        %v2698 = vsub.s32 %v2695, %v2697
        %v2699 = vrot.slane %v2691, %v2698
        %v2701 = vunpack.c.l.s4 1934713408
        %v2702 = vunpack.c.0.s8 %v2701
        %v2703 = vlaneseq
        %v2704 = vshrl.u32 %v2703, 7
        %v2705 = vsub.s32 %v2702, %v2704
        %v2706 = vrot.slane %v2692, %v2705
        %v2707 = vcombine.low %v2643, %v2658
        %v2708 = vcombine.high %v2643, %v2658
        %v2710 = vunpack.c.l.s4 1934713408
        %v2711 = vunpack.c.0.s8 %v2710
        %v2712 = vlaneseq
        %v2713 = vshrl.u32 %v2712, 7
        %v2714 = vsub.s32 %v2711, %v2713
        %v2715 = vrot.slane %v2707, %v2714
        %v2717 = vunpack.c.l.s4 1934713408
        %v2718 = vunpack.c.0.s8 %v2717
        %v2719 = vlaneseq
        %v2720 = vshrl.u32 %v2719, 7
        %v2721 = vsub.s32 %v2718, %v2720
        %v2722 = vrot.slane %v2708, %v2721
        %v2723 = vcombine.low %v2667, %v2699
        %v2724 = vcombine.high %v2667, %v2699
        %v2725 = vcombine.low %v2674, %v2706
        %v2726 = vcombine.high %v2674, %v2706
        %v2727 = vcombine.low %v2683, %v2715
        %v2728 = vcombine.high %v2683, %v2715
        %v2729 = vcombine.low %v2690, %v2722
        %v2730 = vcombine.high %v2690, %v2722
        %v2731 = vcombine.low %v1785, %v1787
        %v2732 = vcombine.high %v1785, %v1787
        %v2734 = vunpack.c.l.s4 1983009808
        %v2735 = vunpack.c.0.s8 %v2734
        %v2736 = vlaneseq
        %v2737 = vshrl.u32 %v2736, 7
        %v2738 = vsub.s32 %v2735, %v2737
        %v2739 = vrot.slane %v2731, %v2738
        %v2741 = vunpack.c.l.s4 1983009808
        %v2742 = vunpack.c.0.s8 %v2741
        %v2743 = vlaneseq
        %v2744 = vshrl.u32 %v2743, 7
        %v2745 = vsub.s32 %v2742, %v2744
        %v2746 = vrot.slane %v2732, %v2745
        %v2747 = vcombine.low %v1786, %v1788
        %v2748 = vcombine.high %v1786, %v1788
        %v2750 = vunpack.c.l.s4 1983009808
        %v2751 = vunpack.c.0.s8 %v2750
        %v2752 = vlaneseq
        %v2753 = vshrl.u32 %v2752, 7
        %v2754 = vsub.s32 %v2751, %v2753
        %v2755 = vrot.slane %v2747, %v2754
        %v2757 = vunpack.c.l.s4 1983009808
        %v2758 = vunpack.c.0.s8 %v2757
        %v2759 = vlaneseq
        %v2760 = vshrl.u32 %v2759, 7
        %v2761 = vsub.s32 %v2758, %v2760
        %v2762 = vrot.slane %v2748, %v2761
        %v2763 = vcombine.low %v1789, %v1791
        %v2764 = vcombine.high %v1789, %v1791
        %v2766 = vunpack.c.l.s4 1983009808
        %v2767 = vunpack.c.0.s8 %v2766
        %v2768 = vlaneseq
        %v2769 = vshrl.u32 %v2768, 7
        %v2770 = vsub.s32 %v2767, %v2769
        %v2771 = vrot.slane %v2763, %v2770
        %v2773 = vunpack.c.l.s4 1983009808
        %v2774 = vunpack.c.0.s8 %v2773
        %v2775 = vlaneseq
        %v2776 = vshrl.u32 %v2775, 7
        %v2777 = vsub.s32 %v2774, %v2776
        %v2778 = vrot.slane %v2764, %v2777
        %v2779 = vcombine.low %v1790, %v1792
        %v2780 = vcombine.high %v1790, %v1792
        %v2782 = vunpack.c.l.s4 1983009808
        %v2783 = vunpack.c.0.s8 %v2782
        %v2784 = vlaneseq
        %v2785 = vshrl.u32 %v2784, 7
        %v2786 = vsub.s32 %v2783, %v2785
        %v2787 = vrot.slane %v2779, %v2786
        %v2789 = vunpack.c.l.s4 1983009808
        %v2790 = vunpack.c.0.s8 %v2789
        %v2791 = vlaneseq
        %v2792 = vshrl.u32 %v2791, 7
        %v2793 = vsub.s32 %v2790, %v2792
        %v2794 = vrot.slane %v2780, %v2793
        %v2795 = vcombine.low %v2739, %v2755
        %v2796 = vcombine.high %v2739, %v2755
        %v2798 = vunpack.c.l.s4 1934713408
        %v2799 = vunpack.c.0.s8 %v2798
        %v2800 = vlaneseq
        %v2801 = vshrl.u32 %v2800, 7
        %v2802 = vsub.s32 %v2799, %v2801
        %v2803 = vrot.slane %v2795, %v2802
        %v2805 = vunpack.c.l.s4 1934713408
        %v2806 = vunpack.c.0.s8 %v2805
        %v2807 = vlaneseq
        %v2808 = vshrl.u32 %v2807, 7
        %v2809 = vsub.s32 %v2806, %v2808
        %v2810 = vrot.slane %v2796, %v2809
        %v2811 = vcombine.low %v2746, %v2762
        %v2813 = vunpack.c.l.s4 1934713408
        %v2814 = vunpack.c.0.s8 %v2813
        %v2815 = vlaneseq
        %v2816 = vshrl.u32 %v2815, 7
        %v2817 = vsub.s32 %v2814, %v2816
        %v2818 = vrot.slane %v2811, %v2817
        %v2819 = vcombine.low %v2771, %v2787
        %v2820 = vcombine.high %v2771, %v2787
        %v2822 = vunpack.c.l.s4 1934713408
        %v2823 = vunpack.c.0.s8 %v2822
        %v2824 = vlaneseq
        %v2825 = vshrl.u32 %v2824, 7
        %v2826 = vsub.s32 %v2823, %v2825
        %v2827 = vrot.slane %v2819, %v2826
        %v2829 = vunpack.c.l.s4 1934713408
        %v2830 = vunpack.c.0.s8 %v2829
        %v2831 = vlaneseq
        %v2832 = vshrl.u32 %v2831, 7
        %v2833 = vsub.s32 %v2830, %v2832
        %v2834 = vrot.slane %v2820, %v2833
        %v2835 = vcombine.low %v2778, %v2794
        %v2837 = vunpack.c.l.s4 1934713408
        %v2838 = vunpack.c.0.s8 %v2837
        %v2839 = vlaneseq
        %v2840 = vshrl.u32 %v2839, 7
        %v2841 = vsub.s32 %v2838, %v2840
        %v2842 = vrot.slane %v2835, %v2841
        %v2843 = vcombine.low %v2803, %v2827
        %v2844 = vcombine.high %v2803, %v2827
        %v2845 = vcombine.low %v2810, %v2834
        %v2846 = vcombine.high %v2810, %v2834
        %v2847 = vcombine.low %v2818, %v2842
        %v2848 = vcombine.high %v2818, %v2842
        %v2849 = vcombine.low %v1919, %v1921
        %v2850 = vcombine.high %v1919, %v1921
        %v2852 = vunpack.c.l.s4 1983009808
        %v2853 = vunpack.c.0.s8 %v2852
        %v2854 = vlaneseq
        %v2855 = vshrl.u32 %v2854, 7
        %v2856 = vsub.s32 %v2853, %v2855
        %v2857 = vrot.slane %v2849, %v2856
        %v2859 = vunpack.c.l.s4 1983009808
        %v2860 = vunpack.c.0.s8 %v2859
        %v2861 = vlaneseq
        %v2862 = vshrl.u32 %v2861, 7
        %v2863 = vsub.s32 %v2860, %v2862
        %v2864 = vrot.slane %v2850, %v2863
        %v2865 = vcombine.low %v1920, %v1922
        %v2866 = vcombine.high %v1920, %v1922
        %v2868 = vunpack.c.l.s4 1983009808
        %v2869 = vunpack.c.0.s8 %v2868
        %v2870 = vlaneseq
        %v2871 = vshrl.u32 %v2870, 7
        %v2872 = vsub.s32 %v2869, %v2871
        %v2873 = vrot.slane %v2865, %v2872
        %v2875 = vunpack.c.l.s4 1983009808
        %v2876 = vunpack.c.0.s8 %v2875
        %v2877 = vlaneseq
        %v2878 = vshrl.u32 %v2877, 7
        %v2879 = vsub.s32 %v2876, %v2878
        %v2880 = vrot.slane %v2866, %v2879
        %v2881 = vcombine.low %v1923, %v1925
        %v2882 = vcombine.high %v1923, %v1925
        %v2884 = vunpack.c.l.s4 1983009808
        %v2885 = vunpack.c.0.s8 %v2884
        %v2886 = vlaneseq
        %v2887 = vshrl.u32 %v2886, 7
        %v2888 = vsub.s32 %v2885, %v2887
        %v2889 = vrot.slane %v2881, %v2888
        %v2891 = vunpack.c.l.s4 1983009808
        %v2892 = vunpack.c.0.s8 %v2891
        %v2893 = vlaneseq
        %v2894 = vshrl.u32 %v2893, 7
        %v2895 = vsub.s32 %v2892, %v2894
        %v2896 = vrot.slane %v2882, %v2895
        %v2897 = vcombine.low %v1924, %v1926
        %v2898 = vcombine.high %v1924, %v1926
        %v2900 = vunpack.c.l.s4 1983009808
        %v2901 = vunpack.c.0.s8 %v2900
        %v2902 = vlaneseq
        %v2903 = vshrl.u32 %v2902, 7
        %v2904 = vsub.s32 %v2901, %v2903
        %v2905 = vrot.slane %v2897, %v2904
        %v2907 = vunpack.c.l.s4 1983009808
        %v2908 = vunpack.c.0.s8 %v2907
        %v2909 = vlaneseq
        %v2910 = vshrl.u32 %v2909, 7
        %v2911 = vsub.s32 %v2908, %v2910
        %v2912 = vrot.slane %v2898, %v2911
        %v2913 = vcombine.low %v2857, %v2873
        %v2914 = vcombine.high %v2857, %v2873
        %v2916 = vunpack.c.l.s4 1934713408
        %v2917 = vunpack.c.0.s8 %v2916
        %v2918 = vlaneseq
        %v2919 = vshrl.u32 %v2918, 7
        %v2920 = vsub.s32 %v2917, %v2919
        %v2921 = vrot.slane %v2913, %v2920
        %v2923 = vunpack.c.l.s4 1934713408
        %v2924 = vunpack.c.0.s8 %v2923
        %v2925 = vlaneseq
        %v2926 = vshrl.u32 %v2925, 7
        %v2927 = vsub.s32 %v2924, %v2926
        %v2928 = vrot.slane %v2914, %v2927
        %v2929 = vcombine.low %v2864, %v2880
        %v2931 = vunpack.c.l.s4 1934713408
        %v2932 = vunpack.c.0.s8 %v2931
        %v2933 = vlaneseq
        %v2934 = vshrl.u32 %v2933, 7
        %v2935 = vsub.s32 %v2932, %v2934
        %v2936 = vrot.slane %v2929, %v2935
        %v2937 = vcombine.low %v2889, %v2905
        %v2938 = vcombine.high %v2889, %v2905
        %v2940 = vunpack.c.l.s4 1934713408
        %v2941 = vunpack.c.0.s8 %v2940
        %v2942 = vlaneseq
        %v2943 = vshrl.u32 %v2942, 7
        %v2944 = vsub.s32 %v2941, %v2943
        %v2945 = vrot.slane %v2937, %v2944
        %v2947 = vunpack.c.l.s4 1934713408
        %v2948 = vunpack.c.0.s8 %v2947
        %v2949 = vlaneseq
        %v2950 = vshrl.u32 %v2949, 7
        %v2951 = vsub.s32 %v2948, %v2950
        %v2952 = vrot.slane %v2938, %v2951
        %v2953 = vcombine.low %v2896, %v2912
        %v2955 = vunpack.c.l.s4 1934713408
        %v2956 = vunpack.c.0.s8 %v2955
        %v2957 = vlaneseq
        %v2958 = vshrl.u32 %v2957, 7
        %v2959 = vsub.s32 %v2956, %v2958
        %v2960 = vrot.slane %v2953, %v2959
        %v2961 = vcombine.low %v2921, %v2945
        %v2962 = vcombine.high %v2921, %v2945
        %v2963 = vcombine.low %v2928, %v2952
        %v2964 = vcombine.high %v2928, %v2952
        %v2965 = vcombine.low %v2936, %v2960
        %v2966 = vcombine.high %v2936, %v2960
        %v2967 = vcombine.low %v2053, %v2055
        %v2968 = vcombine.high %v2053, %v2055
        %v2970 = vunpack.c.l.s4 1983009808
        %v2971 = vunpack.c.0.s8 %v2970
        %v2972 = vlaneseq
        %v2973 = vshrl.u32 %v2972, 7
        %v2974 = vsub.s32 %v2971, %v2973
        %v2975 = vrot.slane %v2967, %v2974
        %v2977 = vunpack.c.l.s4 1983009808
        %v2978 = vunpack.c.0.s8 %v2977
        %v2979 = vlaneseq
        %v2980 = vshrl.u32 %v2979, 7
        %v2981 = vsub.s32 %v2978, %v2980
        %v2982 = vrot.slane %v2968, %v2981
        %v2983 = vcombine.low %v2054, %v2056
        %v2984 = vcombine.high %v2054, %v2056
        %v2986 = vunpack.c.l.s4 1983009808
        %v2987 = vunpack.c.0.s8 %v2986
        %v2988 = vlaneseq
        %v2989 = vshrl.u32 %v2988, 7
        %v2990 = vsub.s32 %v2987, %v2989
        %v2991 = vrot.slane %v2983, %v2990
        %v2993 = vunpack.c.l.s4 1983009808
        %v2994 = vunpack.c.0.s8 %v2993
        %v2995 = vlaneseq
        %v2996 = vshrl.u32 %v2995, 7
        %v2997 = vsub.s32 %v2994, %v2996
        %v2998 = vrot.slane %v2984, %v2997
        %v2999 = vcombine.low %v2057, %v2059
        %v3000 = vcombine.high %v2057, %v2059
        %v3002 = vunpack.c.l.s4 1983009808
        %v3003 = vunpack.c.0.s8 %v3002
        %v3004 = vlaneseq
        %v3005 = vshrl.u32 %v3004, 7
        %v3006 = vsub.s32 %v3003, %v3005
        %v3007 = vrot.slane %v2999, %v3006
        %v3009 = vunpack.c.l.s4 1983009808
        %v3010 = vunpack.c.0.s8 %v3009
        %v3011 = vlaneseq
        %v3012 = vshrl.u32 %v3011, 7
        %v3013 = vsub.s32 %v3010, %v3012
        %v3014 = vrot.slane %v3000, %v3013
        %v3015 = vcombine.low %v2058, %v2060
        %v3016 = vcombine.high %v2058, %v2060
        %v3018 = vunpack.c.l.s4 1983009808
        %v3019 = vunpack.c.0.s8 %v3018
        %v3020 = vlaneseq
        %v3021 = vshrl.u32 %v3020, 7
        %v3022 = vsub.s32 %v3019, %v3021
        %v3023 = vrot.slane %v3015, %v3022
        %v3025 = vunpack.c.l.s4 1983009808
        %v3026 = vunpack.c.0.s8 %v3025
        %v3027 = vlaneseq
        %v3028 = vshrl.u32 %v3027, 7
        %v3029 = vsub.s32 %v3026, %v3028
        %v3030 = vrot.slane %v3016, %v3029
        %v3031 = vcombine.low %v2975, %v2991
        %v3032 = vcombine.high %v2975, %v2991
        %v3034 = vunpack.c.l.s4 1934713408
        %v3035 = vunpack.c.0.s8 %v3034
        %v3036 = vlaneseq
        %v3037 = vshrl.u32 %v3036, 7
        %v3038 = vsub.s32 %v3035, %v3037
        %v3039 = vrot.slane %v3031, %v3038
        %v3041 = vunpack.c.l.s4 1934713408
        %v3042 = vunpack.c.0.s8 %v3041
        %v3043 = vlaneseq
        %v3044 = vshrl.u32 %v3043, 7
        %v3045 = vsub.s32 %v3042, %v3044
        %v3046 = vrot.slane %v3032, %v3045
        %v3047 = vcombine.low %v2982, %v2998
        %v3049 = vunpack.c.l.s4 1934713408
        %v3050 = vunpack.c.0.s8 %v3049
        %v3051 = vlaneseq
        %v3052 = vshrl.u32 %v3051, 7
        %v3053 = vsub.s32 %v3050, %v3052
        %v3054 = vrot.slane %v3047, %v3053
        %v3055 = vcombine.low %v3007, %v3023
        %v3056 = vcombine.high %v3007, %v3023
        %v3058 = vunpack.c.l.s4 1934713408
        %v3059 = vunpack.c.0.s8 %v3058
        %v3060 = vlaneseq
        %v3061 = vshrl.u32 %v3060, 7
        %v3062 = vsub.s32 %v3059, %v3061
        %v3063 = vrot.slane %v3055, %v3062
        %v3065 = vunpack.c.l.s4 1934713408
        %v3066 = vunpack.c.0.s8 %v3065
        %v3067 = vlaneseq
        %v3068 = vshrl.u32 %v3067, 7
        %v3069 = vsub.s32 %v3066, %v3068
        %v3070 = vrot.slane %v3056, %v3069
        %v3071 = vcombine.low %v3014, %v3030
        %v3073 = vunpack.c.l.s4 1934713408
        %v3074 = vunpack.c.0.s8 %v3073
        %v3075 = vlaneseq
        %v3076 = vshrl.u32 %v3075, 7
        %v3077 = vsub.s32 %v3074, %v3076
        %v3078 = vrot.slane %v3071, %v3077
        %v3079 = vcombine.low %v3039, %v3063
        %v3080 = vcombine.high %v3039, %v3063
        %v3081 = vcombine.low %v3046, %v3070
        %v3082 = vcombine.high %v3046, %v3070
        %v3083 = vcombine.low %v3054, %v3078
        %v3084 = vcombine.high %v3054, %v3078
        %v3085 = vcombine.low %v2187, %v2189
        %v3086 = vcombine.high %v2187, %v2189
        %v3088 = vunpack.c.l.s4 1983009808
        %v3089 = vunpack.c.0.s8 %v3088
        %v3090 = vlaneseq
        %v3091 = vshrl.u32 %v3090, 7
        %v3092 = vsub.s32 %v3089, %v3091
        %v3093 = vrot.slane %v3085, %v3092
        %v3095 = vunpack.c.l.s4 1983009808
        %v3096 = vunpack.c.0.s8 %v3095
        %v3097 = vlaneseq
        %v3098 = vshrl.u32 %v3097, 7
        %v3099 = vsub.s32 %v3096, %v3098
        %v3100 = vrot.slane %v3086, %v3099
        %v3101 = vcombine.low %v2188, %v2190
        %v3102 = vcombine.high %v2188, %v2190
        %v3104 = vunpack.c.l.s4 1983009808
        %v3105 = vunpack.c.0.s8 %v3104
        %v3106 = vlaneseq
        %v3107 = vshrl.u32 %v3106, 7
        %v3108 = vsub.s32 %v3105, %v3107
        %v3109 = vrot.slane %v3101, %v3108
        %v3111 = vunpack.c.l.s4 1983009808
        %v3112 = vunpack.c.0.s8 %v3111
        %v3113 = vlaneseq
        %v3114 = vshrl.u32 %v3113, 7
        %v3115 = vsub.s32 %v3112, %v3114
        %v3116 = vrot.slane %v3102, %v3115
        %v3117 = vcombine.low %v2191, %v2193
        %v3118 = vcombine.high %v2191, %v2193
        %v3120 = vunpack.c.l.s4 1983009808
        %v3121 = vunpack.c.0.s8 %v3120
        %v3122 = vlaneseq
        %v3123 = vshrl.u32 %v3122, 7
        %v3124 = vsub.s32 %v3121, %v3123
        %v3125 = vrot.slane %v3117, %v3124
        %v3127 = vunpack.c.l.s4 1983009808
        %v3128 = vunpack.c.0.s8 %v3127
        %v3129 = vlaneseq
        %v3130 = vshrl.u32 %v3129, 7
        %v3131 = vsub.s32 %v3128, %v3130
        %v3132 = vrot.slane %v3118, %v3131
        %v3133 = vcombine.low %v2192, %v2194
        %v3134 = vcombine.high %v2192, %v2194
        %v3136 = vunpack.c.l.s4 1983009808
        %v3137 = vunpack.c.0.s8 %v3136
        %v3138 = vlaneseq
        %v3139 = vshrl.u32 %v3138, 7
        %v3140 = vsub.s32 %v3137, %v3139
        %v3141 = vrot.slane %v3133, %v3140
        %v3143 = vunpack.c.l.s4 1983009808
        %v3144 = vunpack.c.0.s8 %v3143
        %v3145 = vlaneseq
        %v3146 = vshrl.u32 %v3145, 7
        %v3147 = vsub.s32 %v3144, %v3146
        %v3148 = vrot.slane %v3134, %v3147
        %v3149 = vcombine.low %v3093, %v3109
        %v3150 = vcombine.high %v3093, %v3109
        %v3152 = vunpack.c.l.s4 1934713408
        %v3153 = vunpack.c.0.s8 %v3152
        %v3154 = vlaneseq
        %v3155 = vshrl.u32 %v3154, 7
        %v3156 = vsub.s32 %v3153, %v3155
        %v3157 = vrot.slane %v3149, %v3156
        %v3159 = vunpack.c.l.s4 1934713408
        %v3160 = vunpack.c.0.s8 %v3159
        %v3161 = vlaneseq
        %v3162 = vshrl.u32 %v3161, 7
        %v3163 = vsub.s32 %v3160, %v3162
        %v3164 = vrot.slane %v3150, %v3163
        %v3165 = vcombine.low %v3100, %v3116
        %v3167 = vunpack.c.l.s4 1934713408
        %v3168 = vunpack.c.0.s8 %v3167
        %v3169 = vlaneseq
        %v3170 = vshrl.u32 %v3169, 7
        %v3171 = vsub.s32 %v3168, %v3170
        %v3172 = vrot.slane %v3165, %v3171
        %v3173 = vcombine.low %v3125, %v3141
        %v3174 = vcombine.high %v3125, %v3141
        %v3176 = vunpack.c.l.s4 1934713408
        %v3177 = vunpack.c.0.s8 %v3176
        %v3178 = vlaneseq
        %v3179 = vshrl.u32 %v3178, 7
        %v3180 = vsub.s32 %v3177, %v3179
        %v3181 = vrot.slane %v3173, %v3180
        %v3183 = vunpack.c.l.s4 1934713408
        %v3184 = vunpack.c.0.s8 %v3183
        %v3185 = vlaneseq
        %v3186 = vshrl.u32 %v3185, 7
        %v3187 = vsub.s32 %v3184, %v3186
        %v3188 = vrot.slane %v3174, %v3187
        %v3189 = vcombine.low %v3132, %v3148
        %v3191 = vunpack.c.l.s4 1934713408
        %v3192 = vunpack.c.0.s8 %v3191
        %v3193 = vlaneseq
        %v3194 = vshrl.u32 %v3193, 7
        %v3195 = vsub.s32 %v3192, %v3194
        %v3196 = vrot.slane %v3189, %v3195
        %v3197 = vcombine.low %v3157, %v3181
        %v3198 = vcombine.high %v3157, %v3181
        %v3199 = vcombine.low %v3164, %v3188
        %v3200 = vcombine.high %v3164, %v3188
        %v3201 = vcombine.low %v3172, %v3196
        %v3202 = vcombine.high %v3172, %v3196
        %v3203 = vcombine.low %v2321, %v2323
        %v3204 = vcombine.high %v2321, %v2323
        %v3206 = vunpack.c.l.s4 1983009808
        %v3207 = vunpack.c.0.s8 %v3206
        %v3208 = vlaneseq
        %v3209 = vshrl.u32 %v3208, 7
        %v3210 = vsub.s32 %v3207, %v3209
        %v3211 = vrot.slane %v3203, %v3210
        %v3213 = vunpack.c.l.s4 1983009808
        %v3214 = vunpack.c.0.s8 %v3213
        %v3215 = vlaneseq
        %v3216 = vshrl.u32 %v3215, 7
        %v3217 = vsub.s32 %v3214, %v3216
        %v3218 = vrot.slane %v3204, %v3217
        %v3219 = vcombine.low %v2322, %v2324
        %v3220 = vcombine.high %v2322, %v2324
        %v3222 = vunpack.c.l.s4 1983009808
        %v3223 = vunpack.c.0.s8 %v3222
        %v3224 = vlaneseq
        %v3225 = vshrl.u32 %v3224, 7
        %v3226 = vsub.s32 %v3223, %v3225
        %v3227 = vrot.slane %v3219, %v3226
        %v3229 = vunpack.c.l.s4 1983009808
        %v3230 = vunpack.c.0.s8 %v3229
        %v3231 = vlaneseq
        %v3232 = vshrl.u32 %v3231, 7
        %v3233 = vsub.s32 %v3230, %v3232
        %v3234 = vrot.slane %v3220, %v3233
        %v3235 = vcombine.low %v2325, %v2327
        %v3236 = vcombine.high %v2325, %v2327
        %v3238 = vunpack.c.l.s4 1983009808
        %v3239 = vunpack.c.0.s8 %v3238
        %v3240 = vlaneseq
        %v3241 = vshrl.u32 %v3240, 7
        %v3242 = vsub.s32 %v3239, %v3241
        %v3243 = vrot.slane %v3235, %v3242
        %v3245 = vunpack.c.l.s4 1983009808
        %v3246 = vunpack.c.0.s8 %v3245
        %v3247 = vlaneseq
        %v3248 = vshrl.u32 %v3247, 7
        %v3249 = vsub.s32 %v3246, %v3248
        %v3250 = vrot.slane %v3236, %v3249
        %v3251 = vcombine.low %v2326, %v2328
        %v3252 = vcombine.high %v2326, %v2328
        %v3254 = vunpack.c.l.s4 1983009808
        %v3255 = vunpack.c.0.s8 %v3254
        %v3256 = vlaneseq
        %v3257 = vshrl.u32 %v3256, 7
        %v3258 = vsub.s32 %v3255, %v3257
        %v3259 = vrot.slane %v3251, %v3258
        %v3261 = vunpack.c.l.s4 1983009808
        %v3262 = vunpack.c.0.s8 %v3261
        %v3263 = vlaneseq
        %v3264 = vshrl.u32 %v3263, 7
        %v3265 = vsub.s32 %v3262, %v3264
        %v3266 = vrot.slane %v3252, %v3265
        %v3267 = vcombine.low %v3211, %v3227
        %v3268 = vcombine.high %v3211, %v3227
        %v3270 = vunpack.c.l.s4 1934713408
        %v3271 = vunpack.c.0.s8 %v3270
        %v3272 = vlaneseq
        %v3273 = vshrl.u32 %v3272, 7
        %v3274 = vsub.s32 %v3271, %v3273
        %v3275 = vrot.slane %v3267, %v3274
        %v3277 = vunpack.c.l.s4 1934713408
        %v3278 = vunpack.c.0.s8 %v3277
        %v3279 = vlaneseq
        %v3280 = vshrl.u32 %v3279, 7
        %v3281 = vsub.s32 %v3278, %v3280
        %v3282 = vrot.slane %v3268, %v3281
        %v3283 = vcombine.low %v3218, %v3234
        %v3285 = vunpack.c.l.s4 1934713408
        %v3286 = vunpack.c.0.s8 %v3285
        %v3287 = vlaneseq
        %v3288 = vshrl.u32 %v3287, 7
        %v3289 = vsub.s32 %v3286, %v3288
        %v3290 = vrot.slane %v3283, %v3289
        %v3291 = vcombine.low %v3243, %v3259
        %v3292 = vcombine.high %v3243, %v3259
        %v3294 = vunpack.c.l.s4 1934713408
        %v3295 = vunpack.c.0.s8 %v3294
        %v3296 = vlaneseq
        %v3297 = vshrl.u32 %v3296, 7
        %v3298 = vsub.s32 %v3295, %v3297
        %v3299 = vrot.slane %v3291, %v3298
        %v3301 = vunpack.c.l.s4 1934713408
        %v3302 = vunpack.c.0.s8 %v3301
        %v3303 = vlaneseq
        %v3304 = vshrl.u32 %v3303, 7
        %v3305 = vsub.s32 %v3302, %v3304
        %v3306 = vrot.slane %v3292, %v3305
        %v3307 = vcombine.low %v3250, %v3266
        %v3309 = vunpack.c.l.s4 1934713408
        %v3310 = vunpack.c.0.s8 %v3309
        %v3311 = vlaneseq
        %v3312 = vshrl.u32 %v3311, 7
        %v3313 = vsub.s32 %v3310, %v3312
        %v3314 = vrot.slane %v3307, %v3313
        %v3315 = vcombine.low %v3275, %v3299
        %v3316 = vcombine.high %v3275, %v3299
        %v3317 = vcombine.low %v3282, %v3306
        %v3318 = vcombine.high %v3282, %v3306
        %v3319 = vcombine.low %v3290, %v3314
        %v3320 = vcombine.high %v3290, %v3314
        %v3321 = vcombine.low %v2455, %v2457
        %v3322 = vcombine.high %v2455, %v2457
        %v3324 = vunpack.c.l.s4 1983009808
        %v3325 = vunpack.c.0.s8 %v3324
        %v3326 = vlaneseq
        %v3327 = vshrl.u32 %v3326, 7
        %v3328 = vsub.s32 %v3325, %v3327
        %v3329 = vrot.slane %v3321, %v3328
        %v3331 = vunpack.c.l.s4 1983009808
        %v3332 = vunpack.c.0.s8 %v3331
        %v3333 = vlaneseq
        %v3334 = vshrl.u32 %v3333, 7
        %v3335 = vsub.s32 %v3332, %v3334
        %v3336 = vrot.slane %v3322, %v3335
        %v3337 = vcombine.low %v2456, %v2458
        %v3338 = vcombine.high %v2456, %v2458
        %v3340 = vunpack.c.l.s4 1983009808
        %v3341 = vunpack.c.0.s8 %v3340
        %v3342 = vlaneseq
        %v3343 = vshrl.u32 %v3342, 7
        %v3344 = vsub.s32 %v3341, %v3343
        %v3345 = vrot.slane %v3337, %v3344
        %v3347 = vunpack.c.l.s4 1983009808
        %v3348 = vunpack.c.0.s8 %v3347
        %v3349 = vlaneseq
        %v3350 = vshrl.u32 %v3349, 7
        %v3351 = vsub.s32 %v3348, %v3350
        %v3352 = vrot.slane %v3338, %v3351
        %v3353 = vcombine.low %v2459, %v2461
        %v3354 = vcombine.high %v2459, %v2461
        %v3356 = vunpack.c.l.s4 1983009808
        %v3357 = vunpack.c.0.s8 %v3356
        %v3358 = vlaneseq
        %v3359 = vshrl.u32 %v3358, 7
        %v3360 = vsub.s32 %v3357, %v3359
        %v3361 = vrot.slane %v3353, %v3360
        %v3363 = vunpack.c.l.s4 1983009808
        %v3364 = vunpack.c.0.s8 %v3363
        %v3365 = vlaneseq
        %v3366 = vshrl.u32 %v3365, 7
        %v3367 = vsub.s32 %v3364, %v3366
        %v3368 = vrot.slane %v3354, %v3367
        %v3369 = vcombine.low %v2460, %v2462
        %v3370 = vcombine.high %v2460, %v2462
        %v3372 = vunpack.c.l.s4 1983009808
        %v3373 = vunpack.c.0.s8 %v3372
        %v3374 = vlaneseq
        %v3375 = vshrl.u32 %v3374, 7
        %v3376 = vsub.s32 %v3373, %v3375
        %v3377 = vrot.slane %v3369, %v3376
        %v3379 = vunpack.c.l.s4 1983009808
        %v3380 = vunpack.c.0.s8 %v3379
        %v3381 = vlaneseq
        %v3382 = vshrl.u32 %v3381, 7
        %v3383 = vsub.s32 %v3380, %v3382
        %v3384 = vrot.slane %v3370, %v3383
        %v3385 = vcombine.low %v3329, %v3345
        %v3386 = vcombine.high %v3329, %v3345
        %v3388 = vunpack.c.l.s4 1934713408
        %v3389 = vunpack.c.0.s8 %v3388
        %v3390 = vlaneseq
        %v3391 = vshrl.u32 %v3390, 7
        %v3392 = vsub.s32 %v3389, %v3391
        %v3393 = vrot.slane %v3385, %v3392
        %v3395 = vunpack.c.l.s4 1934713408
        %v3396 = vunpack.c.0.s8 %v3395
        %v3397 = vlaneseq
        %v3398 = vshrl.u32 %v3397, 7
        %v3399 = vsub.s32 %v3396, %v3398
        %v3400 = vrot.slane %v3386, %v3399
        %v3401 = vcombine.low %v3336, %v3352
        %v3403 = vunpack.c.l.s4 1934713408
        %v3404 = vunpack.c.0.s8 %v3403
        %v3405 = vlaneseq
        %v3406 = vshrl.u32 %v3405, 7
        %v3407 = vsub.s32 %v3404, %v3406
        %v3408 = vrot.slane %v3401, %v3407
        %v3409 = vcombine.low %v3361, %v3377
        %v3410 = vcombine.high %v3361, %v3377
        %v3412 = vunpack.c.l.s4 1934713408
        %v3413 = vunpack.c.0.s8 %v3412
        %v3414 = vlaneseq
        %v3415 = vshrl.u32 %v3414, 7
        %v3416 = vsub.s32 %v3413, %v3415
        %v3417 = vrot.slane %v3409, %v3416
        %v3419 = vunpack.c.l.s4 1934713408
        %v3420 = vunpack.c.0.s8 %v3419
        %v3421 = vlaneseq
        %v3422 = vshrl.u32 %v3421, 7
        %v3423 = vsub.s32 %v3420, %v3422
        %v3424 = vrot.slane %v3410, %v3423
        %v3425 = vcombine.low %v3368, %v3384
        %v3427 = vunpack.c.l.s4 1934713408
        %v3428 = vunpack.c.0.s8 %v3427
        %v3429 = vlaneseq
        %v3430 = vshrl.u32 %v3429, 7
        %v3431 = vsub.s32 %v3428, %v3430
        %v3432 = vrot.slane %v3425, %v3431
        %v3433 = vcombine.low %v3393, %v3417
        %v3434 = vcombine.high %v3393, %v3417
        %v3435 = vcombine.low %v3400, %v3424
        %v3436 = vcombine.high %v3400, %v3424
        %v3437 = vcombine.low %v3408, %v3432
        %v3438 = vcombine.high %v3408, %v3432
        %v3439 = vcombine.low %v2589, %v2591
        %v3440 = vcombine.high %v2589, %v2591
        %v3442 = vunpack.c.l.s4 1983009808
        %v3443 = vunpack.c.0.s8 %v3442
        %v3444 = vlaneseq
        %v3445 = vshrl.u32 %v3444, 7
        %v3446 = vsub.s32 %v3443, %v3445
        %v3447 = vrot.slane %v3439, %v3446
        %v3449 = vunpack.c.l.s4 1983009808
        %v3450 = vunpack.c.0.s8 %v3449
        %v3451 = vlaneseq
        %v3452 = vshrl.u32 %v3451, 7
        %v3453 = vsub.s32 %v3450, %v3452
        %v3454 = vrot.slane %v3440, %v3453
        %v3455 = vcombine.low %v2590, %v2592
        %v3456 = vcombine.high %v2590, %v2592
        %v3458 = vunpack.c.l.s4 1983009808
        %v3459 = vunpack.c.0.s8 %v3458
        %v3460 = vlaneseq
        %v3461 = vshrl.u32 %v3460, 7
        %v3462 = vsub.s32 %v3459, %v3461
        %v3463 = vrot.slane %v3455, %v3462
        %v3465 = vunpack.c.l.s4 1983009808
        %v3466 = vunpack.c.0.s8 %v3465
        %v3467 = vlaneseq
        %v3468 = vshrl.u32 %v3467, 7
        %v3469 = vsub.s32 %v3466, %v3468
        %v3470 = vrot.slane %v3456, %v3469
        %v3471 = vcombine.low %v2593, %v2595
        %v3472 = vcombine.high %v2593, %v2595
        %v3474 = vunpack.c.l.s4 1983009808
        %v3475 = vunpack.c.0.s8 %v3474
        %v3476 = vlaneseq
        %v3477 = vshrl.u32 %v3476, 7
        %v3478 = vsub.s32 %v3475, %v3477
        %v3479 = vrot.slane %v3471, %v3478
        %v3481 = vunpack.c.l.s4 1983009808
        %v3482 = vunpack.c.0.s8 %v3481
        %v3483 = vlaneseq
        %v3484 = vshrl.u32 %v3483, 7
        %v3485 = vsub.s32 %v3482, %v3484
        %v3486 = vrot.slane %v3472, %v3485
        %v3487 = vcombine.low %v2594, %v2596
        %v3488 = vcombine.high %v2594, %v2596
        %v3490 = vunpack.c.l.s4 1983009808
        %v3491 = vunpack.c.0.s8 %v3490
        %v3492 = vlaneseq
        %v3493 = vshrl.u32 %v3492, 7
        %v3494 = vsub.s32 %v3491, %v3493
        %v3495 = vrot.slane %v3487, %v3494
        %v3497 = vunpack.c.l.s4 1983009808
        %v3498 = vunpack.c.0.s8 %v3497
        %v3499 = vlaneseq
        %v3500 = vshrl.u32 %v3499, 7
        %v3501 = vsub.s32 %v3498, %v3500
        %v3502 = vrot.slane %v3488, %v3501
        %v3503 = vcombine.low %v3447, %v3463
        %v3504 = vcombine.high %v3447, %v3463
        %v3506 = vunpack.c.l.s4 1934713408
        %v3507 = vunpack.c.0.s8 %v3506
        %v3508 = vlaneseq
        %v3509 = vshrl.u32 %v3508, 7
        %v3510 = vsub.s32 %v3507, %v3509
        %v3511 = vrot.slane %v3503, %v3510
        %v3513 = vunpack.c.l.s4 1934713408
        %v3514 = vunpack.c.0.s8 %v3513
        %v3515 = vlaneseq
        %v3516 = vshrl.u32 %v3515, 7
        %v3517 = vsub.s32 %v3514, %v3516
        %v3518 = vrot.slane %v3504, %v3517
        %v3519 = vcombine.low %v3454, %v3470
        %v3521 = vunpack.c.l.s4 1934713408
        %v3522 = vunpack.c.0.s8 %v3521
        %v3523 = vlaneseq
        %v3524 = vshrl.u32 %v3523, 7
        %v3525 = vsub.s32 %v3522, %v3524
        %v3526 = vrot.slane %v3519, %v3525
        %v3527 = vcombine.low %v3479, %v3495
        %v3528 = vcombine.high %v3479, %v3495
        %v3530 = vunpack.c.l.s4 1934713408
        %v3531 = vunpack.c.0.s8 %v3530
        %v3532 = vlaneseq
        %v3533 = vshrl.u32 %v3532, 7
        %v3534 = vsub.s32 %v3531, %v3533
        %v3535 = vrot.slane %v3527, %v3534
        %v3537 = vunpack.c.l.s4 1934713408
        %v3538 = vunpack.c.0.s8 %v3537
        %v3539 = vlaneseq
        %v3540 = vshrl.u32 %v3539, 7
        %v3541 = vsub.s32 %v3538, %v3540
        %v3542 = vrot.slane %v3528, %v3541
        %v3543 = vcombine.low %v3486, %v3502
        %v3545 = vunpack.c.l.s4 1934713408
        %v3546 = vunpack.c.0.s8 %v3545
        %v3547 = vlaneseq
        %v3548 = vshrl.u32 %v3547, 7
        %v3549 = vsub.s32 %v3546, %v3548
        %v3550 = vrot.slane %v3543, %v3549
        %v3551 = vcombine.low %v3511, %v3535
        %v3552 = vcombine.high %v3511, %v3535
        %v3553 = vcombine.low %v3518, %v3542
        %v3554 = vcombine.high %v3518, %v3542
        %v3555 = vcombine.low %v3526, %v3550
        %v3556 = vcombine.high %v3526, %v3550
        %v3557 = vcombine.low %v2723, %v2725
        %v3558 = vcombine.high %v2723, %v2725
        %v3560 = vunpack.c.l.s4 1983009808
        %v3561 = vunpack.c.0.s8 %v3560
        %v3562 = vlaneseq
        %v3563 = vshrl.u32 %v3562, 7
        %v3564 = vsub.s32 %v3561, %v3563
        %v3565 = vrot.slane %v3557, %v3564
        %v3567 = vunpack.c.l.s4 1983009808
        %v3568 = vunpack.c.0.s8 %v3567
        %v3569 = vlaneseq
        %v3570 = vshrl.u32 %v3569, 7
        %v3571 = vsub.s32 %v3568, %v3570
        %v3572 = vrot.slane %v3558, %v3571
        %v3573 = vcombine.low %v2724, %v2726
        %v3574 = vcombine.high %v2724, %v2726
        %v3576 = vunpack.c.l.s4 1983009808
        %v3577 = vunpack.c.0.s8 %v3576
        %v3578 = vlaneseq
        %v3579 = vshrl.u32 %v3578, 7
        %v3580 = vsub.s32 %v3577, %v3579
        %v3581 = vrot.slane %v3573, %v3580
        %v3583 = vunpack.c.l.s4 1983009808
        %v3584 = vunpack.c.0.s8 %v3583
        %v3585 = vlaneseq
        %v3586 = vshrl.u32 %v3585, 7
        %v3587 = vsub.s32 %v3584, %v3586
        %v3588 = vrot.slane %v3574, %v3587
        %v3589 = vcombine.low %v2727, %v2729
        %v3590 = vcombine.high %v2727, %v2729
        %v3592 = vunpack.c.l.s4 1983009808
        %v3593 = vunpack.c.0.s8 %v3592
        %v3594 = vlaneseq
        %v3595 = vshrl.u32 %v3594, 7
        %v3596 = vsub.s32 %v3593, %v3595
        %v3597 = vrot.slane %v3589, %v3596
        %v3599 = vunpack.c.l.s4 1983009808
        %v3600 = vunpack.c.0.s8 %v3599
        %v3601 = vlaneseq
        %v3602 = vshrl.u32 %v3601, 7
        %v3603 = vsub.s32 %v3600, %v3602
        %v3604 = vrot.slane %v3590, %v3603
        %v3605 = vcombine.low %v2728, %v2730
        %v3606 = vcombine.high %v2728, %v2730
        %v3608 = vunpack.c.l.s4 1983009808
        %v3609 = vunpack.c.0.s8 %v3608
        %v3610 = vlaneseq
        %v3611 = vshrl.u32 %v3610, 7
        %v3612 = vsub.s32 %v3609, %v3611
        %v3613 = vrot.slane %v3605, %v3612
        %v3615 = vunpack.c.l.s4 1983009808
        %v3616 = vunpack.c.0.s8 %v3615
        %v3617 = vlaneseq
        %v3618 = vshrl.u32 %v3617, 7
        %v3619 = vsub.s32 %v3616, %v3618
        %v3620 = vrot.slane %v3606, %v3619
        %v3621 = vcombine.low %v3565, %v3581
        %v3622 = vcombine.high %v3565, %v3581
        %v3624 = vunpack.c.l.s4 1934713408
        %v3625 = vunpack.c.0.s8 %v3624
        %v3626 = vlaneseq
        %v3627 = vshrl.u32 %v3626, 7
        %v3628 = vsub.s32 %v3625, %v3627
        %v3629 = vrot.slane %v3621, %v3628
        %v3631 = vunpack.c.l.s4 1934713408
        %v3632 = vunpack.c.0.s8 %v3631
        %v3633 = vlaneseq
        %v3634 = vshrl.u32 %v3633, 7
        %v3635 = vsub.s32 %v3632, %v3634
        %v3636 = vrot.slane %v3622, %v3635
        %v3637 = vcombine.low %v3572, %v3588
        %v3639 = vunpack.c.l.s4 1934713408
        %v3640 = vunpack.c.0.s8 %v3639
        %v3641 = vlaneseq
        %v3642 = vshrl.u32 %v3641, 7
        %v3643 = vsub.s32 %v3640, %v3642
        %v3644 = vrot.slane %v3637, %v3643
        %v3645 = vcombine.low %v3597, %v3613
        %v3646 = vcombine.high %v3597, %v3613
        %v3648 = vunpack.c.l.s4 1934713408
        %v3649 = vunpack.c.0.s8 %v3648
        %v3650 = vlaneseq
        %v3651 = vshrl.u32 %v3650, 7
        %v3652 = vsub.s32 %v3649, %v3651
        %v3653 = vrot.slane %v3645, %v3652
        %v3655 = vunpack.c.l.s4 1934713408
        %v3656 = vunpack.c.0.s8 %v3655
        %v3657 = vlaneseq
        %v3658 = vshrl.u32 %v3657, 7
        %v3659 = vsub.s32 %v3656, %v3658
        %v3660 = vrot.slane %v3646, %v3659
        %v3661 = vcombine.low %v3604, %v3620
        %v3663 = vunpack.c.l.s4 1934713408
        %v3664 = vunpack.c.0.s8 %v3663
        %v3665 = vlaneseq
        %v3666 = vshrl.u32 %v3665, 7
        %v3667 = vsub.s32 %v3664, %v3666
        %v3668 = vrot.slane %v3661, %v3667
        %v3669 = vcombine.low %v3629, %v3653
        %v3670 = vcombine.high %v3629, %v3653
        %v3671 = vcombine.low %v3636, %v3660
        %v3672 = vcombine.high %v3636, %v3660
        %v3673 = vcombine.low %v3644, %v3668
        %v3674 = vcombine.high %v3644, %v3668
        %v3677 = vpack.i.b16 %v2961, %v2843
        %v3678 = vshrl.u32 %v2843, 16
        %v3679 = vshrl.u32 %v2961, 16
        %v3680 = vpack.i.b16 %v3679, %v3678
        %v3683 = vpack.i.b16 %v2962, %v2844
        %v3684 = vshrl.u32 %v2844, 16
        %v3685 = vshrl.u32 %v2962, 16
        %v3686 = vpack.i.b16 %v3685, %v3684
        %v3689 = vpack.i.b16 %v2963, %v2845
        %v3690 = vshrl.u32 %v2845, 16
        %v3691 = vshrl.u32 %v2963, 16
        %v3692 = vpack.i.b16 %v3691, %v3690
        %v3695 = vpack.i.b16 %v2964, %v2846
        %v3696 = vshrl.u32 %v2846, 16
        %v3697 = vshrl.u32 %v2964, 16
        %v3698 = vpack.i.b16 %v3697, %v3696
        %v3701 = vpack.i.b16 %v2965, %v2847
        %v3703 = vshrl.u32 %v2847, 16
        %v3704 = vshrl.u32 %v2965, 16
        %v3705 = vpack.i.b16 %v3704, %v3703
        %v3709 = vpack.i.b16 %v2966, %v2848
        %v3711 = vshrl.u32 %v2848, 16
        %v3712 = vshrl.u32 %v2966, 16
        %v3713 = vpack.i.b16 %v3712, %v3711
        %v3717 = vpack.i.b16 %v3197, %v3079
        %v3718 = vshrl.u32 %v3079, 16
        %v3719 = vshrl.u32 %v3197, 16
        %v3720 = vpack.i.b16 %v3719, %v3718
        %v3723 = vpack.i.b16 %v3198, %v3080
        %v3724 = vshrl.u32 %v3080, 16
        %v3725 = vshrl.u32 %v3198, 16
        %v3726 = vpack.i.b16 %v3725, %v3724
        %v3729 = vpack.i.b16 %v3199, %v3081
        %v3730 = vshrl.u32 %v3081, 16
        %v3731 = vshrl.u32 %v3199, 16
        %v3732 = vpack.i.b16 %v3731, %v3730
        %v3735 = vpack.i.b16 %v3200, %v3082
        %v3736 = vshrl.u32 %v3082, 16
        %v3737 = vshrl.u32 %v3200, 16
        %v3738 = vpack.i.b16 %v3737, %v3736
        %v3741 = vpack.i.b16 %v3201, %v3083
        %v3743 = vshrl.u32 %v3083, 16
        %v3744 = vshrl.u32 %v3201, 16
        %v3745 = vpack.i.b16 %v3744, %v3743
        %v3749 = vpack.i.b16 %v3202, %v3084
        %v3751 = vshrl.u32 %v3084, 16
        %v3752 = vshrl.u32 %v3202, 16
        %v3753 = vpack.i.b16 %v3752, %v3751
        %v3757 = vpack.i.b16 %v3433, %v3315
        %v3758 = vshrl.u32 %v3315, 16
        %v3759 = vshrl.u32 %v3433, 16
        %v3760 = vpack.i.b16 %v3759, %v3758
        %v3763 = vpack.i.b16 %v3434, %v3316
        %v3764 = vshrl.u32 %v3316, 16
        %v3765 = vshrl.u32 %v3434, 16
        %v3766 = vpack.i.b16 %v3765, %v3764
        %v3769 = vpack.i.b16 %v3435, %v3317
        %v3770 = vshrl.u32 %v3317, 16
        %v3771 = vshrl.u32 %v3435, 16
        %v3772 = vpack.i.b16 %v3771, %v3770
        %v3775 = vpack.i.b16 %v3436, %v3318
        %v3776 = vshrl.u32 %v3318, 16
        %v3777 = vshrl.u32 %v3436, 16
        %v3778 = vpack.i.b16 %v3777, %v3776
        %v3781 = vpack.i.b16 %v3437, %v3319
        %v3783 = vshrl.u32 %v3319, 16
        %v3784 = vshrl.u32 %v3437, 16
        %v3785 = vpack.i.b16 %v3784, %v3783
        %v3789 = vpack.i.b16 %v3438, %v3320
        %v3791 = vshrl.u32 %v3320, 16
        %v3792 = vshrl.u32 %v3438, 16
        %v3793 = vpack.i.b16 %v3792, %v3791
        %v3797 = vpack.i.b16 %v3669, %v3551
        %v3798 = vshrl.u32 %v3551, 16
        %v3799 = vshrl.u32 %v3669, 16
        %v3800 = vpack.i.b16 %v3799, %v3798
        %v3803 = vpack.i.b16 %v3670, %v3552
        %v3804 = vshrl.u32 %v3552, 16
        %v3805 = vshrl.u32 %v3670, 16
        %v3806 = vpack.i.b16 %v3805, %v3804
        %v3809 = vpack.i.b16 %v3671, %v3553
        %v3810 = vshrl.u32 %v3553, 16
        %v3811 = vshrl.u32 %v3671, 16
        %v3812 = vpack.i.b16 %v3811, %v3810
        %v3815 = vpack.i.b16 %v3672, %v3554
        %v3816 = vshrl.u32 %v3554, 16
        %v3817 = vshrl.u32 %v3672, 16
        %v3818 = vpack.i.b16 %v3817, %v3816
        %v3821 = vpack.i.b16 %v3673, %v3555
        %v3823 = vshrl.u32 %v3555, 16
        %v3824 = vshrl.u32 %v3673, 16
        %v3825 = vpack.i.b16 %v3824, %v3823
        %v3829 = vpack.i.b16 %v3674, %v3556
        %v3831 = vshrl.u32 %v3556, 16
        %v3832 = vshrl.u32 %v3674, 16
        %v3833 = vpack.i.b16 %v3832, %v3831
        %vm3835 = vcmask 261120
        %v3837 = vsel %vm3835, %v3677, 0
        %v3840 = vsel %vm3835, %v3717, 0
        %v3843 = vsel %vm3835, %v3757, 0
        %v3846 = vsel %vm3835, %v3797, 0
        %v3849 = vsel %vm3835, %v3689, 0
        %v3852 = vsel %vm3835, %v3729, 0
        %v3855 = vsel %vm3835, %v3769, 0
        %v3858 = vsel %vm3835, %v3809, 0
        %3860 = vmatprep.subr.bf16.mxu0 0
        %3861 = vmatpush1.bf16.xpose.msra.mxu0 0
        %3862 = vmatprep.subr.bf16.mxu0 0
        %3863 = vmatpush1.bf16.xpose.msra.mxu0 0
        %3864 = vmatprep.subr.bf16.mxu0 0
        %3865 = vmatpush1.bf16.xpose.msra.mxu0 0
        %3866 = vmatprep.subr.bf16.mxu0 0
        %3867 = vmatpush1.bf16.xpose.msra.mxu0 0
        %3868 = vmatprep.subr.bf16.mxu0 0
        %3869 = vmatpush1.bf16.xpose.msra.mxu0 %v3858
        %3870 = vmatprep.subr.bf16.mxu0 0
        %3871 = vmatpush1.bf16.xpose.msra.mxu0 %v3855
        %3872 = vmatprep.subr.bf16.mxu0 0
        %3873 = vmatpush1.bf16.xpose.msra.mxu0 %v3852
        %3874 = vmatprep.subr.bf16.mxu0 0
        %3875 = vmatpush1.bf16.xpose.msra.mxu0 %v3849
        %3876 = vmatprep.subr.bf16.mxu0 0
        %3877 = vmatpush2.bf16.xpose.msra.mxu0 0
        %3878 = vmatprep.subr.bf16.mxu0 0
        %3879 = vmatpush2.bf16.xpose.msra.mxu0 0
        %3880 = vmatprep.subr.bf16.mxu0 0
        %3881 = vmatpush2.bf16.xpose.msra.mxu0 0
        %3882 = vmatprep.subr.bf16.mxu0 0
        %3883 = vmatpush2.bf16.xpose.msra.mxu0 0
        %3884 = vmatprep.subr.bf16.mxu0 0
        %3885 = vmatpush2.bf16.xpose.msra.mxu0 0
        %3886 = vmatprep.subr.bf16.mxu0 0
        %3887 = vmatpush2.bf16.xpose.msra.mxu0 0
        %3888 = vmatprep.subr.bf16.mxu0 0
        %3889 = vmatpush2.bf16.xpose.msra.mxu0 0
        %3890 = vmatprep.subr.bf16.mxu0 0
        %3891 = vmatpush2.bf16.xpose.msra.mxu0 0
        %3892 = vmatprep.mubr.bf16.mxu0 0
        %3893 = vmatmul.mubr.bf16.gmra.mxu0 %v3837
        %v3894 = vpop.f32.mrf.mxu0
        %v3895 = vadd.f32 0.0, %v3894
        %v3896 = vpop.f32.mrf.mxu0
        %v3897 = vpop.f32.mrf.mxu0
        %v3898 = vadd.f32 0.0, %v3897
        %v3899 = vpop.f32.mrf.mxu0
        %3900 = vmatprep.mubr.bf16.mxu0 0
        %3901 = vmatmul.mubr.bf16.gmra.mxu0 %v3840
        %v3902 = vpop.f32.mrf.mxu0
        %v3903 = vadd.f32 0.0, %v3902
        %v3904 = vpop.f32.mrf.mxu0
        %v3905 = vpop.f32.mrf.mxu0
        %v3906 = vadd.f32 0.0, %v3905
        %v3907 = vpop.f32.mrf.mxu0
        %3908 = vmatprep.mubr.bf16.mxu0 0
        %3909 = vmatmul.mubr.bf16.gmra.mxu0 %v3843
        %v3910 = vpop.f32.mrf.mxu0
        %v3911 = vadd.f32 0.0, %v3910
        %v3912 = vpop.f32.mrf.mxu0
        %v3913 = vpop.f32.mrf.mxu0
        %v3914 = vadd.f32 0.0, %v3913
        %v3915 = vpop.f32.mrf.mxu0
        %3916 = vmatprep.mubr.bf16.mxu0 0
        %3917 = vmatmul.mubr.bf16.gmra.mxu0 %v3846
        %v3918 = vpop.f32.mrf.mxu0
        %v3919 = vadd.f32 0.0, %v3918
        %v3920 = vpop.f32.mrf.mxu0
        %v3921 = vpop.f32.mrf.mxu0
        %v3922 = vadd.f32 0.0, %v3921
        %v3923 = vpop.f32.mrf.mxu0
        %3924 = vdwg.mxu0
        %v3926 = vsel %vm3835, %v3680, 0
        %v3929 = vsel %vm3835, %v3720, 0
        %v3932 = vsel %vm3835, %v3760, 0
        %v3935 = vsel %vm3835, %v3800, 0
        %v3938 = vsel %vm3835, %v3692, 0
        %v3941 = vsel %vm3835, %v3732, 0
        %v3944 = vsel %vm3835, %v3772, 0
        %v3947 = vsel %vm3835, %v3812, 0
        %3949 = vmatprep.subr.bf16.mxu0 0
        %3950 = vmatpush1.bf16.xpose.msra.mxu0 0
        %3951 = vmatprep.subr.bf16.mxu0 0
        %3952 = vmatpush1.bf16.xpose.msra.mxu0 0
        %3953 = vmatprep.subr.bf16.mxu0 0
        %3954 = vmatpush1.bf16.xpose.msra.mxu0 0
        %3955 = vmatprep.subr.bf16.mxu0 0
        %3956 = vmatpush1.bf16.xpose.msra.mxu0 0
        %3957 = vmatprep.subr.bf16.mxu0 0
        %3958 = vmatpush1.bf16.xpose.msra.mxu0 %v3947
        %3959 = vmatprep.subr.bf16.mxu0 0
        %3960 = vmatpush1.bf16.xpose.msra.mxu0 %v3944
        %3961 = vmatprep.subr.bf16.mxu0 0
        %3962 = vmatpush1.bf16.xpose.msra.mxu0 %v3941
        %3963 = vmatprep.subr.bf16.mxu0 0
        %3964 = vmatpush1.bf16.xpose.msra.mxu0 %v3938
        %3965 = vmatprep.subr.bf16.mxu0 0
        %3966 = vmatpush2.bf16.xpose.msra.mxu0 0
        %3967 = vmatprep.subr.bf16.mxu0 0
        %3968 = vmatpush2.bf16.xpose.msra.mxu0 0
        %3969 = vmatprep.subr.bf16.mxu0 0
        %3970 = vmatpush2.bf16.xpose.msra.mxu0 0
        %3971 = vmatprep.subr.bf16.mxu0 0
        %3972 = vmatpush2.bf16.xpose.msra.mxu0 0
        %3973 = vmatprep.subr.bf16.mxu0 0
        %3974 = vmatpush2.bf16.xpose.msra.mxu0 0
        %3975 = vmatprep.subr.bf16.mxu0 0
        %3976 = vmatpush2.bf16.xpose.msra.mxu0 0
        %3977 = vmatprep.subr.bf16.mxu0 0
        %3978 = vmatpush2.bf16.xpose.msra.mxu0 0
        %3979 = vmatprep.subr.bf16.mxu0 0
        %3980 = vmatpush2.bf16.xpose.msra.mxu0 0
        %3981 = vmatprep.mubr.bf16.mxu0 0
        %3982 = vmatmul.mubr.bf16.gmra.mxu0 %v3926
        %v3983 = vpop.f32.mrf.mxu0
        %v3984 = vadd.f32 0.0, %v3983
        %v3985 = vpop.f32.mrf.mxu0
        %v3986 = vpop.f32.mrf.mxu0
        %v3987 = vadd.f32 0.0, %v3986
        %v3988 = vpop.f32.mrf.mxu0
        %3989 = vmatprep.mubr.bf16.mxu0 0
        %3990 = vmatmul.mubr.bf16.gmra.mxu0 %v3929
        %v3991 = vpop.f32.mrf.mxu0
        %v3992 = vadd.f32 0.0, %v3991
        %v3993 = vpop.f32.mrf.mxu0
        %v3994 = vpop.f32.mrf.mxu0
        %v3995 = vadd.f32 0.0, %v3994
        %v3996 = vpop.f32.mrf.mxu0
        %3997 = vmatprep.mubr.bf16.mxu0 0
        %3998 = vmatmul.mubr.bf16.gmra.mxu0 %v3932
        %v3999 = vpop.f32.mrf.mxu0
        %v4000 = vadd.f32 0.0, %v3999
        %v4001 = vpop.f32.mrf.mxu0
        %v4002 = vpop.f32.mrf.mxu0
        %v4003 = vadd.f32 0.0, %v4002
        %v4004 = vpop.f32.mrf.mxu0
        %4005 = vmatprep.mubr.bf16.mxu0 0
        %4006 = vmatmul.mubr.bf16.gmra.mxu0 %v3935
        %v4007 = vpop.f32.mrf.mxu0
        %v4008 = vadd.f32 0.0, %v4007
        %v4009 = vpop.f32.mrf.mxu0
        %v4010 = vpop.f32.mrf.mxu0
        %v4011 = vadd.f32 0.0, %v4010
        %v4012 = vpop.f32.mrf.mxu0
        %4013 = vdwg.mxu0
        %v4015 = vsel %vm3835, %v3683, 0
        %v4018 = vsel %vm3835, %v3723, 0
        %v4021 = vsel %vm3835, %v3763, 0
        %v4024 = vsel %vm3835, %v3803, 0
        %v4027 = vsel %vm3835, %v3695, 0
        %v4030 = vsel %vm3835, %v3735, 0
        %v4033 = vsel %vm3835, %v3775, 0
        %v4036 = vsel %vm3835, %v3815, 0
        %4038 = vmatprep.subr.bf16.mxu0 0
        %4039 = vmatpush1.bf16.xpose.msra.mxu0 0
        %4040 = vmatprep.subr.bf16.mxu0 0
        %4041 = vmatpush1.bf16.xpose.msra.mxu0 0
        %4042 = vmatprep.subr.bf16.mxu0 0
        %4043 = vmatpush1.bf16.xpose.msra.mxu0 0
        %4044 = vmatprep.subr.bf16.mxu0 0
        %4045 = vmatpush1.bf16.xpose.msra.mxu0 0
        %4046 = vmatprep.subr.bf16.mxu0 0
        %4047 = vmatpush1.bf16.xpose.msra.mxu0 %v4036
        %4048 = vmatprep.subr.bf16.mxu0 0
        %4049 = vmatpush1.bf16.xpose.msra.mxu0 %v4033
        %4050 = vmatprep.subr.bf16.mxu0 0
        %4051 = vmatpush1.bf16.xpose.msra.mxu0 %v4030
        %4052 = vmatprep.subr.bf16.mxu0 0
        %4053 = vmatpush1.bf16.xpose.msra.mxu0 %v4027
        %4054 = vmatprep.subr.bf16.mxu0 0
        %4055 = vmatpush2.bf16.xpose.msra.mxu0 0
        %4056 = vmatprep.subr.bf16.mxu0 0
        %4057 = vmatpush2.bf16.xpose.msra.mxu0 0
        %4058 = vmatprep.subr.bf16.mxu0 0
        %4059 = vmatpush2.bf16.xpose.msra.mxu0 0
        %4060 = vmatprep.subr.bf16.mxu0 0
        %4061 = vmatpush2.bf16.xpose.msra.mxu0 0
        %4062 = vmatprep.subr.bf16.mxu0 0
        %4063 = vmatpush2.bf16.xpose.msra.mxu0 0
        %4064 = vmatprep.subr.bf16.mxu0 0
        %4065 = vmatpush2.bf16.xpose.msra.mxu0 0
        %4066 = vmatprep.subr.bf16.mxu0 0
        %4067 = vmatpush2.bf16.xpose.msra.mxu0 0
        %4068 = vmatprep.subr.bf16.mxu0 0
        %4069 = vmatpush2.bf16.xpose.msra.mxu0 0
        %4070 = vmatprep.mubr.bf16.mxu0 0
        %4071 = vmatmul.mubr.bf16.gmra.mxu0 %v4015
        %v4072 = vpop.f32.mrf.mxu0
        %v4073 = vadd.f32 0.0, %v4072
        %v4074 = vpop.f32.mrf.mxu0
        %v4075 = vpop.f32.mrf.mxu0
        %v4076 = vadd.f32 0.0, %v4075
        %v4077 = vpop.f32.mrf.mxu0
        %4078 = vmatprep.mubr.bf16.mxu0 0
        %4079 = vmatmul.mubr.bf16.gmra.mxu0 %v4018
        %v4080 = vpop.f32.mrf.mxu0
        %v4081 = vadd.f32 0.0, %v4080
        %v4082 = vpop.f32.mrf.mxu0
        %v4083 = vpop.f32.mrf.mxu0
        %v4084 = vadd.f32 0.0, %v4083
        %v4085 = vpop.f32.mrf.mxu0
        %4086 = vmatprep.mubr.bf16.mxu0 0
        %4087 = vmatmul.mubr.bf16.gmra.mxu0 %v4021
        %v4088 = vpop.f32.mrf.mxu0
        %v4089 = vadd.f32 0.0, %v4088
        %v4090 = vpop.f32.mrf.mxu0
        %v4091 = vpop.f32.mrf.mxu0
        %v4092 = vadd.f32 0.0, %v4091
        %v4093 = vpop.f32.mrf.mxu0
        %4094 = vmatprep.mubr.bf16.mxu0 0
        %4095 = vmatmul.mubr.bf16.gmra.mxu0 %v4024
        %v4096 = vpop.f32.mrf.mxu0
        %v4097 = vadd.f32 0.0, %v4096
        %v4098 = vpop.f32.mrf.mxu0
        %v4099 = vpop.f32.mrf.mxu0
        %v4100 = vadd.f32 0.0, %v4099
        %v4101 = vpop.f32.mrf.mxu0
        %4102 = vdwg.mxu0
        %v4104 = vsel %vm3835, %v3686, 0
        %v4107 = vsel %vm3835, %v3726, 0
        %v4110 = vsel %vm3835, %v3766, 0
        %v4113 = vsel %vm3835, %v3806, 0
        %v4116 = vsel %vm3835, %v3698, 0
        %v4119 = vsel %vm3835, %v3738, 0
        %v4122 = vsel %vm3835, %v3778, 0
        %v4125 = vsel %vm3835, %v3818, 0
        %4127 = vmatprep.subr.bf16.mxu0 0
        %4128 = vmatpush1.bf16.xpose.msra.mxu0 0
        %4129 = vmatprep.subr.bf16.mxu0 0
        %4130 = vmatpush1.bf16.xpose.msra.mxu0 0
        %4131 = vmatprep.subr.bf16.mxu0 0
        %4132 = vmatpush1.bf16.xpose.msra.mxu0 0
        %4133 = vmatprep.subr.bf16.mxu0 0
        %4134 = vmatpush1.bf16.xpose.msra.mxu0 0
        %4135 = vmatprep.subr.bf16.mxu0 0
        %4136 = vmatpush1.bf16.xpose.msra.mxu0 %v4125
        %4137 = vmatprep.subr.bf16.mxu0 0
        %4138 = vmatpush1.bf16.xpose.msra.mxu0 %v4122
        %4139 = vmatprep.subr.bf16.mxu0 0
        %4140 = vmatpush1.bf16.xpose.msra.mxu0 %v4119
        %4141 = vmatprep.subr.bf16.mxu0 0
        %4142 = vmatpush1.bf16.xpose.msra.mxu0 %v4116
        %4143 = vmatprep.subr.bf16.mxu0 0
        %4144 = vmatpush2.bf16.xpose.msra.mxu0 0
        %4145 = vmatprep.subr.bf16.mxu0 0
        %4146 = vmatpush2.bf16.xpose.msra.mxu0 0
        %4147 = vmatprep.subr.bf16.mxu0 0
        %4148 = vmatpush2.bf16.xpose.msra.mxu0 0
        %4149 = vmatprep.subr.bf16.mxu0 0
        %4150 = vmatpush2.bf16.xpose.msra.mxu0 0
        %4151 = vmatprep.subr.bf16.mxu0 0
        %4152 = vmatpush2.bf16.xpose.msra.mxu0 0
        %4153 = vmatprep.subr.bf16.mxu0 0
        %4154 = vmatpush2.bf16.xpose.msra.mxu0 0
        %4155 = vmatprep.subr.bf16.mxu0 0
        %4156 = vmatpush2.bf16.xpose.msra.mxu0 0
        %4157 = vmatprep.subr.bf16.mxu0 0
        %4158 = vmatpush2.bf16.xpose.msra.mxu0 0
        %4159 = vmatprep.mubr.bf16.mxu0 0
        %4160 = vmatmul.mubr.bf16.gmra.mxu0 %v4104
        %v4161 = vpop.f32.mrf.mxu0
        %v4162 = vadd.f32 0.0, %v4161
        %v4163 = vpop.f32.mrf.mxu0
        %v4164 = vpop.f32.mrf.mxu0
        %v4165 = vadd.f32 0.0, %v4164
        %v4166 = vpop.f32.mrf.mxu0
        %4167 = vmatprep.mubr.bf16.mxu0 0
        %4168 = vmatmul.mubr.bf16.gmra.mxu0 %v4107
        %v4169 = vpop.f32.mrf.mxu0
        %v4170 = vadd.f32 0.0, %v4169
        %v4171 = vpop.f32.mrf.mxu0
        %v4172 = vpop.f32.mrf.mxu0
        %v4173 = vadd.f32 0.0, %v4172
        %v4174 = vpop.f32.mrf.mxu0
        %4175 = vmatprep.mubr.bf16.mxu0 0
        %4176 = vmatmul.mubr.bf16.gmra.mxu0 %v4110
        %v4177 = vpop.f32.mrf.mxu0
        %v4178 = vadd.f32 0.0, %v4177
        %v4179 = vpop.f32.mrf.mxu0
        %v4180 = vpop.f32.mrf.mxu0
        %v4181 = vadd.f32 0.0, %v4180
        %v4182 = vpop.f32.mrf.mxu0
        %4183 = vmatprep.mubr.bf16.mxu0 0
        %4184 = vmatmul.mubr.bf16.gmra.mxu0 %v4113
        %v4185 = vpop.f32.mrf.mxu0
        %v4186 = vadd.f32 0.0, %v4185
        %v4187 = vpop.f32.mrf.mxu0
        %v4188 = vpop.f32.mrf.mxu0
        %v4189 = vadd.f32 0.0, %v4188
        %v4190 = vpop.f32.mrf.mxu0
        %4191 = vdwg.mxu0
        %v4193 = vlaneseq
        %v4194 = vshrl.u32 %v4193, 7
        %v4195 = vsub.s32 0, %v4194
        %v4196 = vrot.slane %v926, %v4195
        %v4198 = vadd.f32 %v3895, %v4196
        %v4199 = vadd.f32 %v3898, %v4196
        %v4200 = vadd.f32 %v3903, %v4196
        %v4201 = vadd.f32 %v3906, %v4196
        %v4202 = vadd.f32 %v3911, %v4196
        %v4203 = vadd.f32 %v3914, %v4196
        %v4204 = vadd.f32 %v3919, %v4196
        %v4205 = vadd.f32 %v3922, %v4196
        %v4206 = vadd.f32 %v3984, %v4196
        %v4207 = vadd.f32 %v3987, %v4196
        %v4208 = vadd.f32 %v3992, %v4196
        %v4209 = vadd.f32 %v3995, %v4196
        %v4210 = vadd.f32 %v4000, %v4196
        %v4211 = vadd.f32 %v4003, %v4196
        %v4212 = vadd.f32 %v4008, %v4196
        %v4213 = vadd.f32 %v4011, %v4196
        %v4214 = vadd.f32 %v4073, %v4196
        %v4215 = vadd.f32 %v4076, %v4196
        %v4216 = vadd.f32 %v4081, %v4196
        %v4217 = vadd.f32 %v4084, %v4196
        %v4218 = vadd.f32 %v4089, %v4196
        %v4219 = vadd.f32 %v4092, %v4196
        %v4220 = vadd.f32 %v4097, %v4196
        %v4221 = vadd.f32 %v4100, %v4196
        %v4222 = vadd.f32 %v4162, %v4196
        %v4223 = vadd.f32 %v4165, %v4196
        %v4224 = vadd.f32 %v4170, %v4196
        %v4225 = vadd.f32 %v4173, %v4196
        %v4226 = vadd.f32 %v4178, %v4196
        %v4227 = vadd.f32 %v4181, %v4196
        %v4228 = vadd.f32 %v4186, %v4196
        %v4229 = vadd.f32 %v4189, %v4196
        %vm4230 = vcmask 523264
        %v4231 = vsel %vm4230, %v4198, -inf
        %4232 = vmax.xlane.f32.xlu0 %v4231
        %v4233 = vpop.xlane.xlu0 %4232
        %v4234 = vsel %vm4230, %v4199, -inf
        %4235 = vmax.xlane.f32.xlu0 %v4234
        %v4236 = vpop.xlane.xlu0 %4235
        %v4237 = vsel %vm4230, %v4200, -inf
        %4238 = vmax.xlane.f32.xlu0 %v4237
        %v4239 = vpop.xlane.xlu0 %4238
        %v4240 = vsel %vm4230, %v4201, -inf
        %4241 = vmax.xlane.f32.xlu0 %v4240
        %v4242 = vpop.xlane.xlu0 %4241
        %v4243 = vsel %vm4230, %v4202, -inf
        %4244 = vmax.xlane.f32.xlu0 %v4243
        %v4245 = vpop.xlane.xlu0 %4244
        %v4246 = vsel %vm4230, %v4203, -inf
        %4247 = vmax.xlane.f32.xlu0 %v4246
        %v4248 = vpop.xlane.xlu0 %4247
        %v4249 = vsel %vm4230, %v4204, -inf
        %4250 = vmax.xlane.f32.xlu0 %v4249
        %v4251 = vpop.xlane.xlu0 %4250
        %v4252 = vsel %vm4230, %v4205, -inf
        %4253 = vmax.xlane.f32.xlu0 %v4252
        %v4254 = vpop.xlane.xlu0 %4253
        %v4255 = vsel %vm4230, %v4206, -inf
        %4256 = vmax.xlane.f32.xlu0 %v4255
        %v4257 = vpop.xlane.xlu0 %4256
        %v4258 = vsel %vm4230, %v4207, -inf
        %4259 = vmax.xlane.f32.xlu0 %v4258
        %v4260 = vpop.xlane.xlu0 %4259
        %v4261 = vsel %vm4230, %v4208, -inf
        %4262 = vmax.xlane.f32.xlu0 %v4261
        %v4263 = vpop.xlane.xlu0 %4262
        %v4264 = vsel %vm4230, %v4209, -inf
        %4265 = vmax.xlane.f32.xlu0 %v4264
        %v4266 = vpop.xlane.xlu0 %4265
        %v4267 = vsel %vm4230, %v4210, -inf
        %4268 = vmax.xlane.f32.xlu0 %v4267
        %v4269 = vpop.xlane.xlu0 %4268
        %v4270 = vsel %vm4230, %v4211, -inf
        %4271 = vmax.xlane.f32.xlu0 %v4270
        %v4272 = vpop.xlane.xlu0 %4271
        %v4273 = vsel %vm4230, %v4212, -inf
        %4274 = vmax.xlane.f32.xlu0 %v4273
        %v4275 = vpop.xlane.xlu0 %4274
        %v4276 = vsel %vm4230, %v4213, -inf
        %4277 = vmax.xlane.f32.xlu0 %v4276
        %v4278 = vpop.xlane.xlu0 %4277
        %v4279 = vsel %vm4230, %v4214, -inf
        %4280 = vmax.xlane.f32.xlu0 %v4279
        %v4281 = vpop.xlane.xlu0 %4280
        %v4282 = vsel %vm4230, %v4215, -inf
        %4283 = vmax.xlane.f32.xlu0 %v4282
        %v4284 = vpop.xlane.xlu0 %4283
        %v4285 = vsel %vm4230, %v4216, -inf
        %4286 = vmax.xlane.f32.xlu0 %v4285
        %v4287 = vpop.xlane.xlu0 %4286
        %v4288 = vsel %vm4230, %v4217, -inf
        %4289 = vmax.xlane.f32.xlu0 %v4288
        %v4290 = vpop.xlane.xlu0 %4289
        %v4291 = vsel %vm4230, %v4218, -inf
        %4292 = vmax.xlane.f32.xlu0 %v4291
        %v4293 = vpop.xlane.xlu0 %4292
        %v4294 = vsel %vm4230, %v4219, -inf
        %4295 = vmax.xlane.f32.xlu0 %v4294
        %v4296 = vpop.xlane.xlu0 %4295
        %v4297 = vsel %vm4230, %v4220, -inf
        %4298 = vmax.xlane.f32.xlu0 %v4297
        %v4299 = vpop.xlane.xlu0 %4298
        %v4300 = vsel %vm4230, %v4221, -inf
        %4301 = vmax.xlane.f32.xlu0 %v4300
        %v4302 = vpop.xlane.xlu0 %4301
        %v4303 = vsel %vm4230, %v4222, -inf
        %4304 = vmax.xlane.f32.xlu0 %v4303
        %v4305 = vpop.xlane.xlu0 %4304
        %v4306 = vsel %vm4230, %v4223, -inf
        %4307 = vmax.xlane.f32.xlu0 %v4306
        %v4308 = vpop.xlane.xlu0 %4307
        %v4309 = vsel %vm4230, %v4224, -inf
        %4310 = vmax.xlane.f32.xlu0 %v4309
        %v4311 = vpop.xlane.xlu0 %4310
        %v4312 = vsel %vm4230, %v4225, -inf
        %4313 = vmax.xlane.f32.xlu0 %v4312
        %v4314 = vpop.xlane.xlu0 %4313
        %v4315 = vsel %vm4230, %v4226, -inf
        %4316 = vmax.xlane.f32.xlu0 %v4315
        %v4317 = vpop.xlane.xlu0 %4316
        %v4318 = vsel %vm4230, %v4227, -inf
        %4319 = vmax.xlane.f32.xlu0 %v4318
        %v4320 = vpop.xlane.xlu0 %4319
        %v4321 = vsel %vm4230, %v4228, -inf
        %4322 = vmax.xlane.f32.xlu0 %v4321
        %v4323 = vpop.xlane.xlu0 %4322
        %v4324 = vsel %vm4230, %v4229, -inf
        %4325 = vmax.xlane.f32.xlu0 %v4324
        %v4326 = vpop.xlane.xlu0 %4325
        %v4327 = vsub.f32 %v4198, %v4233
        %v4328 = vsub.f32 %v4199, %v4236
        %v4329 = vsub.f32 %v4200, %v4239
        %v4330 = vsub.f32 %v4201, %v4242
        %v4331 = vsub.f32 %v4202, %v4245
        %v4332 = vsub.f32 %v4203, %v4248
        %v4333 = vsub.f32 %v4204, %v4251
        %v4334 = vsub.f32 %v4205, %v4254
        %v4335 = vsub.f32 %v4206, %v4257
        %v4336 = vsub.f32 %v4207, %v4260
        %v4337 = vsub.f32 %v4208, %v4263
        %v4338 = vsub.f32 %v4209, %v4266
        %v4339 = vsub.f32 %v4210, %v4269
        %v4340 = vsub.f32 %v4211, %v4272
        %v4341 = vsub.f32 %v4212, %v4275
        %v4342 = vsub.f32 %v4213, %v4278
        %v4343 = vsub.f32 %v4214, %v4281
        %v4344 = vsub.f32 %v4215, %v4284
        %v4345 = vsub.f32 %v4216, %v4287
        %v4346 = vsub.f32 %v4217, %v4290
        %v4347 = vsub.f32 %v4218, %v4293
        %v4348 = vsub.f32 %v4219, %v4296
        %v4349 = vsub.f32 %v4220, %v4299
        %v4350 = vsub.f32 %v4221, %v4302
        %v4351 = vsub.f32 %v4222, %v4305
        %v4352 = vsub.f32 %v4223, %v4308
        %v4353 = vsub.f32 %v4224, %v4311
        %v4354 = vsub.f32 %v4225, %v4314
        %v4355 = vsub.f32 %v4226, %v4317
        %v4356 = vsub.f32 %v4227, %v4320
        %v4357 = vsub.f32 %v4228, %v4323
        %v4358 = vsub.f32 %v4229, %v4326
        %v4359 = vmul.f32 %v4327, 1.442695
        %v4360 = vpow.pop %v4359
        %v4361 = vmul.f32 %v4328, 1.442695
        %v4362 = vpow.pop %v4361
        %v4363 = vmul.f32 %v4329, 1.442695
        %v4364 = vpow.pop %v4363
        %v4365 = vmul.f32 %v4330, 1.442695
        %v4366 = vpow.pop %v4365
        %v4367 = vmul.f32 %v4331, 1.442695
        %v4368 = vpow.pop %v4367
        %v4369 = vmul.f32 %v4332, 1.442695
        %v4370 = vpow.pop %v4369
        %v4371 = vmul.f32 %v4333, 1.442695
        %v4372 = vpow.pop %v4371
        %v4373 = vmul.f32 %v4334, 1.442695
        %v4374 = vpow.pop %v4373
        %v4375 = vmul.f32 %v4335, 1.442695
        %v4376 = vpow.pop %v4375
        %v4377 = vmul.f32 %v4336, 1.442695
        %v4378 = vpow.pop %v4377
        %v4379 = vmul.f32 %v4337, 1.442695
        %v4380 = vpow.pop %v4379
        %v4381 = vmul.f32 %v4338, 1.442695
        %v4382 = vpow.pop %v4381
        %v4383 = vmul.f32 %v4339, 1.442695
        %v4384 = vpow.pop %v4383
        %v4385 = vmul.f32 %v4340, 1.442695
        %v4386 = vpow.pop %v4385
        %v4387 = vmul.f32 %v4341, 1.442695
        %v4388 = vpow.pop %v4387
        %v4389 = vmul.f32 %v4342, 1.442695
        %v4390 = vpow.pop %v4389
        %v4391 = vmul.f32 %v4343, 1.442695
        %v4392 = vpow.pop %v4391
        %v4393 = vmul.f32 %v4344, 1.442695
        %v4394 = vpow.pop %v4393
        %v4395 = vmul.f32 %v4345, 1.442695
        %v4396 = vpow.pop %v4395
        %v4397 = vmul.f32 %v4346, 1.442695
        %v4398 = vpow.pop %v4397
        %v4399 = vmul.f32 %v4347, 1.442695
        %v4400 = vpow.pop %v4399
        %v4401 = vmul.f32 %v4348, 1.442695
        %v4402 = vpow.pop %v4401
        %v4403 = vmul.f32 %v4349, 1.442695
        %v4404 = vpow.pop %v4403
        %v4405 = vmul.f32 %v4350, 1.442695
        %v4406 = vpow.pop %v4405
        %v4407 = vmul.f32 %v4351, 1.442695
        %v4408 = vpow.pop %v4407
        %v4409 = vmul.f32 %v4352, 1.442695
        %v4410 = vpow.pop %v4409
        %v4411 = vmul.f32 %v4353, 1.442695
        %v4412 = vpow.pop %v4411
        %v4413 = vmul.f32 %v4354, 1.442695
        %v4414 = vpow.pop %v4413
        %v4415 = vmul.f32 %v4355, 1.442695
        %v4416 = vpow.pop %v4415
        %v4417 = vmul.f32 %v4356, 1.442695
        %v4418 = vpow.pop %v4417
        %v4419 = vmul.f32 %v4357, 1.442695
        %v4420 = vpow.pop %v4419
        %v4421 = vmul.f32 %v4358, 1.442695
        %v4422 = vpow.pop %v4421
        %v4423 = vsel %vm4230, %v4360, 0.0
        %4424 = vadd.xlane.f32.xlu0 %v4423
        %v4425 = vpop.xlane.xlu0 %4424
        %v4426 = vsel %vm4230, %v4362, 0.0
        %4427 = vadd.xlane.f32.xlu0 %v4426
        %v4428 = vpop.xlane.xlu0 %4427
        %v4429 = vsel %vm4230, %v4364, 0.0
        %4430 = vadd.xlane.f32.xlu0 %v4429
        %v4431 = vpop.xlane.xlu0 %4430
        %v4432 = vsel %vm4230, %v4366, 0.0
        %4433 = vadd.xlane.f32.xlu0 %v4432
        %v4434 = vpop.xlane.xlu0 %4433
        %v4435 = vsel %vm4230, %v4368, 0.0
        %4436 = vadd.xlane.f32.xlu0 %v4435
        %v4437 = vpop.xlane.xlu0 %4436
        %v4438 = vsel %vm4230, %v4370, 0.0
        %4439 = vadd.xlane.f32.xlu0 %v4438
        %v4440 = vpop.xlane.xlu0 %4439
        %v4441 = vsel %vm4230, %v4372, 0.0
        %4442 = vadd.xlane.f32.xlu0 %v4441
        %v4443 = vpop.xlane.xlu0 %4442
        %v4444 = vsel %vm4230, %v4374, 0.0
        %4445 = vadd.xlane.f32.xlu0 %v4444
        %v4446 = vpop.xlane.xlu0 %4445
        %v4447 = vsel %vm4230, %v4376, 0.0
        %4448 = vadd.xlane.f32.xlu0 %v4447
        %v4449 = vpop.xlane.xlu0 %4448
        %v4450 = vsel %vm4230, %v4378, 0.0
        %4451 = vadd.xlane.f32.xlu0 %v4450
        %v4452 = vpop.xlane.xlu0 %4451
        %v4453 = vsel %vm4230, %v4380, 0.0
        %4454 = vadd.xlane.f32.xlu0 %v4453
        %v4455 = vpop.xlane.xlu0 %4454
        %v4456 = vsel %vm4230, %v4382, 0.0
        %4457 = vadd.xlane.f32.xlu0 %v4456
        %v4458 = vpop.xlane.xlu0 %4457
        %v4459 = vsel %vm4230, %v4384, 0.0
        %4460 = vadd.xlane.f32.xlu0 %v4459
        %v4461 = vpop.xlane.xlu0 %4460
        %v4462 = vsel %vm4230, %v4386, 0.0
        %4463 = vadd.xlane.f32.xlu0 %v4462
        %v4464 = vpop.xlane.xlu0 %4463
        %v4465 = vsel %vm4230, %v4388, 0.0
        %4466 = vadd.xlane.f32.xlu0 %v4465
        %v4467 = vpop.xlane.xlu0 %4466
        %v4468 = vsel %vm4230, %v4390, 0.0
        %4469 = vadd.xlane.f32.xlu0 %v4468
        %v4470 = vpop.xlane.xlu0 %4469
        %v4471 = vsel %vm4230, %v4392, 0.0
        %4472 = vadd.xlane.f32.xlu0 %v4471
        %v4473 = vpop.xlane.xlu0 %4472
        %v4474 = vsel %vm4230, %v4394, 0.0
        %4475 = vadd.xlane.f32.xlu0 %v4474
        %v4476 = vpop.xlane.xlu0 %4475
        %v4477 = vsel %vm4230, %v4396, 0.0
        %4478 = vadd.xlane.f32.xlu0 %v4477
        %v4479 = vpop.xlane.xlu0 %4478
        %v4480 = vsel %vm4230, %v4398, 0.0
        %4481 = vadd.xlane.f32.xlu0 %v4480
        %v4482 = vpop.xlane.xlu0 %4481
        %v4483 = vsel %vm4230, %v4400, 0.0
        %4484 = vadd.xlane.f32.xlu0 %v4483
        %v4485 = vpop.xlane.xlu0 %4484
        %v4486 = vsel %vm4230, %v4402, 0.0
        %4487 = vadd.xlane.f32.xlu0 %v4486
        %v4488 = vpop.xlane.xlu0 %4487
        %v4489 = vsel %vm4230, %v4404, 0.0
        %4490 = vadd.xlane.f32.xlu0 %v4489
        %v4491 = vpop.xlane.xlu0 %4490
        %v4492 = vsel %vm4230, %v4406, 0.0
        %4493 = vadd.xlane.f32.xlu0 %v4492
        %v4494 = vpop.xlane.xlu0 %4493
        %v4495 = vsel %vm4230, %v4408, 0.0
        %4496 = vadd.xlane.f32.xlu0 %v4495
        %v4497 = vpop.xlane.xlu0 %4496
        %v4498 = vsel %vm4230, %v4410, 0.0
        %4499 = vadd.xlane.f32.xlu0 %v4498
        %v4500 = vpop.xlane.xlu0 %4499
        %v4501 = vsel %vm4230, %v4412, 0.0
        %4502 = vadd.xlane.f32.xlu0 %v4501
        %v4503 = vpop.xlane.xlu0 %4502
        %v4504 = vsel %vm4230, %v4414, 0.0
        %4505 = vadd.xlane.f32.xlu0 %v4504
        %v4506 = vpop.xlane.xlu0 %4505
        %v4507 = vsel %vm4230, %v4416, 0.0
        %4508 = vadd.xlane.f32.xlu0 %v4507
        %v4509 = vpop.xlane.xlu0 %4508
        %v4510 = vsel %vm4230, %v4418, 0.0
        %4511 = vadd.xlane.f32.xlu0 %v4510
        %v4512 = vpop.xlane.xlu0 %4511
        %v4513 = vsel %vm4230, %v4420, 0.0
        %4514 = vadd.xlane.f32.xlu0 %v4513
        %v4515 = vpop.xlane.xlu0 %4514
        %v4516 = vsel %vm4230, %v4422, 0.0
        %4517 = vadd.xlane.f32.xlu0 %v4516
        %v4518 = vpop.xlane.xlu0 %4517
        %v4519 = vrcp.pop %v4425
        %v4520 = vrcp.pop %v4428
        %v4521 = vrcp.pop %v4431
        %v4522 = vrcp.pop %v4434
        %v4523 = vrcp.pop %v4437
        %v4524 = vrcp.pop %v4440
        %v4525 = vrcp.pop %v4443
        %v4526 = vrcp.pop %v4446
        %v4527 = vrcp.pop %v4449
        %v4528 = vrcp.pop %v4452
        %v4529 = vrcp.pop %v4455
        %v4530 = vrcp.pop %v4458
        %v4531 = vrcp.pop %v4461
        %v4532 = vrcp.pop %v4464
        %v4533 = vrcp.pop %v4467
        %v4534 = vrcp.pop %v4470
        %v4535 = vrcp.pop %v4473
        %v4536 = vrcp.pop %v4476
        %v4537 = vrcp.pop %v4479
        %v4538 = vrcp.pop %v4482
        %v4539 = vrcp.pop %v4485
        %v4540 = vrcp.pop %v4488
        %v4541 = vrcp.pop %v4491
        %v4542 = vrcp.pop %v4494
        %v4543 = vrcp.pop %v4497
        %v4544 = vrcp.pop %v4500
        %v4545 = vrcp.pop %v4503
        %v4546 = vrcp.pop %v4506
        %v4547 = vrcp.pop %v4509
        %v4548 = vrcp.pop %v4512
        %v4549 = vrcp.pop %v4515
        %v4550 = vrcp.pop %v4518
        %v4551 = vmul.f32 %v4360, %v4519
        %v4552 = vmul.f32 %v4362, %v4520
        %v4553 = vmul.f32 %v4364, %v4521
        %v4554 = vmul.f32 %v4366, %v4522
        %v4555 = vmul.f32 %v4368, %v4523
        %v4556 = vmul.f32 %v4370, %v4524
        %v4557 = vmul.f32 %v4372, %v4525
        %v4558 = vmul.f32 %v4374, %v4526
        %v4559 = vmul.f32 %v4376, %v4527
        %v4560 = vmul.f32 %v4378, %v4528
        %v4561 = vmul.f32 %v4380, %v4529
        %v4562 = vmul.f32 %v4382, %v4530
        %v4563 = vmul.f32 %v4384, %v4531
        %v4564 = vmul.f32 %v4386, %v4532
        %v4565 = vmul.f32 %v4388, %v4533
        %v4566 = vmul.f32 %v4390, %v4534
        %v4567 = vmul.f32 %v4392, %v4535
        %v4568 = vmul.f32 %v4394, %v4536
        %v4569 = vmul.f32 %v4396, %v4537
        %v4570 = vmul.f32 %v4398, %v4538
        %v4571 = vmul.f32 %v4400, %v4539
        %v4572 = vmul.f32 %v4402, %v4540
        %v4573 = vmul.f32 %v4404, %v4541
        %v4574 = vmul.f32 %v4406, %v4542
        %v4575 = vmul.f32 %v4408, %v4543
        %v4576 = vmul.f32 %v4410, %v4544
        %v4577 = vmul.f32 %v4412, %v4545
        %v4578 = vmul.f32 %v4414, %v4546
        %v4579 = vmul.f32 %v4416, %v4547
        %v4580 = vmul.f32 %v4418, %v4548
        %v4581 = vmul.f32 %v4420, %v4549
        %v4582 = vmul.f32 %v4422, %v4550
        %v4583 = vpack.c.bf16 %v4552, %v4551
        %v4584 = vpack.c.bf16 %v4554, %v4553
        %v4585 = vpack.c.bf16 %v4556, %v4555
        %v4586 = vpack.c.bf16 %v4558, %v4557
        %v4587 = vpack.c.bf16 %v4560, %v4559
        %v4588 = vpack.c.bf16 %v4562, %v4561
        %v4589 = vpack.c.bf16 %v4564, %v4563
        %v4590 = vpack.c.bf16 %v4566, %v4565
        %v4591 = vpack.c.bf16 %v4568, %v4567
        %v4592 = vpack.c.bf16 %v4570, %v4569
        %v4593 = vpack.c.bf16 %v4572, %v4571
        %v4594 = vpack.c.bf16 %v4574, %v4573
        %v4595 = vpack.c.bf16 %v4576, %v4575
        %v4596 = vpack.c.bf16 %v4578, %v4577
        %v4597 = vpack.c.bf16 %v4580, %v4579
        %v4598 = vpack.c.bf16 %v4582, %v4581
        %v4600 = vsel %vm4230, %v4583, 0
        %v4603 = vsel %vm4230, %v4584, 0
        %v4606 = vsel %vm4230, %v4585, 0
        %v4609 = vsel %vm4230, %v4586, 0
        %4611 = vmatprep.subr.bf16.mxu0 0
        %4612 = vmatpush1.bf16.msra.mxu0 0
        %4613 = vmatprep.subr.bf16.mxu0 0
        %4614 = vmatpush1.bf16.msra.mxu0 0
        %4615 = vmatprep.subr.bf16.mxu0 0
        %4616 = vmatpush1.bf16.msra.mxu0 0
        %4617 = vmatprep.subr.bf16.mxu0 0
        %4618 = vmatpush1.bf16.msra.mxu0 0
        %4619 = vmatprep.subr.bf16.mxu0 0
        %4620 = vmatpush1.bf16.msra.mxu0 %v3821
        %4621 = vmatprep.subr.bf16.mxu0 0
        %4622 = vmatpush1.bf16.msra.mxu0 %v3781
        %4623 = vmatprep.subr.bf16.mxu0 0
        %4624 = vmatpush1.bf16.msra.mxu0 %v3741
        %4625 = vmatprep.subr.bf16.mxu0 0
        %4626 = vmatpush1.bf16.msra.mxu0 %v3701
        %4627 = vmatprep.subr.bf16.mxu0 0
        %4628 = vmatpush2.bf16.msra.mxu0 0
        %4629 = vmatprep.subr.bf16.mxu0 0
        %4630 = vmatpush2.bf16.msra.mxu0 0
        %4631 = vmatprep.subr.bf16.mxu0 0
        %4632 = vmatpush2.bf16.msra.mxu0 0
        %4633 = vmatprep.subr.bf16.mxu0 0
        %4634 = vmatpush2.bf16.msra.mxu0 0
        %4635 = vmatprep.subr.bf16.mxu0 0
        %4636 = vmatpush2.bf16.msra.mxu0 0
        %4637 = vmatprep.subr.bf16.mxu0 0
        %4638 = vmatpush2.bf16.msra.mxu0 0
        %4639 = vmatprep.subr.bf16.mxu0 0
        %4640 = vmatpush2.bf16.msra.mxu0 0
        %4641 = vmatprep.subr.bf16.mxu0 0
        %4642 = vmatpush2.bf16.msra.mxu0 0
        %4643 = vmatprep.mubr.bf16.mxu0 0
        %4644 = vmatmul.mubr.bf16.gmra.mxu0 %v4600
        %v4645 = vpop.f32.mrf.mxu0
        %v4646 = vadd.f32 0.0, %v4645
        %v4647 = vpop.f32.mrf.mxu0
        %v4648 = vpop.f32.mrf.mxu0
        %v4649 = vadd.f32 0.0, %v4648
        %v4650 = vpop.f32.mrf.mxu0
        %4651 = vmatprep.mubr.bf16.mxu0 0
        %4652 = vmatmul.mubr.bf16.gmra.mxu0 %v4603
        %v4653 = vpop.f32.mrf.mxu0
        %v4654 = vadd.f32 0.0, %v4653
        %v4655 = vpop.f32.mrf.mxu0
        %v4656 = vpop.f32.mrf.mxu0
        %v4657 = vadd.f32 0.0, %v4656
        %v4658 = vpop.f32.mrf.mxu0
        %4659 = vmatprep.mubr.bf16.mxu0 0
        %4660 = vmatmul.mubr.bf16.gmra.mxu0 %v4606
        %v4661 = vpop.f32.mrf.mxu0
        %v4662 = vadd.f32 0.0, %v4661
        %v4663 = vpop.f32.mrf.mxu0
        %v4664 = vpop.f32.mrf.mxu0
        %v4665 = vadd.f32 0.0, %v4664
        %v4666 = vpop.f32.mrf.mxu0
        %4667 = vmatprep.mubr.bf16.mxu0 0
        %4668 = vmatmul.mubr.bf16.gmra.mxu0 %v4609
        %v4669 = vpop.f32.mrf.mxu0
        %v4670 = vadd.f32 0.0, %v4669
        %v4671 = vpop.f32.mrf.mxu0
        %v4672 = vpop.f32.mrf.mxu0
        %v4673 = vadd.f32 0.0, %v4672
        %v4674 = vpop.f32.mrf.mxu0
        %4675 = vdwg.mxu0
        %v4677 = vsel %vm4230, %v4587, 0
        %v4680 = vsel %vm4230, %v4588, 0
        %v4683 = vsel %vm4230, %v4589, 0
        %v4686 = vsel %vm4230, %v4590, 0
        %4688 = vmatprep.subr.bf16.mxu0 0
        %4689 = vmatpush1.bf16.msra.mxu0 0
        %4690 = vmatprep.subr.bf16.mxu0 0
        %4691 = vmatpush1.bf16.msra.mxu0 0
        %4692 = vmatprep.subr.bf16.mxu0 0
        %4693 = vmatpush1.bf16.msra.mxu0 0
        %4694 = vmatprep.subr.bf16.mxu0 0
        %4695 = vmatpush1.bf16.msra.mxu0 0
        %4696 = vmatprep.subr.bf16.mxu0 0
        %4697 = vmatpush1.bf16.msra.mxu0 %v3825
        %4698 = vmatprep.subr.bf16.mxu0 0
        %4699 = vmatpush1.bf16.msra.mxu0 %v3785
        %4700 = vmatprep.subr.bf16.mxu0 0
        %4701 = vmatpush1.bf16.msra.mxu0 %v3745
        %4702 = vmatprep.subr.bf16.mxu0 0
        %4703 = vmatpush1.bf16.msra.mxu0 %v3705
        %4704 = vmatprep.subr.bf16.mxu0 0
        %4705 = vmatpush2.bf16.msra.mxu0 0
        %4706 = vmatprep.subr.bf16.mxu0 0
        %4707 = vmatpush2.bf16.msra.mxu0 0
        %4708 = vmatprep.subr.bf16.mxu0 0
        %4709 = vmatpush2.bf16.msra.mxu0 0
        %4710 = vmatprep.subr.bf16.mxu0 0
        %4711 = vmatpush2.bf16.msra.mxu0 0
        %4712 = vmatprep.subr.bf16.mxu0 0
        %4713 = vmatpush2.bf16.msra.mxu0 0
        %4714 = vmatprep.subr.bf16.mxu0 0
        %4715 = vmatpush2.bf16.msra.mxu0 0
        %4716 = vmatprep.subr.bf16.mxu0 0
        %4717 = vmatpush2.bf16.msra.mxu0 0
        %4718 = vmatprep.subr.bf16.mxu0 0
        %4719 = vmatpush2.bf16.msra.mxu0 0
        %4720 = vmatprep.mubr.bf16.mxu0 0
        %4721 = vmatmul.mubr.bf16.gmra.mxu0 %v4677
        %v4722 = vpop.f32.mrf.mxu0
        %v4723 = vadd.f32 0.0, %v4722
        %v4724 = vpop.f32.mrf.mxu0
        %v4725 = vpop.f32.mrf.mxu0
        %v4726 = vadd.f32 0.0, %v4725
        %v4727 = vpop.f32.mrf.mxu0
        %4728 = vmatprep.mubr.bf16.mxu0 0
        %4729 = vmatmul.mubr.bf16.gmra.mxu0 %v4680
        %v4730 = vpop.f32.mrf.mxu0
        %v4731 = vadd.f32 0.0, %v4730
        %v4732 = vpop.f32.mrf.mxu0
        %v4733 = vpop.f32.mrf.mxu0
        %v4734 = vadd.f32 0.0, %v4733
        %v4735 = vpop.f32.mrf.mxu0
        %4736 = vmatprep.mubr.bf16.mxu0 0
        %4737 = vmatmul.mubr.bf16.gmra.mxu0 %v4683
        %v4738 = vpop.f32.mrf.mxu0
        %v4739 = vadd.f32 0.0, %v4738
        %v4740 = vpop.f32.mrf.mxu0
        %v4741 = vpop.f32.mrf.mxu0
        %v4742 = vadd.f32 0.0, %v4741
        %v4743 = vpop.f32.mrf.mxu0
        %4744 = vmatprep.mubr.bf16.mxu0 0
        %4745 = vmatmul.mubr.bf16.gmra.mxu0 %v4686
        %v4746 = vpop.f32.mrf.mxu0
        %v4747 = vadd.f32 0.0, %v4746
        %v4748 = vpop.f32.mrf.mxu0
        %v4749 = vpop.f32.mrf.mxu0
        %v4750 = vadd.f32 0.0, %v4749
        %v4751 = vpop.f32.mrf.mxu0
        %4752 = vdwg.mxu0
        %v4754 = vsel %vm4230, %v4591, 0
        %v4757 = vsel %vm4230, %v4592, 0
        %v4760 = vsel %vm4230, %v4593, 0
        %v4763 = vsel %vm4230, %v4594, 0
        %4765 = vmatprep.subr.bf16.mxu0 0
        %4766 = vmatpush1.bf16.msra.mxu0 0
        %4767 = vmatprep.subr.bf16.mxu0 0
        %4768 = vmatpush1.bf16.msra.mxu0 0
        %4769 = vmatprep.subr.bf16.mxu0 0
        %4770 = vmatpush1.bf16.msra.mxu0 0
        %4771 = vmatprep.subr.bf16.mxu0 0
        %4772 = vmatpush1.bf16.msra.mxu0 0
        %4773 = vmatprep.subr.bf16.mxu0 0
        %4774 = vmatpush1.bf16.msra.mxu0 %v3829
        %4775 = vmatprep.subr.bf16.mxu0 0
        %4776 = vmatpush1.bf16.msra.mxu0 %v3789
        %4777 = vmatprep.subr.bf16.mxu0 0
        %4778 = vmatpush1.bf16.msra.mxu0 %v3749
        %4779 = vmatprep.subr.bf16.mxu0 0
        %4780 = vmatpush1.bf16.msra.mxu0 %v3709
        %4781 = vmatprep.subr.bf16.mxu0 0
        %4782 = vmatpush2.bf16.msra.mxu0 0
        %4783 = vmatprep.subr.bf16.mxu0 0
        %4784 = vmatpush2.bf16.msra.mxu0 0
        %4785 = vmatprep.subr.bf16.mxu0 0
        %4786 = vmatpush2.bf16.msra.mxu0 0
        %4787 = vmatprep.subr.bf16.mxu0 0
        %4788 = vmatpush2.bf16.msra.mxu0 0
        %4789 = vmatprep.subr.bf16.mxu0 0
        %4790 = vmatpush2.bf16.msra.mxu0 0
        %4791 = vmatprep.subr.bf16.mxu0 0
        %4792 = vmatpush2.bf16.msra.mxu0 0
        %4793 = vmatprep.subr.bf16.mxu0 0
        %4794 = vmatpush2.bf16.msra.mxu0 0
        %4795 = vmatprep.subr.bf16.mxu0 0
        %4796 = vmatpush2.bf16.msra.mxu0 0
        %4797 = vmatprep.mubr.bf16.mxu0 0
        %4798 = vmatmul.mubr.bf16.gmra.mxu0 %v4754
        %v4799 = vpop.f32.mrf.mxu0
        %v4800 = vadd.f32 0.0, %v4799
        %v4801 = vpop.f32.mrf.mxu0
        %v4802 = vpop.f32.mrf.mxu0
        %v4803 = vadd.f32 0.0, %v4802
        %v4804 = vpop.f32.mrf.mxu0
        %4805 = vmatprep.mubr.bf16.mxu0 0
        %4806 = vmatmul.mubr.bf16.gmra.mxu0 %v4757
        %v4807 = vpop.f32.mrf.mxu0
        %v4808 = vadd.f32 0.0, %v4807
        %v4809 = vpop.f32.mrf.mxu0
        %v4810 = vpop.f32.mrf.mxu0
        %v4811 = vadd.f32 0.0, %v4810
        %v4812 = vpop.f32.mrf.mxu0
        %4813 = vmatprep.mubr.bf16.mxu0 0
        %4814 = vmatmul.mubr.bf16.gmra.mxu0 %v4760
        %v4815 = vpop.f32.mrf.mxu0
        %v4816 = vadd.f32 0.0, %v4815
        %v4817 = vpop.f32.mrf.mxu0
        %v4818 = vpop.f32.mrf.mxu0
        %v4819 = vadd.f32 0.0, %v4818
        %v4820 = vpop.f32.mrf.mxu0
        %4821 = vmatprep.mubr.bf16.mxu0 0
        %4822 = vmatmul.mubr.bf16.gmra.mxu0 %v4763
        %v4823 = vpop.f32.mrf.mxu0
        %v4824 = vadd.f32 0.0, %v4823
        %v4825 = vpop.f32.mrf.mxu0
        %v4826 = vpop.f32.mrf.mxu0
        %v4827 = vadd.f32 0.0, %v4826
        %v4828 = vpop.f32.mrf.mxu0
        %4829 = vdwg.mxu0
        %v4831 = vsel %vm4230, %v4595, 0
        %v4834 = vsel %vm4230, %v4596, 0
        %v4837 = vsel %vm4230, %v4597, 0
        %v4840 = vsel %vm4230, %v4598, 0
        %4842 = vmatprep.subr.bf16.mxu0 0
        %4843 = vmatpush1.bf16.msra.mxu0 0
        %4844 = vmatprep.subr.bf16.mxu0 0
        %4845 = vmatpush1.bf16.msra.mxu0 0
        %4846 = vmatprep.subr.bf16.mxu0 0
        %4847 = vmatpush1.bf16.msra.mxu0 0
        %4848 = vmatprep.subr.bf16.mxu0 0
        %4849 = vmatpush1.bf16.msra.mxu0 0
        %4850 = vmatprep.subr.bf16.mxu0 0
        %4851 = vmatpush1.bf16.msra.mxu0 %v3833
        %4852 = vmatprep.subr.bf16.mxu0 0
        %4853 = vmatpush1.bf16.msra.mxu0 %v3793
        %4854 = vmatprep.subr.bf16.mxu0 0
        %4855 = vmatpush1.bf16.msra.mxu0 %v3753
        %4856 = vmatprep.subr.bf16.mxu0 0
        %4857 = vmatpush1.bf16.msra.mxu0 %v3713
        %4858 = vmatprep.subr.bf16.mxu0 0
        %4859 = vmatpush2.bf16.msra.mxu0 0
        %4860 = vmatprep.subr.bf16.mxu0 0
        %4861 = vmatpush2.bf16.msra.mxu0 0
        %4862 = vmatprep.subr.bf16.mxu0 0
        %4863 = vmatpush2.bf16.msra.mxu0 0
        %4864 = vmatprep.subr.bf16.mxu0 0
        %4865 = vmatpush2.bf16.msra.mxu0 0
        %4866 = vmatprep.subr.bf16.mxu0 0
        %4867 = vmatpush2.bf16.msra.mxu0 0
        %4868 = vmatprep.subr.bf16.mxu0 0
        %4869 = vmatpush2.bf16.msra.mxu0 0
        %4870 = vmatprep.subr.bf16.mxu0 0
        %4871 = vmatpush2.bf16.msra.mxu0 0
        %4872 = vmatprep.subr.bf16.mxu0 0
        %4873 = vmatpush2.bf16.msra.mxu0 0
        %4874 = vmatprep.mubr.bf16.mxu0 0
        %4875 = vmatmul.mubr.bf16.gmra.mxu0 %v4831
        %v4876 = vpop.f32.mrf.mxu0
        %v4877 = vadd.f32 0.0, %v4876
        %v4878 = vpop.f32.mrf.mxu0
        %v4879 = vpop.f32.mrf.mxu0
        %v4880 = vadd.f32 0.0, %v4879
        %v4881 = vpop.f32.mrf.mxu0
        %4882 = vmatprep.mubr.bf16.mxu0 0
        %4883 = vmatmul.mubr.bf16.gmra.mxu0 %v4834
        %v4884 = vpop.f32.mrf.mxu0
        %v4885 = vadd.f32 0.0, %v4884
        %v4886 = vpop.f32.mrf.mxu0
        %v4887 = vpop.f32.mrf.mxu0
        %v4888 = vadd.f32 0.0, %v4887
        %v4889 = vpop.f32.mrf.mxu0
        %4890 = vmatprep.mubr.bf16.mxu0 0
        %4891 = vmatmul.mubr.bf16.gmra.mxu0 %v4837
        %v4892 = vpop.f32.mrf.mxu0
        %v4893 = vadd.f32 0.0, %v4892
        %v4894 = vpop.f32.mrf.mxu0
        %v4895 = vpop.f32.mrf.mxu0
        %v4896 = vadd.f32 0.0, %v4895
        %v4897 = vpop.f32.mrf.mxu0
        %4898 = vmatprep.mubr.bf16.mxu0 0
        %4899 = vmatmul.mubr.bf16.gmra.mxu0 %v4840
        %v4900 = vpop.f32.mrf.mxu0
        %v4901 = vadd.f32 0.0, %v4900
        %v4902 = vpop.f32.mrf.mxu0
        %v4903 = vpop.f32.mrf.mxu0
        %v4904 = vadd.f32 0.0, %v4903
        %v4905 = vpop.f32.mrf.mxu0
        %4906 = vdwg.mxu0
        %v4907 = vcombine.low %v4646, %v4800
        %v4908 = vcombine.high %v4646, %v4800
        %v4910 = vunpack.c.l.s4 1983009808
        %v4911 = vunpack.c.0.s8 %v4910
        %v4912 = vlaneseq
        %v4913 = vshrl.u32 %v4912, 7
        %v4914 = vsub.s32 %v4911, %v4913
        %v4915 = vrot.slane %v4907, %v4914
        %v4917 = vunpack.c.l.s4 1983009808
        %v4918 = vunpack.c.0.s8 %v4917
        %v4919 = vlaneseq
        %v4920 = vshrl.u32 %v4919, 7
        %v4921 = vsub.s32 %v4918, %v4920
        %v4922 = vrot.slane %v4908, %v4921
        %v4923 = vcombine.low %v4723, %v4877
        %v4924 = vcombine.high %v4723, %v4877
        %v4926 = vunpack.c.l.s4 1983009808
        %v4927 = vunpack.c.0.s8 %v4926
        %v4928 = vlaneseq
        %v4929 = vshrl.u32 %v4928, 7
        %v4930 = vsub.s32 %v4927, %v4929
        %v4931 = vrot.slane %v4923, %v4930
        %v4933 = vunpack.c.l.s4 1983009808
        %v4934 = vunpack.c.0.s8 %v4933
        %v4935 = vlaneseq
        %v4936 = vshrl.u32 %v4935, 7
        %v4937 = vsub.s32 %v4934, %v4936
        %v4938 = vrot.slane %v4924, %v4937
        %v4939 = vcombine.low %v4915, %v4931
        %v4940 = vcombine.high %v4915, %v4931
        %v4942 = vunpack.c.l.s4 1934713408
        %v4943 = vunpack.c.0.s8 %v4942
        %v4944 = vlaneseq
        %v4945 = vshrl.u32 %v4944, 7
        %v4946 = vsub.s32 %v4943, %v4945
        %v4947 = vrot.slane %v4939, %v4946
        %v4949 = vunpack.c.l.s4 1934713408
        %v4950 = vunpack.c.0.s8 %v4949
        %v4951 = vlaneseq
        %v4952 = vshrl.u32 %v4951, 7
        %v4953 = vsub.s32 %v4950, %v4952
        %v4954 = vrot.slane %v4940, %v4953
        %v4955 = vcombine.low %v4922, %v4938
        %v4956 = vcombine.high %v4922, %v4938
        %v4958 = vunpack.c.l.s4 1934713408
        %v4959 = vunpack.c.0.s8 %v4958
        %v4960 = vlaneseq
        %v4961 = vshrl.u32 %v4960, 7
        %v4962 = vsub.s32 %v4959, %v4961
        %v4963 = vrot.slane %v4955, %v4962
        %v4965 = vunpack.c.l.s4 1934713408
        %v4966 = vunpack.c.0.s8 %v4965
        %v4967 = vlaneseq
        %v4968 = vshrl.u32 %v4967, 7
        %v4969 = vsub.s32 %v4966, %v4968
        %v4970 = vrot.slane %v4956, %v4969
        %v4971 = vcombine.high %v4947, 0.0
        %v4972 = vcombine.high %v4954, 0.0
        %v4973 = vcombine.high %v4963, 0.0
        %v4974 = vcombine.high %v4970, 0.0
        %v4975 = vcombine.low %v4649, %v4803
        %v4976 = vcombine.high %v4649, %v4803
        %v4978 = vunpack.c.l.s4 1983009808
        %v4979 = vunpack.c.0.s8 %v4978
        %v4980 = vlaneseq
        %v4981 = vshrl.u32 %v4980, 7
        %v4982 = vsub.s32 %v4979, %v4981
        %v4983 = vrot.slane %v4975, %v4982
        %v4985 = vunpack.c.l.s4 1983009808
        %v4986 = vunpack.c.0.s8 %v4985
        %v4987 = vlaneseq
        %v4988 = vshrl.u32 %v4987, 7
        %v4989 = vsub.s32 %v4986, %v4988
        %v4990 = vrot.slane %v4976, %v4989
        %v4991 = vcombine.low %v4726, %v4880
        %v4992 = vcombine.high %v4726, %v4880
        %v4994 = vunpack.c.l.s4 1983009808
        %v4995 = vunpack.c.0.s8 %v4994
        %v4996 = vlaneseq
        %v4997 = vshrl.u32 %v4996, 7
        %v4998 = vsub.s32 %v4995, %v4997
        %v4999 = vrot.slane %v4991, %v4998
        %v5001 = vunpack.c.l.s4 1983009808
        %v5002 = vunpack.c.0.s8 %v5001
        %v5003 = vlaneseq
        %v5004 = vshrl.u32 %v5003, 7
        %v5005 = vsub.s32 %v5002, %v5004
        %v5006 = vrot.slane %v4992, %v5005
        %v5007 = vcombine.low %v4983, %v4999
        %v5008 = vcombine.high %v4983, %v4999
        %v5010 = vunpack.c.l.s4 1934713408
        %v5011 = vunpack.c.0.s8 %v5010
        %v5012 = vlaneseq
        %v5013 = vshrl.u32 %v5012, 7
        %v5014 = vsub.s32 %v5011, %v5013
        %v5015 = vrot.slane %v5007, %v5014
        %v5017 = vunpack.c.l.s4 1934713408
        %v5018 = vunpack.c.0.s8 %v5017
        %v5019 = vlaneseq
        %v5020 = vshrl.u32 %v5019, 7
        %v5021 = vsub.s32 %v5018, %v5020
        %v5022 = vrot.slane %v5008, %v5021
        %v5023 = vcombine.low %v4990, %v5006
        %v5024 = vcombine.high %v4990, %v5006
        %v5026 = vunpack.c.l.s4 1934713408
        %v5027 = vunpack.c.0.s8 %v5026
        %v5028 = vlaneseq
        %v5029 = vshrl.u32 %v5028, 7
        %v5030 = vsub.s32 %v5027, %v5029
        %v5031 = vrot.slane %v5023, %v5030
        %v5033 = vunpack.c.l.s4 1934713408
        %v5034 = vunpack.c.0.s8 %v5033
        %v5035 = vlaneseq
        %v5036 = vshrl.u32 %v5035, 7
        %v5037 = vsub.s32 %v5034, %v5036
        %v5038 = vrot.slane %v5024, %v5037
        %v5039 = vcombine.high %v5015, 0.0
        %v5040 = vcombine.high %v5022, 0.0
        %v5041 = vcombine.high %v5031, 0.0
        %v5042 = vcombine.high %v5038, 0.0
        %v5043 = vcombine.low %v4654, %v4808
        %v5044 = vcombine.high %v4654, %v4808
        %v5046 = vunpack.c.l.s4 1983009808
        %v5047 = vunpack.c.0.s8 %v5046
        %v5048 = vlaneseq
        %v5049 = vshrl.u32 %v5048, 7
        %v5050 = vsub.s32 %v5047, %v5049
        %v5051 = vrot.slane %v5043, %v5050
        %v5053 = vunpack.c.l.s4 1983009808
        %v5054 = vunpack.c.0.s8 %v5053
        %v5055 = vlaneseq
        %v5056 = vshrl.u32 %v5055, 7
        %v5057 = vsub.s32 %v5054, %v5056
        %v5058 = vrot.slane %v5044, %v5057
        %v5059 = vcombine.low %v4731, %v4885
        %v5060 = vcombine.high %v4731, %v4885
        %v5062 = vunpack.c.l.s4 1983009808
        %v5063 = vunpack.c.0.s8 %v5062
        %v5064 = vlaneseq
        %v5065 = vshrl.u32 %v5064, 7
        %v5066 = vsub.s32 %v5063, %v5065
        %v5067 = vrot.slane %v5059, %v5066
        %v5069 = vunpack.c.l.s4 1983009808
        %v5070 = vunpack.c.0.s8 %v5069
        %v5071 = vlaneseq
        %v5072 = vshrl.u32 %v5071, 7
        %v5073 = vsub.s32 %v5070, %v5072
        %v5074 = vrot.slane %v5060, %v5073
        %v5075 = vcombine.low %v5051, %v5067
        %v5076 = vcombine.high %v5051, %v5067
        %v5078 = vunpack.c.l.s4 1934713408
        %v5079 = vunpack.c.0.s8 %v5078
        %v5080 = vlaneseq
        %v5081 = vshrl.u32 %v5080, 7
        %v5082 = vsub.s32 %v5079, %v5081
        %v5083 = vrot.slane %v5075, %v5082
        %v5085 = vunpack.c.l.s4 1934713408
        %v5086 = vunpack.c.0.s8 %v5085
        %v5087 = vlaneseq
        %v5088 = vshrl.u32 %v5087, 7
        %v5089 = vsub.s32 %v5086, %v5088
        %v5090 = vrot.slane %v5076, %v5089
        %v5091 = vcombine.low %v5058, %v5074
        %v5092 = vcombine.high %v5058, %v5074
        %v5094 = vunpack.c.l.s4 1934713408
        %v5095 = vunpack.c.0.s8 %v5094
        %v5096 = vlaneseq
        %v5097 = vshrl.u32 %v5096, 7
        %v5098 = vsub.s32 %v5095, %v5097
        %v5099 = vrot.slane %v5091, %v5098
        %v5101 = vunpack.c.l.s4 1934713408
        %v5102 = vunpack.c.0.s8 %v5101
        %v5103 = vlaneseq
        %v5104 = vshrl.u32 %v5103, 7
        %v5105 = vsub.s32 %v5102, %v5104
        %v5106 = vrot.slane %v5092, %v5105
        %v5107 = vcombine.high %v5083, 0.0
        %v5108 = vcombine.high %v5090, 0.0
        %v5109 = vcombine.high %v5099, 0.0
        %v5110 = vcombine.high %v5106, 0.0
        %v5111 = vcombine.low %v4657, %v4811
        %v5112 = vcombine.high %v4657, %v4811
        %v5114 = vunpack.c.l.s4 1983009808
        %v5115 = vunpack.c.0.s8 %v5114
        %v5116 = vlaneseq
        %v5117 = vshrl.u32 %v5116, 7
        %v5118 = vsub.s32 %v5115, %v5117
        %v5119 = vrot.slane %v5111, %v5118
        %v5121 = vunpack.c.l.s4 1983009808
        %v5122 = vunpack.c.0.s8 %v5121
        %v5123 = vlaneseq
        %v5124 = vshrl.u32 %v5123, 7
        %v5125 = vsub.s32 %v5122, %v5124
        %v5126 = vrot.slane %v5112, %v5125
        %v5127 = vcombine.low %v4734, %v4888
        %v5128 = vcombine.high %v4734, %v4888
        %v5130 = vunpack.c.l.s4 1983009808
        %v5131 = vunpack.c.0.s8 %v5130
        %v5132 = vlaneseq
        %v5133 = vshrl.u32 %v5132, 7
        %v5134 = vsub.s32 %v5131, %v5133
        %v5135 = vrot.slane %v5127, %v5134
        %v5137 = vunpack.c.l.s4 1983009808
        %v5138 = vunpack.c.0.s8 %v5137
        %v5139 = vlaneseq
        %v5140 = vshrl.u32 %v5139, 7
        %v5141 = vsub.s32 %v5138, %v5140
        %v5142 = vrot.slane %v5128, %v5141
        %v5143 = vcombine.low %v5119, %v5135
        %v5144 = vcombine.high %v5119, %v5135
        %v5146 = vunpack.c.l.s4 1934713408
        %v5147 = vunpack.c.0.s8 %v5146
        %v5148 = vlaneseq
        %v5149 = vshrl.u32 %v5148, 7
        %v5150 = vsub.s32 %v5147, %v5149
        %v5151 = vrot.slane %v5143, %v5150
        %v5153 = vunpack.c.l.s4 1934713408
        %v5154 = vunpack.c.0.s8 %v5153
        %v5155 = vlaneseq
        %v5156 = vshrl.u32 %v5155, 7
        %v5157 = vsub.s32 %v5154, %v5156
        %v5158 = vrot.slane %v5144, %v5157
        %v5159 = vcombine.low %v5126, %v5142
        %v5160 = vcombine.high %v5126, %v5142
        %v5162 = vunpack.c.l.s4 1934713408
        %v5163 = vunpack.c.0.s8 %v5162
        %v5164 = vlaneseq
        %v5165 = vshrl.u32 %v5164, 7
        %v5166 = vsub.s32 %v5163, %v5165
        %v5167 = vrot.slane %v5159, %v5166
        %v5169 = vunpack.c.l.s4 1934713408
        %v5170 = vunpack.c.0.s8 %v5169
        %v5171 = vlaneseq
        %v5172 = vshrl.u32 %v5171, 7
        %v5173 = vsub.s32 %v5170, %v5172
        %v5174 = vrot.slane %v5160, %v5173
        %v5175 = vcombine.high %v5151, 0.0
        %v5176 = vcombine.high %v5158, 0.0
        %v5177 = vcombine.high %v5167, 0.0
        %v5178 = vcombine.high %v5174, 0.0
        %v5179 = vcombine.low %v4662, %v4816
        %v5180 = vcombine.high %v4662, %v4816
        %v5182 = vunpack.c.l.s4 1983009808
        %v5183 = vunpack.c.0.s8 %v5182
        %v5184 = vlaneseq
        %v5185 = vshrl.u32 %v5184, 7
        %v5186 = vsub.s32 %v5183, %v5185
        %v5187 = vrot.slane %v5179, %v5186
        %v5189 = vunpack.c.l.s4 1983009808
        %v5190 = vunpack.c.0.s8 %v5189
        %v5191 = vlaneseq
        %v5192 = vshrl.u32 %v5191, 7
        %v5193 = vsub.s32 %v5190, %v5192
        %v5194 = vrot.slane %v5180, %v5193
        %v5195 = vcombine.low %v4739, %v4893
        %v5196 = vcombine.high %v4739, %v4893
        %v5198 = vunpack.c.l.s4 1983009808
        %v5199 = vunpack.c.0.s8 %v5198
        %v5200 = vlaneseq
        %v5201 = vshrl.u32 %v5200, 7
        %v5202 = vsub.s32 %v5199, %v5201
        %v5203 = vrot.slane %v5195, %v5202
        %v5205 = vunpack.c.l.s4 1983009808
        %v5206 = vunpack.c.0.s8 %v5205
        %v5207 = vlaneseq
        %v5208 = vshrl.u32 %v5207, 7
        %v5209 = vsub.s32 %v5206, %v5208
        %v5210 = vrot.slane %v5196, %v5209
        %v5211 = vcombine.low %v5187, %v5203
        %v5212 = vcombine.high %v5187, %v5203
        %v5214 = vunpack.c.l.s4 1934713408
        %v5215 = vunpack.c.0.s8 %v5214
        %v5216 = vlaneseq
        %v5217 = vshrl.u32 %v5216, 7
        %v5218 = vsub.s32 %v5215, %v5217
        %v5219 = vrot.slane %v5211, %v5218
        %v5221 = vunpack.c.l.s4 1934713408
        %v5222 = vunpack.c.0.s8 %v5221
        %v5223 = vlaneseq
        %v5224 = vshrl.u32 %v5223, 7
        %v5225 = vsub.s32 %v5222, %v5224
        %v5226 = vrot.slane %v5212, %v5225
        %v5227 = vcombine.low %v5194, %v5210
        %v5228 = vcombine.high %v5194, %v5210
        %v5230 = vunpack.c.l.s4 1934713408
        %v5231 = vunpack.c.0.s8 %v5230
        %v5232 = vlaneseq
        %v5233 = vshrl.u32 %v5232, 7
        %v5234 = vsub.s32 %v5231, %v5233
        %v5235 = vrot.slane %v5227, %v5234
        %v5237 = vunpack.c.l.s4 1934713408
        %v5238 = vunpack.c.0.s8 %v5237
        %v5239 = vlaneseq
        %v5240 = vshrl.u32 %v5239, 7
        %v5241 = vsub.s32 %v5238, %v5240
        %v5242 = vrot.slane %v5228, %v5241
        %v5243 = vcombine.high %v5219, 0.0
        %v5244 = vcombine.high %v5226, 0.0
        %v5245 = vcombine.high %v5235, 0.0
        %v5246 = vcombine.high %v5242, 0.0
        %v5247 = vcombine.low %v4665, %v4819
        %v5248 = vcombine.high %v4665, %v4819
        %v5250 = vunpack.c.l.s4 1983009808
        %v5251 = vunpack.c.0.s8 %v5250
        %v5252 = vlaneseq
        %v5253 = vshrl.u32 %v5252, 7
        %v5254 = vsub.s32 %v5251, %v5253
        %v5255 = vrot.slane %v5247, %v5254
        %v5257 = vunpack.c.l.s4 1983009808
        %v5258 = vunpack.c.0.s8 %v5257
        %v5259 = vlaneseq
        %v5260 = vshrl.u32 %v5259, 7
        %v5261 = vsub.s32 %v5258, %v5260
        %v5262 = vrot.slane %v5248, %v5261
        %v5263 = vcombine.low %v4742, %v4896
        %v5264 = vcombine.high %v4742, %v4896
        %v5266 = vunpack.c.l.s4 1983009808
        %v5267 = vunpack.c.0.s8 %v5266
        %v5268 = vlaneseq
        %v5269 = vshrl.u32 %v5268, 7
        %v5270 = vsub.s32 %v5267, %v5269
        %v5271 = vrot.slane %v5263, %v5270
        %v5273 = vunpack.c.l.s4 1983009808
        %v5274 = vunpack.c.0.s8 %v5273
        %v5275 = vlaneseq
        %v5276 = vshrl.u32 %v5275, 7
        %v5277 = vsub.s32 %v5274, %v5276
        %v5278 = vrot.slane %v5264, %v5277
        %v5279 = vcombine.low %v5255, %v5271
        %v5280 = vcombine.high %v5255, %v5271
        %v5282 = vunpack.c.l.s4 1934713408
        %v5283 = vunpack.c.0.s8 %v5282
        %v5284 = vlaneseq
        %v5285 = vshrl.u32 %v5284, 7
        %v5286 = vsub.s32 %v5283, %v5285
        %v5287 = vrot.slane %v5279, %v5286
        %v5289 = vunpack.c.l.s4 1934713408
        %v5290 = vunpack.c.0.s8 %v5289
        %v5291 = vlaneseq
        %v5292 = vshrl.u32 %v5291, 7
        %v5293 = vsub.s32 %v5290, %v5292
        %v5294 = vrot.slane %v5280, %v5293
        %v5295 = vcombine.low %v5262, %v5278
        %v5296 = vcombine.high %v5262, %v5278
        %v5298 = vunpack.c.l.s4 1934713408
        %v5299 = vunpack.c.0.s8 %v5298
        %v5300 = vlaneseq
        %v5301 = vshrl.u32 %v5300, 7
        %v5302 = vsub.s32 %v5299, %v5301
        %v5303 = vrot.slane %v5295, %v5302
        %v5305 = vunpack.c.l.s4 1934713408
        %v5306 = vunpack.c.0.s8 %v5305
        %v5307 = vlaneseq
        %v5308 = vshrl.u32 %v5307, 7
        %v5309 = vsub.s32 %v5306, %v5308
        %v5310 = vrot.slane %v5296, %v5309
        %v5311 = vcombine.high %v5287, 0.0
        %v5312 = vcombine.high %v5294, 0.0
        %v5313 = vcombine.high %v5303, 0.0
        %v5314 = vcombine.high %v5310, 0.0
        %v5315 = vcombine.low %v4670, %v4824
        %v5316 = vcombine.high %v4670, %v4824
        %v5318 = vunpack.c.l.s4 1983009808
        %v5319 = vunpack.c.0.s8 %v5318
        %v5320 = vlaneseq
        %v5321 = vshrl.u32 %v5320, 7
        %v5322 = vsub.s32 %v5319, %v5321
        %v5323 = vrot.slane %v5315, %v5322
        %v5325 = vunpack.c.l.s4 1983009808
        %v5326 = vunpack.c.0.s8 %v5325
        %v5327 = vlaneseq
        %v5328 = vshrl.u32 %v5327, 7
        %v5329 = vsub.s32 %v5326, %v5328
        %v5330 = vrot.slane %v5316, %v5329
        %v5331 = vcombine.low %v4747, %v4901
        %v5332 = vcombine.high %v4747, %v4901
        %v5334 = vunpack.c.l.s4 1983009808
        %v5335 = vunpack.c.0.s8 %v5334
        %v5336 = vlaneseq
        %v5337 = vshrl.u32 %v5336, 7
        %v5338 = vsub.s32 %v5335, %v5337
        %v5339 = vrot.slane %v5331, %v5338
        %v5341 = vunpack.c.l.s4 1983009808
        %v5342 = vunpack.c.0.s8 %v5341
        %v5343 = vlaneseq
        %v5344 = vshrl.u32 %v5343, 7
        %v5345 = vsub.s32 %v5342, %v5344
        %v5346 = vrot.slane %v5332, %v5345
        %v5347 = vcombine.low %v5323, %v5339
        %v5348 = vcombine.high %v5323, %v5339
        %v5350 = vunpack.c.l.s4 1934713408
        %v5351 = vunpack.c.0.s8 %v5350
        %v5352 = vlaneseq
        %v5353 = vshrl.u32 %v5352, 7
        %v5354 = vsub.s32 %v5351, %v5353
        %v5355 = vrot.slane %v5347, %v5354
        %v5357 = vunpack.c.l.s4 1934713408
        %v5358 = vunpack.c.0.s8 %v5357
        %v5359 = vlaneseq
        %v5360 = vshrl.u32 %v5359, 7
        %v5361 = vsub.s32 %v5358, %v5360
        %v5362 = vrot.slane %v5348, %v5361
        %v5363 = vcombine.low %v5330, %v5346
        %v5364 = vcombine.high %v5330, %v5346
        %v5366 = vunpack.c.l.s4 1934713408
        %v5367 = vunpack.c.0.s8 %v5366
        %v5368 = vlaneseq
        %v5369 = vshrl.u32 %v5368, 7
        %v5370 = vsub.s32 %v5367, %v5369
        %v5371 = vrot.slane %v5363, %v5370
        %v5373 = vunpack.c.l.s4 1934713408
        %v5374 = vunpack.c.0.s8 %v5373
        %v5375 = vlaneseq
        %v5376 = vshrl.u32 %v5375, 7
        %v5377 = vsub.s32 %v5374, %v5376
        %v5378 = vrot.slane %v5364, %v5377
        %v5379 = vcombine.high %v5355, 0.0
        %v5380 = vcombine.high %v5362, 0.0
        %v5381 = vcombine.high %v5371, 0.0
        %v5382 = vcombine.high %v5378, 0.0
        %v5383 = vcombine.low %v4673, %v4827
        %v5384 = vcombine.high %v4673, %v4827
        %v5386 = vunpack.c.l.s4 1983009808
        %v5387 = vunpack.c.0.s8 %v5386
        %v5388 = vlaneseq
        %v5389 = vshrl.u32 %v5388, 7
        %v5390 = vsub.s32 %v5387, %v5389
        %v5391 = vrot.slane %v5383, %v5390
        %v5393 = vunpack.c.l.s4 1983009808
        %v5394 = vunpack.c.0.s8 %v5393
        %v5395 = vlaneseq
        %v5396 = vshrl.u32 %v5395, 7
        %v5397 = vsub.s32 %v5394, %v5396
        %v5398 = vrot.slane %v5384, %v5397
        %v5399 = vcombine.low %v4750, %v4904
        %v5400 = vcombine.high %v4750, %v4904
        %v5402 = vunpack.c.l.s4 1983009808
        %v5403 = vunpack.c.0.s8 %v5402
        %v5404 = vlaneseq
        %v5405 = vshrl.u32 %v5404, 7
        %v5406 = vsub.s32 %v5403, %v5405
        %v5407 = vrot.slane %v5399, %v5406
        %v5409 = vunpack.c.l.s4 1983009808
        %v5410 = vunpack.c.0.s8 %v5409
        %v5411 = vlaneseq
        %v5412 = vshrl.u32 %v5411, 7
        %v5413 = vsub.s32 %v5410, %v5412
        %v5414 = vrot.slane %v5400, %v5413
        %v5415 = vcombine.low %v5391, %v5407
        %v5416 = vcombine.high %v5391, %v5407
        %v5418 = vunpack.c.l.s4 1934713408
        %v5419 = vunpack.c.0.s8 %v5418
        %v5420 = vlaneseq
        %v5421 = vshrl.u32 %v5420, 7
        %v5422 = vsub.s32 %v5419, %v5421
        %v5423 = vrot.slane %v5415, %v5422
        %v5425 = vunpack.c.l.s4 1934713408
        %v5426 = vunpack.c.0.s8 %v5425
        %v5427 = vlaneseq
        %v5428 = vshrl.u32 %v5427, 7
        %v5429 = vsub.s32 %v5426, %v5428
        %v5430 = vrot.slane %v5416, %v5429
        %v5431 = vcombine.low %v5398, %v5414
        %v5432 = vcombine.high %v5398, %v5414
        %v5434 = vunpack.c.l.s4 1934713408
        %v5435 = vunpack.c.0.s8 %v5434
        %v5436 = vlaneseq
        %v5437 = vshrl.u32 %v5436, 7
        %v5438 = vsub.s32 %v5435, %v5437
        %v5439 = vrot.slane %v5431, %v5438
        %v5441 = vunpack.c.l.s4 1934713408
        %v5442 = vunpack.c.0.s8 %v5441
        %v5443 = vlaneseq
        %v5444 = vshrl.u32 %v5443, 7
        %v5445 = vsub.s32 %v5442, %v5444
        %v5446 = vrot.slane %v5432, %v5445
        %v5447 = vcombine.high %v5423, 0.0
        %v5448 = vcombine.high %v5430, 0.0
        %v5449 = vcombine.high %v5439, 0.0
        %v5450 = vcombine.high %v5446, 0.0
        %v5451 = vcombine.low %v4947, %v4954
        %v5453 = vunpack.c.l.s4 1983009808
        %v5454 = vunpack.c.0.s8 %v5453
        %v5455 = vlaneseq
        %v5456 = vshrl.u32 %v5455, 7
        %v5457 = vsub.s32 %v5454, %v5456
        %v5458 = vrot.slane %v5451, %v5457
        %v5459 = vcombine.low %v4971, %v4972
        %v5461 = vunpack.c.l.s4 1983009808
        %v5462 = vunpack.c.0.s8 %v5461
        %v5463 = vlaneseq
        %v5464 = vshrl.u32 %v5463, 7
        %v5465 = vsub.s32 %v5462, %v5464
        %v5466 = vrot.slane %v5459, %v5465
        %v5467 = vcombine.low %v4963, %v4970
        %v5469 = vunpack.c.l.s4 1983009808
        %v5470 = vunpack.c.0.s8 %v5469
        %v5471 = vlaneseq
        %v5472 = vshrl.u32 %v5471, 7
        %v5473 = vsub.s32 %v5470, %v5472
        %v5474 = vrot.slane %v5467, %v5473
        %v5475 = vcombine.low %v4973, %v4974
        %v5477 = vunpack.c.l.s4 1983009808
        %v5478 = vunpack.c.0.s8 %v5477
        %v5479 = vlaneseq
        %v5480 = vshrl.u32 %v5479, 7
        %v5481 = vsub.s32 %v5478, %v5480
        %v5482 = vrot.slane %v5475, %v5481
        %v5483 = vcombine.low %v5458, %v5466
        %v5484 = vcombine.high %v5458, %v5466
        %v5486 = vunpack.c.l.s4 1934713408
        %v5487 = vunpack.c.0.s8 %v5486
        %v5488 = vlaneseq
        %v5489 = vshrl.u32 %v5488, 7
        %v5490 = vsub.s32 %v5487, %v5489
        %v5491 = vrot.slane %v5483, %v5490
        %v5493 = vunpack.c.l.s4 1934713408
        %v5494 = vunpack.c.0.s8 %v5493
        %v5495 = vlaneseq
        %v5496 = vshrl.u32 %v5495, 7
        %v5497 = vsub.s32 %v5494, %v5496
        %v5498 = vrot.slane %v5484, %v5497
        %v5499 = vcombine.low %v5474, %v5482
        %v5500 = vcombine.high %v5474, %v5482
        %v5502 = vunpack.c.l.s4 1934713408
        %v5503 = vunpack.c.0.s8 %v5502
        %v5504 = vlaneseq
        %v5505 = vshrl.u32 %v5504, 7
        %v5506 = vsub.s32 %v5503, %v5505
        %v5507 = vrot.slane %v5499, %v5506
        %v5509 = vunpack.c.l.s4 1934713408
        %v5510 = vunpack.c.0.s8 %v5509
        %v5511 = vlaneseq
        %v5512 = vshrl.u32 %v5511, 7
        %v5513 = vsub.s32 %v5510, %v5512
        %v5514 = vrot.slane %v5500, %v5513
        %v5515 = vcombine.low %v5491, %v5507
        %v5516 = vcombine.high %v5491, %v5507
        %v5517 = vcombine.low %v5498, %v5514
        %v5518 = vcombine.high %v5498, %v5514
        %v5519 = vcombine.low %v5015, %v5022
        %v5521 = vunpack.c.l.s4 1983009808
        %v5522 = vunpack.c.0.s8 %v5521
        %v5523 = vlaneseq
        %v5524 = vshrl.u32 %v5523, 7
        %v5525 = vsub.s32 %v5522, %v5524
        %v5526 = vrot.slane %v5519, %v5525
        %v5527 = vcombine.low %v5039, %v5040
        %v5529 = vunpack.c.l.s4 1983009808
        %v5530 = vunpack.c.0.s8 %v5529
        %v5531 = vlaneseq
        %v5532 = vshrl.u32 %v5531, 7
        %v5533 = vsub.s32 %v5530, %v5532
        %v5534 = vrot.slane %v5527, %v5533
        %v5535 = vcombine.low %v5031, %v5038
        %v5537 = vunpack.c.l.s4 1983009808
        %v5538 = vunpack.c.0.s8 %v5537
        %v5539 = vlaneseq
        %v5540 = vshrl.u32 %v5539, 7
        %v5541 = vsub.s32 %v5538, %v5540
        %v5542 = vrot.slane %v5535, %v5541
        %v5543 = vcombine.low %v5041, %v5042
        %v5545 = vunpack.c.l.s4 1983009808
        %v5546 = vunpack.c.0.s8 %v5545
        %v5547 = vlaneseq
        %v5548 = vshrl.u32 %v5547, 7
        %v5549 = vsub.s32 %v5546, %v5548
        %v5550 = vrot.slane %v5543, %v5549
        %v5551 = vcombine.low %v5526, %v5534
        %v5552 = vcombine.high %v5526, %v5534
        %v5554 = vunpack.c.l.s4 1934713408
        %v5555 = vunpack.c.0.s8 %v5554
        %v5556 = vlaneseq
        %v5557 = vshrl.u32 %v5556, 7
        %v5558 = vsub.s32 %v5555, %v5557
        %v5559 = vrot.slane %v5551, %v5558
        %v5561 = vunpack.c.l.s4 1934713408
        %v5562 = vunpack.c.0.s8 %v5561
        %v5563 = vlaneseq
        %v5564 = vshrl.u32 %v5563, 7
        %v5565 = vsub.s32 %v5562, %v5564
        %v5566 = vrot.slane %v5552, %v5565
        %v5567 = vcombine.low %v5542, %v5550
        %v5568 = vcombine.high %v5542, %v5550
        %v5570 = vunpack.c.l.s4 1934713408
        %v5571 = vunpack.c.0.s8 %v5570
        %v5572 = vlaneseq
        %v5573 = vshrl.u32 %v5572, 7
        %v5574 = vsub.s32 %v5571, %v5573
        %v5575 = vrot.slane %v5567, %v5574
        %v5577 = vunpack.c.l.s4 1934713408
        %v5578 = vunpack.c.0.s8 %v5577
        %v5579 = vlaneseq
        %v5580 = vshrl.u32 %v5579, 7
        %v5581 = vsub.s32 %v5578, %v5580
        %v5582 = vrot.slane %v5568, %v5581
        %v5583 = vcombine.low %v5559, %v5575
        %v5584 = vcombine.high %v5559, %v5575
        %v5585 = vcombine.low %v5566, %v5582
        %v5586 = vcombine.high %v5566, %v5582
        %v5587 = vcombine.low %v5083, %v5090
        %v5589 = vunpack.c.l.s4 1983009808
        %v5590 = vunpack.c.0.s8 %v5589
        %v5591 = vlaneseq
        %v5592 = vshrl.u32 %v5591, 7
        %v5593 = vsub.s32 %v5590, %v5592
        %v5594 = vrot.slane %v5587, %v5593
        %v5595 = vcombine.low %v5107, %v5108
        %v5597 = vunpack.c.l.s4 1983009808
        %v5598 = vunpack.c.0.s8 %v5597
        %v5599 = vlaneseq
        %v5600 = vshrl.u32 %v5599, 7
        %v5601 = vsub.s32 %v5598, %v5600
        %v5602 = vrot.slane %v5595, %v5601
        %v5603 = vcombine.low %v5099, %v5106
        %v5605 = vunpack.c.l.s4 1983009808
        %v5606 = vunpack.c.0.s8 %v5605
        %v5607 = vlaneseq
        %v5608 = vshrl.u32 %v5607, 7
        %v5609 = vsub.s32 %v5606, %v5608
        %v5610 = vrot.slane %v5603, %v5609
        %v5611 = vcombine.low %v5109, %v5110
        %v5613 = vunpack.c.l.s4 1983009808
        %v5614 = vunpack.c.0.s8 %v5613
        %v5615 = vlaneseq
        %v5616 = vshrl.u32 %v5615, 7
        %v5617 = vsub.s32 %v5614, %v5616
        %v5618 = vrot.slane %v5611, %v5617
        %v5619 = vcombine.low %v5594, %v5602
        %v5620 = vcombine.high %v5594, %v5602
        %v5622 = vunpack.c.l.s4 1934713408
        %v5623 = vunpack.c.0.s8 %v5622
        %v5624 = vlaneseq
        %v5625 = vshrl.u32 %v5624, 7
        %v5626 = vsub.s32 %v5623, %v5625
        %v5627 = vrot.slane %v5619, %v5626
        %v5629 = vunpack.c.l.s4 1934713408
        %v5630 = vunpack.c.0.s8 %v5629
        %v5631 = vlaneseq
        %v5632 = vshrl.u32 %v5631, 7
        %v5633 = vsub.s32 %v5630, %v5632
        %v5634 = vrot.slane %v5620, %v5633
        %v5635 = vcombine.low %v5610, %v5618
        %v5636 = vcombine.high %v5610, %v5618
        %v5638 = vunpack.c.l.s4 1934713408
        %v5639 = vunpack.c.0.s8 %v5638
        %v5640 = vlaneseq
        %v5641 = vshrl.u32 %v5640, 7
        %v5642 = vsub.s32 %v5639, %v5641
        %v5643 = vrot.slane %v5635, %v5642
        %v5645 = vunpack.c.l.s4 1934713408
        %v5646 = vunpack.c.0.s8 %v5645
        %v5647 = vlaneseq
        %v5648 = vshrl.u32 %v5647, 7
        %v5649 = vsub.s32 %v5646, %v5648
        %v5650 = vrot.slane %v5636, %v5649
        %v5651 = vcombine.low %v5627, %v5643
        %v5652 = vcombine.high %v5627, %v5643
        %v5653 = vcombine.low %v5634, %v5650
        %v5654 = vcombine.high %v5634, %v5650
        %v5655 = vcombine.low %v5151, %v5158
        %v5657 = vunpack.c.l.s4 1983009808
        %v5658 = vunpack.c.0.s8 %v5657
        %v5659 = vlaneseq
        %v5660 = vshrl.u32 %v5659, 7
        %v5661 = vsub.s32 %v5658, %v5660
        %v5662 = vrot.slane %v5655, %v5661
        %v5663 = vcombine.low %v5175, %v5176
        %v5665 = vunpack.c.l.s4 1983009808
        %v5666 = vunpack.c.0.s8 %v5665
        %v5667 = vlaneseq
        %v5668 = vshrl.u32 %v5667, 7
        %v5669 = vsub.s32 %v5666, %v5668
        %v5670 = vrot.slane %v5663, %v5669
        %v5671 = vcombine.low %v5167, %v5174
        %v5673 = vunpack.c.l.s4 1983009808
        %v5674 = vunpack.c.0.s8 %v5673
        %v5675 = vlaneseq
        %v5676 = vshrl.u32 %v5675, 7
        %v5677 = vsub.s32 %v5674, %v5676
        %v5678 = vrot.slane %v5671, %v5677
        %v5679 = vcombine.low %v5177, %v5178
        %v5681 = vunpack.c.l.s4 1983009808
        %v5682 = vunpack.c.0.s8 %v5681
        %v5683 = vlaneseq
        %v5684 = vshrl.u32 %v5683, 7
        %v5685 = vsub.s32 %v5682, %v5684
        %v5686 = vrot.slane %v5679, %v5685
        %v5687 = vcombine.low %v5662, %v5670
        %v5688 = vcombine.high %v5662, %v5670
        %v5690 = vunpack.c.l.s4 1934713408
        %v5691 = vunpack.c.0.s8 %v5690
        %v5692 = vlaneseq
        %v5693 = vshrl.u32 %v5692, 7
        %v5694 = vsub.s32 %v5691, %v5693
        %v5695 = vrot.slane %v5687, %v5694
        %v5697 = vunpack.c.l.s4 1934713408
        %v5698 = vunpack.c.0.s8 %v5697
        %v5699 = vlaneseq
        %v5700 = vshrl.u32 %v5699, 7
        %v5701 = vsub.s32 %v5698, %v5700
        %v5702 = vrot.slane %v5688, %v5701
        %v5703 = vcombine.low %v5678, %v5686
        %v5704 = vcombine.high %v5678, %v5686
        %v5706 = vunpack.c.l.s4 1934713408
        %v5707 = vunpack.c.0.s8 %v5706
        %v5708 = vlaneseq
        %v5709 = vshrl.u32 %v5708, 7
        %v5710 = vsub.s32 %v5707, %v5709
        %v5711 = vrot.slane %v5703, %v5710
        %v5713 = vunpack.c.l.s4 1934713408
        %v5714 = vunpack.c.0.s8 %v5713
        %v5715 = vlaneseq
        %v5716 = vshrl.u32 %v5715, 7
        %v5717 = vsub.s32 %v5714, %v5716
        %v5718 = vrot.slane %v5704, %v5717
        %v5719 = vcombine.low %v5695, %v5711
        %v5720 = vcombine.high %v5695, %v5711
        %v5721 = vcombine.low %v5702, %v5718
        %v5722 = vcombine.high %v5702, %v5718
        %v5723 = vcombine.low %v5219, %v5226
        %v5725 = vunpack.c.l.s4 1983009808
        %v5726 = vunpack.c.0.s8 %v5725
        %v5727 = vlaneseq
        %v5728 = vshrl.u32 %v5727, 7
        %v5729 = vsub.s32 %v5726, %v5728
        %v5730 = vrot.slane %v5723, %v5729
        %v5731 = vcombine.low %v5243, %v5244
        %v5733 = vunpack.c.l.s4 1983009808
        %v5734 = vunpack.c.0.s8 %v5733
        %v5735 = vlaneseq
        %v5736 = vshrl.u32 %v5735, 7
        %v5737 = vsub.s32 %v5734, %v5736
        %v5738 = vrot.slane %v5731, %v5737
        %v5739 = vcombine.low %v5235, %v5242
        %v5741 = vunpack.c.l.s4 1983009808
        %v5742 = vunpack.c.0.s8 %v5741
        %v5743 = vlaneseq
        %v5744 = vshrl.u32 %v5743, 7
        %v5745 = vsub.s32 %v5742, %v5744
        %v5746 = vrot.slane %v5739, %v5745
        %v5747 = vcombine.low %v5245, %v5246
        %v5749 = vunpack.c.l.s4 1983009808
        %v5750 = vunpack.c.0.s8 %v5749
        %v5751 = vlaneseq
        %v5752 = vshrl.u32 %v5751, 7
        %v5753 = vsub.s32 %v5750, %v5752
        %v5754 = vrot.slane %v5747, %v5753
        %v5755 = vcombine.low %v5730, %v5738
        %v5756 = vcombine.high %v5730, %v5738
        %v5758 = vunpack.c.l.s4 1934713408
        %v5759 = vunpack.c.0.s8 %v5758
        %v5760 = vlaneseq
        %v5761 = vshrl.u32 %v5760, 7
        %v5762 = vsub.s32 %v5759, %v5761
        %v5763 = vrot.slane %v5755, %v5762
        %v5765 = vunpack.c.l.s4 1934713408
        %v5766 = vunpack.c.0.s8 %v5765
        %v5767 = vlaneseq
        %v5768 = vshrl.u32 %v5767, 7
        %v5769 = vsub.s32 %v5766, %v5768
        %v5770 = vrot.slane %v5756, %v5769
        %v5771 = vcombine.low %v5746, %v5754
        %v5772 = vcombine.high %v5746, %v5754
        %v5774 = vunpack.c.l.s4 1934713408
        %v5775 = vunpack.c.0.s8 %v5774
        %v5776 = vlaneseq
        %v5777 = vshrl.u32 %v5776, 7
        %v5778 = vsub.s32 %v5775, %v5777
        %v5779 = vrot.slane %v5771, %v5778
        %v5781 = vunpack.c.l.s4 1934713408
        %v5782 = vunpack.c.0.s8 %v5781
        %v5783 = vlaneseq
        %v5784 = vshrl.u32 %v5783, 7
        %v5785 = vsub.s32 %v5782, %v5784
        %v5786 = vrot.slane %v5772, %v5785
        %v5787 = vcombine.low %v5763, %v5779
        %v5788 = vcombine.high %v5763, %v5779
        %v5789 = vcombine.low %v5770, %v5786
        %v5790 = vcombine.high %v5770, %v5786
        %v5791 = vcombine.low %v5287, %v5294
        %v5793 = vunpack.c.l.s4 1983009808
        %v5794 = vunpack.c.0.s8 %v5793
        %v5795 = vlaneseq
        %v5796 = vshrl.u32 %v5795, 7
        %v5797 = vsub.s32 %v5794, %v5796
        %v5798 = vrot.slane %v5791, %v5797
        %v5799 = vcombine.low %v5311, %v5312
        %v5801 = vunpack.c.l.s4 1983009808
        %v5802 = vunpack.c.0.s8 %v5801
        %v5803 = vlaneseq
        %v5804 = vshrl.u32 %v5803, 7
        %v5805 = vsub.s32 %v5802, %v5804
        %v5806 = vrot.slane %v5799, %v5805
        %v5807 = vcombine.low %v5303, %v5310
        %v5809 = vunpack.c.l.s4 1983009808
        %v5810 = vunpack.c.0.s8 %v5809
        %v5811 = vlaneseq
        %v5812 = vshrl.u32 %v5811, 7
        %v5813 = vsub.s32 %v5810, %v5812
        %v5814 = vrot.slane %v5807, %v5813
        %v5815 = vcombine.low %v5313, %v5314
        %v5817 = vunpack.c.l.s4 1983009808
        %v5818 = vunpack.c.0.s8 %v5817
        %v5819 = vlaneseq
        %v5820 = vshrl.u32 %v5819, 7
        %v5821 = vsub.s32 %v5818, %v5820
        %v5822 = vrot.slane %v5815, %v5821
        %v5823 = vcombine.low %v5798, %v5806
        %v5824 = vcombine.high %v5798, %v5806
        %v5826 = vunpack.c.l.s4 1934713408
        %v5827 = vunpack.c.0.s8 %v5826
        %v5828 = vlaneseq
        %v5829 = vshrl.u32 %v5828, 7
        %v5830 = vsub.s32 %v5827, %v5829
        %v5831 = vrot.slane %v5823, %v5830
        %v5833 = vunpack.c.l.s4 1934713408
        %v5834 = vunpack.c.0.s8 %v5833
        %v5835 = vlaneseq
        %v5836 = vshrl.u32 %v5835, 7
        %v5837 = vsub.s32 %v5834, %v5836
        %v5838 = vrot.slane %v5824, %v5837
        %v5839 = vcombine.low %v5814, %v5822
        %v5840 = vcombine.high %v5814, %v5822
        %v5842 = vunpack.c.l.s4 1934713408
        %v5843 = vunpack.c.0.s8 %v5842
        %v5844 = vlaneseq
        %v5845 = vshrl.u32 %v5844, 7
        %v5846 = vsub.s32 %v5843, %v5845
        %v5847 = vrot.slane %v5839, %v5846
        %v5849 = vunpack.c.l.s4 1934713408
        %v5850 = vunpack.c.0.s8 %v5849
        %v5851 = vlaneseq
        %v5852 = vshrl.u32 %v5851, 7
        %v5853 = vsub.s32 %v5850, %v5852
        %v5854 = vrot.slane %v5840, %v5853
        %v5855 = vcombine.low %v5831, %v5847
        %v5856 = vcombine.high %v5831, %v5847
        %v5857 = vcombine.low %v5838, %v5854
        %v5858 = vcombine.high %v5838, %v5854
        %v5859 = vcombine.low %v5355, %v5362
        %v5861 = vunpack.c.l.s4 1983009808
        %v5862 = vunpack.c.0.s8 %v5861
        %v5863 = vlaneseq
        %v5864 = vshrl.u32 %v5863, 7
        %v5865 = vsub.s32 %v5862, %v5864
        %v5866 = vrot.slane %v5859, %v5865
        %v5867 = vcombine.low %v5379, %v5380
        %v5869 = vunpack.c.l.s4 1983009808
        %v5870 = vunpack.c.0.s8 %v5869
        %v5871 = vlaneseq
        %v5872 = vshrl.u32 %v5871, 7
        %v5873 = vsub.s32 %v5870, %v5872
        %v5874 = vrot.slane %v5867, %v5873
        %v5875 = vcombine.low %v5371, %v5378
        %v5877 = vunpack.c.l.s4 1983009808
        %v5878 = vunpack.c.0.s8 %v5877
        %v5879 = vlaneseq
        %v5880 = vshrl.u32 %v5879, 7
        %v5881 = vsub.s32 %v5878, %v5880
        %v5882 = vrot.slane %v5875, %v5881
        %v5883 = vcombine.low %v5381, %v5382
        %v5885 = vunpack.c.l.s4 1983009808
        %v5886 = vunpack.c.0.s8 %v5885
        %v5887 = vlaneseq
        %v5888 = vshrl.u32 %v5887, 7
        %v5889 = vsub.s32 %v5886, %v5888
        %v5890 = vrot.slane %v5883, %v5889
        %v5891 = vcombine.low %v5866, %v5874
        %v5892 = vcombine.high %v5866, %v5874
        %v5894 = vunpack.c.l.s4 1934713408
        %v5895 = vunpack.c.0.s8 %v5894
        %v5896 = vlaneseq
        %v5897 = vshrl.u32 %v5896, 7
        %v5898 = vsub.s32 %v5895, %v5897
        %v5899 = vrot.slane %v5891, %v5898
        %v5901 = vunpack.c.l.s4 1934713408
        %v5902 = vunpack.c.0.s8 %v5901
        %v5903 = vlaneseq
        %v5904 = vshrl.u32 %v5903, 7
        %v5905 = vsub.s32 %v5902, %v5904
        %v5906 = vrot.slane %v5892, %v5905
        %v5907 = vcombine.low %v5882, %v5890
        %v5908 = vcombine.high %v5882, %v5890
        %v5910 = vunpack.c.l.s4 1934713408
        %v5911 = vunpack.c.0.s8 %v5910
        %v5912 = vlaneseq
        %v5913 = vshrl.u32 %v5912, 7
        %v5914 = vsub.s32 %v5911, %v5913
        %v5915 = vrot.slane %v5907, %v5914
        %v5917 = vunpack.c.l.s4 1934713408
        %v5918 = vunpack.c.0.s8 %v5917
        %v5919 = vlaneseq
        %v5920 = vshrl.u32 %v5919, 7
        %v5921 = vsub.s32 %v5918, %v5920
        %v5922 = vrot.slane %v5908, %v5921
        %v5923 = vcombine.low %v5899, %v5915
        %v5924 = vcombine.high %v5899, %v5915
        %v5925 = vcombine.low %v5906, %v5922
        %v5926 = vcombine.high %v5906, %v5922
        %v5927 = vcombine.low %v5423, %v5430
        %v5929 = vunpack.c.l.s4 1983009808
        %v5930 = vunpack.c.0.s8 %v5929
        %v5931 = vlaneseq
        %v5932 = vshrl.u32 %v5931, 7
        %v5933 = vsub.s32 %v5930, %v5932
        %v5934 = vrot.slane %v5927, %v5933
        %v5935 = vcombine.low %v5447, %v5448
        %v5937 = vunpack.c.l.s4 1983009808
        %v5938 = vunpack.c.0.s8 %v5937
        %v5939 = vlaneseq
        %v5940 = vshrl.u32 %v5939, 7
        %v5941 = vsub.s32 %v5938, %v5940
        %v5942 = vrot.slane %v5935, %v5941
        %v5943 = vcombine.low %v5439, %v5446
        %v5945 = vunpack.c.l.s4 1983009808
        %v5946 = vunpack.c.0.s8 %v5945
        %v5947 = vlaneseq
        %v5948 = vshrl.u32 %v5947, 7
        %v5949 = vsub.s32 %v5946, %v5948
        %v5950 = vrot.slane %v5943, %v5949
        %v5951 = vcombine.low %v5449, %v5450
        %v5953 = vunpack.c.l.s4 1983009808
        %v5954 = vunpack.c.0.s8 %v5953
        %v5955 = vlaneseq
        %v5956 = vshrl.u32 %v5955, 7
        %v5957 = vsub.s32 %v5954, %v5956
        %v5958 = vrot.slane %v5951, %v5957
        %v5959 = vcombine.low %v5934, %v5942
        %v5960 = vcombine.high %v5934, %v5942
        %v5962 = vunpack.c.l.s4 1934713408
        %v5963 = vunpack.c.0.s8 %v5962
        %v5964 = vlaneseq
        %v5965 = vshrl.u32 %v5964, 7
        %v5966 = vsub.s32 %v5963, %v5965
        %v5967 = vrot.slane %v5959, %v5966
        %v5969 = vunpack.c.l.s4 1934713408
        %v5970 = vunpack.c.0.s8 %v5969
        %v5971 = vlaneseq
        %v5972 = vshrl.u32 %v5971, 7
        %v5973 = vsub.s32 %v5970, %v5972
        %v5974 = vrot.slane %v5960, %v5973
        %v5975 = vcombine.low %v5950, %v5958
        %v5976 = vcombine.high %v5950, %v5958
        %v5978 = vunpack.c.l.s4 1934713408
        %v5979 = vunpack.c.0.s8 %v5978
        %v5980 = vlaneseq
        %v5981 = vshrl.u32 %v5980, 7
        %v5982 = vsub.s32 %v5979, %v5981
        %v5983 = vrot.slane %v5975, %v5982
        %v5985 = vunpack.c.l.s4 1934713408
        %v5986 = vunpack.c.0.s8 %v5985
        %v5987 = vlaneseq
        %v5988 = vshrl.u32 %v5987, 7
        %v5989 = vsub.s32 %v5986, %v5988
        %v5990 = vrot.slane %v5976, %v5989
        %v5991 = vcombine.low %v5967, %v5983
        %v5992 = vcombine.high %v5967, %v5983
        %v5993 = vcombine.low %v5974, %v5990
        %v5994 = vcombine.high %v5974, %v5990
        %6003 = vrot.lane.b32.xlu0 %v5516, 32
        %v6004 = vpop.permute.xlu0 %6003
        %6005 = vrot.lane.b32.xlu0 %v5584, 32
        %v6006 = vpop.permute.xlu0 %6005
        %6007 = vrot.lane.b32.xlu0 %v5652, 32
        %v6008 = vpop.permute.xlu0 %6007
        %6009 = vrot.lane.b32.xlu0 %v5720, 32
        %v6010 = vpop.permute.xlu0 %6009
        %6011 = vrot.lane.b32.xlu0 %v5788, 32
        %v6012 = vpop.permute.xlu0 %6011
        %6013 = vrot.lane.b32.xlu0 %v5856, 32
        %v6014 = vpop.permute.xlu0 %6013
        %6015 = vrot.lane.b32.xlu0 %v5924, 32
        %v6016 = vpop.permute.xlu0 %6015
        %6017 = vrot.lane.b32.xlu0 %v5992, 32
        %v6018 = vpop.permute.xlu0 %6017
        %6035 = vrot.lane.b32.xlu0 %v5517, 64
        %v6036 = vpop.permute.xlu0 %6035
        %6037 = vrot.lane.b32.xlu0 %v5585, 64
        %v6038 = vpop.permute.xlu0 %6037
        %6039 = vrot.lane.b32.xlu0 %v5653, 64
        %v6040 = vpop.permute.xlu0 %6039
        %6041 = vrot.lane.b32.xlu0 %v5721, 64
        %v6042 = vpop.permute.xlu0 %6041
        %6043 = vrot.lane.b32.xlu0 %v5789, 64
        %v6044 = vpop.permute.xlu0 %6043
        %6045 = vrot.lane.b32.xlu0 %v5857, 64
        %v6046 = vpop.permute.xlu0 %6045
        %6047 = vrot.lane.b32.xlu0 %v5925, 64
        %v6048 = vpop.permute.xlu0 %6047
        %6049 = vrot.lane.b32.xlu0 %v5993, 64
        %v6050 = vpop.permute.xlu0 %6049
        %6067 = vrot.lane.b32.xlu0 %v5518, 96
        %v6068 = vpop.permute.xlu0 %6067
        %6069 = vrot.lane.b32.xlu0 %v5586, 96
        %v6070 = vpop.permute.xlu0 %6069
        %6071 = vrot.lane.b32.xlu0 %v5654, 96
        %v6072 = vpop.permute.xlu0 %6071
        %6073 = vrot.lane.b32.xlu0 %v5722, 96
        %v6074 = vpop.permute.xlu0 %6073
        %6075 = vrot.lane.b32.xlu0 %v5790, 96
        %v6076 = vpop.permute.xlu0 %6075
        %6077 = vrot.lane.b32.xlu0 %v5858, 96
        %v6078 = vpop.permute.xlu0 %6077
        %6079 = vrot.lane.b32.xlu0 %v5926, 96
        %v6080 = vpop.permute.xlu0 %6079
        %6081 = vrot.lane.b32.xlu0 %v5994, 96
        %v6082 = vpop.permute.xlu0 %6081
        %v6091 = vsel %vm3835, %v5515, %v6004
        %v6092 = vsel %vm3835, %v5583, %v6006
        %v6093 = vsel %vm3835, %v5651, %v6008
        %v6094 = vsel %vm3835, %v5719, %v6010
        %v6095 = vsel %vm3835, %v5787, %v6012
        %v6096 = vsel %vm3835, %v5855, %v6014
        %v6097 = vsel %vm3835, %v5923, %v6016
        %v6098 = vsel %vm3835, %v5991, %v6018
        %v6099 = vsel %vm4230, %v6091, %v6036
        %v6100 = vsel %vm4230, %v6092, %v6038
        %v6101 = vsel %vm4230, %v6093, %v6040
        %v6102 = vsel %vm4230, %v6094, %v6042
        %v6103 = vsel %vm4230, %v6095, %v6044
        %v6104 = vsel %vm4230, %v6096, %v6046
        %v6105 = vsel %vm4230, %v6097, %v6048
        %v6106 = vsel %vm4230, %v6098, %v6050
        %vm6107 = vcmask 785408
        %v6108 = vsel %vm6107, %v6099, %v6068
        %v6109 = vsel %vm6107, %v6100, %v6070
        %v6110 = vsel %vm6107, %v6101, %v6072
        %v6111 = vsel %vm6107, %v6102, %v6074
        %v6112 = vsel %vm6107, %v6103, %v6076
        %v6113 = vsel %vm6107, %v6104, %v6078
        %v6114 = vsel %vm6107, %v6105, %v6080
        %v6115 = vsel %vm6107, %v6106, %v6082
        %v6116 = vpack.c.bf16 %v6109, %v6108
        %v6117 = vpack.c.bf16 %v6111, %v6110
        %v6118 = vpack.c.bf16 %v6113, %v6112
        %v6119 = vpack.c.bf16 %v6115, %v6114
        %v6120 = vld [vmem:[%s756] sm:$0xf]
        %v6121 = vld [vmem:[%s756 + $0x4] sm:$0xf]
        %v6122 = vld [vmem:[%s756 + $0x8] sm:$0xf]
        %v6123 = vld [vmem:[%s756 + $0xc] sm:$0xf]
        %v6124 = vld [vmem:[%s756 + $0x10] sm:$0xf]
        %v6125 = vld [vmem:[%s756 + $0x14] sm:$0xf]
        %v6126 = vld [vmem:[%s756 + $0x18] sm:$0xf]
        %v6127 = vld [vmem:[%s756 + $0x1c] sm:$0xf]
        %v6128 = vld [vmem:[%s756 + $0x20] sm:$0xf]
        %v6129 = vld [vmem:[%s756 + $0x24] sm:$0xf]
        %v6130 = vld [vmem:[%s756 + $0x28] sm:$0xf]
        %v6131 = vld [vmem:[%s756 + $0x2c] sm:$0xf]
        %v6132 = vld [vmem:[%s756 + $0x30] sm:$0xf]
        %v6133 = vld [vmem:[%s756 + $0x34] sm:$0xf]
        %v6134 = vld [vmem:[%s756 + $0x38] sm:$0xf]
        %v6135 = vld [vmem:[%s756 + $0x3c] sm:$0xf]
        %v6152 = vunpack.c.l.b16 %v6120
        %v6153 = vunpack.c.l.b16 %v6121
        %v6154 = vunpack.c.l.b16 %v6122
        %v6155 = vunpack.c.l.b16 %v6123
        %v6156 = vunpack.c.l.b16 %v6124
        %v6157 = vunpack.c.l.b16 %v6125
        %v6158 = vunpack.c.l.b16 %v6126
        %v6159 = vunpack.c.l.b16 %v6127
        %v6160 = vunpack.c.l.b16 %v6128
        %v6161 = vunpack.c.l.b16 %v6129
        %v6162 = vunpack.c.l.b16 %v6130
        %v6163 = vunpack.c.l.b16 %v6131
        %v6164 = vunpack.c.l.b16 %v6132
        %v6165 = vunpack.c.l.b16 %v6133
        %v6166 = vunpack.c.l.b16 %v6134
        %v6167 = vunpack.c.l.b16 %v6135
        %v6168 = vpack.c.b16 %v6153, %v6152
        %v6169 = vpack.c.b16 %v6155, %v6154
        %v6170 = vpack.c.b16 %v6157, %v6156
        %v6171 = vpack.c.b16 %v6159, %v6158
        %v6172 = vpack.c.b16 %v6161, %v6160
        %v6173 = vpack.c.b16 %v6163, %v6162
        %v6174 = vpack.c.b16 %v6165, %v6164
        %v6175 = vpack.c.b16 %v6167, %v6166
        %6184 = vmatprep.subr.bf16.mxu0 0
        %6185 = vmatpush1.bf16.msra.mxu0 %v6175
        %6186 = vmatprep.subr.bf16.mxu0 0
        %6187 = vmatpush1.bf16.msra.mxu0 %v6174
        %6188 = vmatprep.subr.bf16.mxu0 0
        %6189 = vmatpush1.bf16.msra.mxu0 %v6173
        %6190 = vmatprep.subr.bf16.mxu0 0
        %6191 = vmatpush1.bf16.msra.mxu0 %v6172
        %6192 = vmatprep.subr.bf16.mxu0 0
        %6193 = vmatpush1.bf16.msra.mxu0 %v6171
        %6194 = vmatprep.subr.bf16.mxu0 0
        %6195 = vmatpush1.bf16.msra.mxu0 %v6170
        %6196 = vmatprep.subr.bf16.mxu0 0
        %6197 = vmatpush1.bf16.msra.mxu0 %v6169
        %6198 = vmatprep.subr.bf16.mxu0 0
        %6199 = vmatpush1.bf16.msra.mxu0 %v6168
        %6200 = vmatprep.subr.bf16.mxu0 0
        %6201 = vmatpush2.bf16.msra.mxu0 0
        %6202 = vmatprep.subr.bf16.mxu0 0
        %6203 = vmatpush2.bf16.msra.mxu0 0
        %6204 = vmatprep.subr.bf16.mxu0 0
        %6205 = vmatpush2.bf16.msra.mxu0 0
        %6206 = vmatprep.subr.bf16.mxu0 0
        %6207 = vmatpush2.bf16.msra.mxu0 0
        %6208 = vmatprep.subr.bf16.mxu0 0
        %6209 = vmatpush2.bf16.msra.mxu0 0
        %6210 = vmatprep.subr.bf16.mxu0 0
        %6211 = vmatpush2.bf16.msra.mxu0 0
        %6212 = vmatprep.subr.bf16.mxu0 0
        %6213 = vmatpush2.bf16.msra.mxu0 0
        %6214 = vmatprep.subr.bf16.mxu0 0
        %6215 = vmatpush2.bf16.msra.mxu0 0
        %6216 = vmatprep.mubr.bf16.mxu0 0
        %6217 = vmatmul.mubr.bf16.gmra.mxu0 %v6116
        %v6218 = vpop.f32.mrf.mxu0
        %v6219 = vadd.f32 0.0, %v6218
        %v6220 = vpop.f32.mrf.mxu0
        %v6221 = vpop.f32.mrf.mxu0
        %v6222 = vadd.f32 0.0, %v6221
        %v6223 = vpop.f32.mrf.mxu0
        %6224 = vmatprep.mubr.bf16.mxu0 0
        %6225 = vmatmul.mubr.bf16.gmra.mxu0 %v6117
        %v6226 = vpop.f32.mrf.mxu0
        %v6227 = vadd.f32 0.0, %v6226
        %v6228 = vpop.f32.mrf.mxu0
        %v6229 = vpop.f32.mrf.mxu0
        %v6230 = vadd.f32 0.0, %v6229
        %v6231 = vpop.f32.mrf.mxu0
        %6232 = vmatprep.mubr.bf16.mxu0 0
        %6233 = vmatmul.mubr.bf16.gmra.mxu0 %v6118
        %v6234 = vpop.f32.mrf.mxu0
        %v6235 = vadd.f32 0.0, %v6234
        %v6236 = vpop.f32.mrf.mxu0
        %v6237 = vpop.f32.mrf.mxu0
        %v6238 = vadd.f32 0.0, %v6237
        %v6239 = vpop.f32.mrf.mxu0
        %6240 = vmatprep.mubr.bf16.mxu0 0
        %6241 = vmatmul.mubr.bf16.gmra.mxu0 %v6119
        %v6242 = vpop.f32.mrf.mxu0
        %v6243 = vadd.f32 0.0, %v6242
        %v6244 = vpop.f32.mrf.mxu0
        %v6245 = vpop.f32.mrf.mxu0
        %v6246 = vadd.f32 0.0, %v6245
        %v6247 = vpop.f32.mrf.mxu0
        %6248 = vdwg.mxu0
        %v6249 = vadd.f32 %v916, %v6219
        %v6250 = vadd.f32 %v917, %v6222
        %v6251 = vadd.f32 %v918, %v6227
        %v6252 = vadd.f32 %v919, %v6230
        %v6253 = vadd.f32 %v920, %v6235
        %v6254 = vadd.f32 %v921, %v6238
        %v6255 = vadd.f32 %v922, %v6243
        %v6256 = vadd.f32 %v923, %v6246
        %v6257 = vld [vmem:[%s881] sm:$0x1]
        %v6259 = vlaneseq
        %v6260 = vshrl.u32 %v6259, 7
        %v6261 = vsub.s32 0, %v6260
        %v6262 = vrot.slane %v6257, %v6261
        %v6264 = vadd.f32 %v6249, %v6262
        %v6265 = vadd.f32 %v6250, %v6262
        %v6266 = vadd.f32 %v6251, %v6262
        %v6267 = vadd.f32 %v6252, %v6262
        %v6268 = vadd.f32 %v6253, %v6262
        %v6269 = vadd.f32 %v6254, %v6262
        %v6270 = vadd.f32 %v6255, %v6262
        %v6271 = vadd.f32 %v6256, %v6262
        %v6272 = vld [vmem:[%s884] sm:$0x1]
        %v6273 = vld [vmem:[%s887] sm:$0x1]
        %6274 = vadd.xlane.f32.xlu0 %v6264
        %v6275 = vpop.xlane.xlu0 %6274
        %6276 = vadd.xlane.f32.xlu0 %v6265
        %v6277 = vpop.xlane.xlu0 %6276
        %6278 = vadd.xlane.f32.xlu0 %v6266
        %v6279 = vpop.xlane.xlu0 %6278
        %6280 = vadd.xlane.f32.xlu0 %v6267
        %v6281 = vpop.xlane.xlu0 %6280
        %6282 = vadd.xlane.f32.xlu0 %v6268
        %v6283 = vpop.xlane.xlu0 %6282
        %6284 = vadd.xlane.f32.xlu0 %v6269
        %v6285 = vpop.xlane.xlu0 %6284
        %6286 = vadd.xlane.f32.xlu0 %v6270
        %v6287 = vpop.xlane.xlu0 %6286
        %6288 = vadd.xlane.f32.xlu0 %v6271
        %v6289 = vpop.xlane.xlu0 %6288
        %v6290 = vmul.f32 %v6275, %v945
        %v6291 = vmul.f32 %v6277, %v945
        %v6292 = vmul.f32 %v6279, %v945
        %v6293 = vmul.f32 %v6281, %v945
        %v6294 = vmul.f32 %v6283, %v945
        %v6295 = vmul.f32 %v6285, %v945
        %v6296 = vmul.f32 %v6287, %v945
        %v6297 = vmul.f32 %v6289, %v945
        %v6298 = vsub.f32 %v6264, %v6290
        %v6299 = vsub.f32 %v6265, %v6291
        %v6300 = vsub.f32 %v6266, %v6292
        %v6301 = vsub.f32 %v6267, %v6293
        %v6302 = vsub.f32 %v6268, %v6294
        %v6303 = vsub.f32 %v6269, %v6295
        %v6304 = vsub.f32 %v6270, %v6296
        %v6305 = vsub.f32 %v6271, %v6297
        %v6306 = vmul.f32 %v6298, %v6298
        %v6307 = vmul.f32 %v6299, %v6299
        %v6308 = vmul.f32 %v6300, %v6300
        %v6309 = vmul.f32 %v6301, %v6301
        %v6310 = vmul.f32 %v6302, %v6302
        %v6311 = vmul.f32 %v6303, %v6303
        %v6312 = vmul.f32 %v6304, %v6304
        %v6313 = vmul.f32 %v6305, %v6305
        %6314 = vadd.xlane.f32.xlu0 %v6306
        %v6315 = vpop.xlane.xlu0 %6314
        %6316 = vadd.xlane.f32.xlu0 %v6307
        %v6317 = vpop.xlane.xlu0 %6316
        %6318 = vadd.xlane.f32.xlu0 %v6308
        %v6319 = vpop.xlane.xlu0 %6318
        %6320 = vadd.xlane.f32.xlu0 %v6309
        %v6321 = vpop.xlane.xlu0 %6320
        %6322 = vadd.xlane.f32.xlu0 %v6310
        %v6323 = vpop.xlane.xlu0 %6322
        %6324 = vadd.xlane.f32.xlu0 %v6311
        %v6325 = vpop.xlane.xlu0 %6324
        %6326 = vadd.xlane.f32.xlu0 %v6312
        %v6327 = vpop.xlane.xlu0 %6326
        %6328 = vadd.xlane.f32.xlu0 %v6313
        %v6329 = vpop.xlane.xlu0 %6328
        %v6330 = vmul.f32 %v6315, %v945
        %v6331 = vmul.f32 %v6317, %v945
        %v6332 = vmul.f32 %v6319, %v945
        %v6333 = vmul.f32 %v6321, %v945
        %v6334 = vmul.f32 %v6323, %v945
        %v6335 = vmul.f32 %v6325, %v945
        %v6336 = vmul.f32 %v6327, %v945
        %v6337 = vmul.f32 %v6329, %v945
        %v6338 = vadd.f32 %v6330, 1e-05
        %v6339 = vadd.f32 %v6331, 1e-05
        %v6340 = vadd.f32 %v6332, 1e-05
        %v6341 = vadd.f32 %v6333, 1e-05
        %v6342 = vadd.f32 %v6334, 1e-05
        %v6343 = vadd.f32 %v6335, 1e-05
        %v6344 = vadd.f32 %v6336, 1e-05
        %v6345 = vadd.f32 %v6337, 1e-05
        %v6346 = vrsqrt.pop %v6338
        %v6347 = vrsqrt.pop %v6339
        %v6348 = vrsqrt.pop %v6340
        %v6349 = vrsqrt.pop %v6341
        %v6350 = vrsqrt.pop %v6342
        %v6351 = vrsqrt.pop %v6343
        %v6352 = vrsqrt.pop %v6344
        %v6353 = vrsqrt.pop %v6345
        %v6354 = vmul.f32 %v6298, %v6346
        %v6355 = vmul.f32 %v6299, %v6347
        %v6356 = vmul.f32 %v6300, %v6348
        %v6357 = vmul.f32 %v6301, %v6349
        %v6358 = vmul.f32 %v6302, %v6350
        %v6359 = vmul.f32 %v6303, %v6351
        %v6360 = vmul.f32 %v6304, %v6352
        %v6361 = vmul.f32 %v6305, %v6353
        %v6363 = vlaneseq
        %v6364 = vshrl.u32 %v6363, 7
        %v6365 = vsub.s32 0, %v6364
        %v6366 = vrot.slane %v6272, %v6365
        %v6368 = vmul.f32 %v6354, %v6366
        %v6369 = vmul.f32 %v6355, %v6366
        %v6370 = vmul.f32 %v6356, %v6366
        %v6371 = vmul.f32 %v6357, %v6366
        %v6372 = vmul.f32 %v6358, %v6366
        %v6373 = vmul.f32 %v6359, %v6366
        %v6374 = vmul.f32 %v6360, %v6366
        %v6375 = vmul.f32 %v6361, %v6366
        %v6377 = vlaneseq
        %v6378 = vshrl.u32 %v6377, 7
        %v6379 = vsub.s32 0, %v6378
        %v6380 = vrot.slane %v6273, %v6379
        %v6382 = vadd.f32 %v6368, %v6380
        %v6383 = vadd.f32 %v6369, %v6380
        %v6384 = vadd.f32 %v6370, %v6380
        %v6385 = vadd.f32 %v6371, %v6380
        %v6386 = vadd.f32 %v6372, %v6380
        %v6387 = vadd.f32 %v6373, %v6380
        %v6388 = vadd.f32 %v6374, %v6380
        %v6389 = vadd.f32 %v6375, %v6380
        %v6390 = vpack.c.bf16 %v6383, %v6382
        %v6391 = vpack.c.bf16 %v6385, %v6384
        %v6392 = vpack.c.bf16 %v6387, %v6386
        %v6393 = vpack.c.bf16 %v6389, %v6388
        %v6394 = vld [vmem:[%s765] sm:$0xff]
        %v6395 = vld [vmem:[%s765 + $0x8] sm:$0xff]
        %v6396 = vld [vmem:[%s765 + $0x10] sm:$0xff]
        %v6397 = vld [vmem:[%s765 + $0x18] sm:$0xff]
        %v6398 = vld [vmem:[%s765 + $0x20] sm:$0xff]
        %v6399 = vld [vmem:[%s765 + $0x28] sm:$0xff]
        %v6400 = vld [vmem:[%s765 + $0x30] sm:$0xff]
        %v6401 = vld [vmem:[%s765 + $0x38] sm:$0xff]
        %v6402 = vld [vmem:[%s765 + $0x40] sm:$0xff]
        %v6403 = vld [vmem:[%s765 + $0x48] sm:$0xff]
        %v6404 = vld [vmem:[%s765 + $0x50] sm:$0xff]
        %v6405 = vld [vmem:[%s765 + $0x58] sm:$0xff]
        %v6406 = vld [vmem:[%s765 + $0x60] sm:$0xff]
        %v6407 = vld [vmem:[%s765 + $0x68] sm:$0xff]
        %v6408 = vld [vmem:[%s765 + $0x70] sm:$0xff]
        %v6409 = vld [vmem:[%s765 + $0x78] sm:$0xff]
        %v6410 = vld [vmem:[%s891] sm:$0x3]
        %v6412 = vlaneseq
        %v6413 = vshrl.u32 %v6412, 7
        %v6414 = vsub.s32 0, %v6413
        %v6415 = vrot.slane %v6410, %v6414
        %v6416 = vlaneseq
        %v6417 = vshrl.u32 %v6416, 7
        %v6418 = vsub.s32 1, %v6417
        %v6419 = vrot.slane %v6410, %v6418
        %v6438 = vunpack.c.l.b16 %v6394
        %v6439 = vunpack.c.h.b16 %v6394
        %v6440 = vunpack.c.l.b16 %v6395
        %v6441 = vunpack.c.h.b16 %v6395
        %v6442 = vunpack.c.l.b16 %v6396
        %v6443 = vunpack.c.h.b16 %v6396
        %v6444 = vunpack.c.l.b16 %v6397
        %v6445 = vunpack.c.h.b16 %v6397
        %v6446 = vunpack.c.l.b16 %v6398
        %v6447 = vunpack.c.h.b16 %v6398
        %v6448 = vunpack.c.l.b16 %v6399
        %v6449 = vunpack.c.h.b16 %v6399
        %v6450 = vunpack.c.l.b16 %v6400
        %v6451 = vunpack.c.h.b16 %v6400
        %v6452 = vunpack.c.l.b16 %v6401
        %v6453 = vunpack.c.h.b16 %v6401
        %v6454 = vunpack.c.l.b16 %v6402
        %v6455 = vunpack.c.h.b16 %v6402
        %v6456 = vunpack.c.l.b16 %v6403
        %v6457 = vunpack.c.h.b16 %v6403
        %v6458 = vunpack.c.l.b16 %v6404
        %v6459 = vunpack.c.h.b16 %v6404
        %v6460 = vunpack.c.l.b16 %v6405
        %v6461 = vunpack.c.h.b16 %v6405
        %v6462 = vunpack.c.l.b16 %v6406
        %v6463 = vunpack.c.h.b16 %v6406
        %v6464 = vunpack.c.l.b16 %v6407
        %v6465 = vunpack.c.h.b16 %v6407
        %v6466 = vunpack.c.l.b16 %v6408
        %v6467 = vunpack.c.h.b16 %v6408
        %v6468 = vunpack.c.l.b16 %v6409
        %v6469 = vunpack.c.h.b16 %v6409
        %v6470 = vpack.c.b16 %v6440, %v6438
        %v6471 = vpack.c.b16 %v6441, %v6439
        %v6472 = vpack.c.b16 %v6444, %v6442
        %v6473 = vpack.c.b16 %v6445, %v6443
        %v6474 = vpack.c.b16 %v6448, %v6446
        %v6475 = vpack.c.b16 %v6449, %v6447
        %v6476 = vpack.c.b16 %v6452, %v6450
        %v6477 = vpack.c.b16 %v6453, %v6451
        %v6478 = vpack.c.b16 %v6456, %v6454
        %v6479 = vpack.c.b16 %v6457, %v6455
        %v6480 = vpack.c.b16 %v6460, %v6458
        %v6481 = vpack.c.b16 %v6461, %v6459
        %v6482 = vpack.c.b16 %v6464, %v6462
        %v6483 = vpack.c.b16 %v6465, %v6463
        %v6484 = vpack.c.b16 %v6468, %v6466
        %v6485 = vpack.c.b16 %v6469, %v6467
        %6502 = vmatprep.subr.bf16.mxu0 %v6485
        %6503 = vmatpush1.bf16.msra.mxu0 %v6484
        %6504 = vmatprep.subr.bf16.mxu0 %v6483
        %6505 = vmatpush1.bf16.msra.mxu0 %v6482
        %6506 = vmatprep.subr.bf16.mxu0 %v6481
        %6507 = vmatpush1.bf16.msra.mxu0 %v6480
        %6508 = vmatprep.subr.bf16.mxu0 %v6479
        %6509 = vmatpush1.bf16.msra.mxu0 %v6478
        %6510 = vmatprep.subr.bf16.mxu0 %v6477
        %6511 = vmatpush1.bf16.msra.mxu0 %v6476
        %6512 = vmatprep.subr.bf16.mxu0 %v6475
        %6513 = vmatpush1.bf16.msra.mxu0 %v6474
        %6514 = vmatprep.subr.bf16.mxu0 %v6473
        %6515 = vmatpush1.bf16.msra.mxu0 %v6472
        %6516 = vmatprep.subr.bf16.mxu0 %v6471
        %6517 = vmatpush1.bf16.msra.mxu0 %v6470
        %6518 = vmatprep.subr.bf16.mxu0 0
        %6519 = vmatpush2.bf16.msra.mxu0 0
        %6520 = vmatprep.subr.bf16.mxu0 0
        %6521 = vmatpush2.bf16.msra.mxu0 0
        %6522 = vmatprep.subr.bf16.mxu0 0
        %6523 = vmatpush2.bf16.msra.mxu0 0
        %6524 = vmatprep.subr.bf16.mxu0 0
        %6525 = vmatpush2.bf16.msra.mxu0 0
        %6526 = vmatprep.subr.bf16.mxu0 0
        %6527 = vmatpush2.bf16.msra.mxu0 0
        %6528 = vmatprep.subr.bf16.mxu0 0
        %6529 = vmatpush2.bf16.msra.mxu0 0
        %6530 = vmatprep.subr.bf16.mxu0 0
        %6531 = vmatpush2.bf16.msra.mxu0 0
        %6532 = vmatprep.subr.bf16.mxu0 0
        %6533 = vmatpush2.bf16.msra.mxu0 0
        %6534 = vmatprep.mubr.bf16.mxu0 0
        %6535 = vmatmul.mubr.bf16.gmra.mxu0 %v6390
        %v6536 = vpop.f32.mrf.mxu0
        %v6537 = vadd.f32 %v6415, %v6536
        %v6538 = vpop.f32.mrf.mxu0
        %v6539 = vadd.f32 %v6419, %v6538
        %v6540 = vpop.f32.mrf.mxu0
        %v6541 = vadd.f32 %v6415, %v6540
        %v6542 = vpop.f32.mrf.mxu0
        %v6543 = vadd.f32 %v6419, %v6542
        %6544 = vmatprep.mubr.bf16.mxu0 0
        %6545 = vmatmul.mubr.bf16.gmra.mxu0 %v6391
        %v6546 = vpop.f32.mrf.mxu0
        %v6547 = vadd.f32 %v6415, %v6546
        %v6548 = vpop.f32.mrf.mxu0
        %v6549 = vadd.f32 %v6419, %v6548
        %v6550 = vpop.f32.mrf.mxu0
        %v6551 = vadd.f32 %v6415, %v6550
        %v6552 = vpop.f32.mrf.mxu0
        %v6553 = vadd.f32 %v6419, %v6552
        %6554 = vmatprep.mubr.bf16.mxu0 0
        %6555 = vmatmul.mubr.bf16.gmra.mxu0 %v6392
        %v6556 = vpop.f32.mrf.mxu0
        %v6557 = vadd.f32 %v6415, %v6556
        %v6558 = vpop.f32.mrf.mxu0
        %v6559 = vadd.f32 %v6419, %v6558
        %v6560 = vpop.f32.mrf.mxu0
        %v6561 = vadd.f32 %v6415, %v6560
        %v6562 = vpop.f32.mrf.mxu0
        %v6563 = vadd.f32 %v6419, %v6562
        %6564 = vmatprep.mubr.bf16.mxu0 0
        %6565 = vmatmul.mubr.bf16.gmra.mxu0 %v6393
        %v6566 = vpop.f32.mrf.mxu0
        %v6567 = vadd.f32 %v6415, %v6566
        %v6568 = vpop.f32.mrf.mxu0
        %v6569 = vadd.f32 %v6419, %v6568
        %v6570 = vpop.f32.mrf.mxu0
        %v6571 = vadd.f32 %v6415, %v6570
        %v6572 = vpop.f32.mrf.mxu0
        %v6573 = vadd.f32 %v6419, %v6572
        %6574 = vdwg.mxu0
        %v6575 = vmax.f32 %v6537, 0.0
        %v6576 = vmax.f32 %v6539, 0.0
        %v6577 = vmax.f32 %v6541, 0.0
        %v6578 = vmax.f32 %v6543, 0.0
        %v6579 = vmax.f32 %v6547, 0.0
        %v6580 = vmax.f32 %v6549, 0.0
        %v6581 = vmax.f32 %v6551, 0.0
        %v6582 = vmax.f32 %v6553, 0.0
        %v6583 = vmax.f32 %v6557, 0.0
        %v6584 = vmax.f32 %v6559, 0.0
        %v6585 = vmax.f32 %v6561, 0.0
        %v6586 = vmax.f32 %v6563, 0.0
        %v6587 = vmax.f32 %v6567, 0.0
        %v6588 = vmax.f32 %v6569, 0.0
        %v6589 = vmax.f32 %v6571, 0.0
        %v6590 = vmax.f32 %v6573, 0.0
        %v6591 = vpack.c.bf16 %v6577, %v6575
        %v6592 = vpack.c.bf16 %v6578, %v6576
        %v6593 = vpack.c.bf16 %v6581, %v6579
        %v6594 = vpack.c.bf16 %v6582, %v6580
        %v6595 = vpack.c.bf16 %v6585, %v6583
        %v6596 = vpack.c.bf16 %v6586, %v6584
        %v6597 = vpack.c.bf16 %v6589, %v6587
        %v6598 = vpack.c.bf16 %v6590, %v6588
        %v6599 = vld [vmem:[%s774] sm:$0xf]
        %v6600 = vld [vmem:[%s774 + $0x4] sm:$0xf]
        %v6601 = vld [vmem:[%s774 + $0x8] sm:$0xf]
        %v6602 = vld [vmem:[%s774 + $0xc] sm:$0xf]
        %v6603 = vld [vmem:[%s774 + $0x10] sm:$0xf]
        %v6604 = vld [vmem:[%s774 + $0x14] sm:$0xf]
        %v6605 = vld [vmem:[%s774 + $0x18] sm:$0xf]
        %v6606 = vld [vmem:[%s774 + $0x1c] sm:$0xf]
        %v6607 = vld [vmem:[%s774 + $0x20] sm:$0xf]
        %v6608 = vld [vmem:[%s774 + $0x24] sm:$0xf]
        %v6609 = vld [vmem:[%s774 + $0x28] sm:$0xf]
        %v6610 = vld [vmem:[%s774 + $0x2c] sm:$0xf]
        %v6611 = vld [vmem:[%s774 + $0x30] sm:$0xf]
        %v6612 = vld [vmem:[%s774 + $0x34] sm:$0xf]
        %v6613 = vld [vmem:[%s774 + $0x38] sm:$0xf]
        %v6614 = vld [vmem:[%s774 + $0x3c] sm:$0xf]
        %v6615 = vld [vmem:[%s774 + $0x40] sm:$0xf]
        %v6616 = vld [vmem:[%s774 + $0x44] sm:$0xf]
        %v6617 = vld [vmem:[%s774 + $0x48] sm:$0xf]
        %v6618 = vld [vmem:[%s774 + $0x4c] sm:$0xf]
        %v6619 = vld [vmem:[%s774 + $0x50] sm:$0xf]
        %v6620 = vld [vmem:[%s774 + $0x54] sm:$0xf]
        %v6621 = vld [vmem:[%s774 + $0x58] sm:$0xf]
        %v6622 = vld [vmem:[%s774 + $0x5c] sm:$0xf]
        %v6623 = vld [vmem:[%s774 + $0x60] sm:$0xf]
        %v6624 = vld [vmem:[%s774 + $0x64] sm:$0xf]
        %v6625 = vld [vmem:[%s774 + $0x68] sm:$0xf]
        %v6626 = vld [vmem:[%s774 + $0x6c] sm:$0xf]
        %v6627 = vld [vmem:[%s774 + $0x70] sm:$0xf]
        %v6628 = vld [vmem:[%s774 + $0x74] sm:$0xf]
        %v6629 = vld [vmem:[%s774 + $0x78] sm:$0xf]
        %v6630 = vld [vmem:[%s774 + $0x7c] sm:$0xf]
        %v6631 = vld [vmem:[%s894] sm:$0x1]
        %v6633 = vlaneseq
        %v6634 = vshrl.u32 %v6633, 7
        %v6635 = vsub.s32 0, %v6634
        %v6636 = vrot.slane %v6631, %v6635
        %v6670 = vunpack.c.l.b16 %v6599
        %v6671 = vunpack.c.l.b16 %v6600
        %v6672 = vunpack.c.l.b16 %v6601
        %v6673 = vunpack.c.l.b16 %v6602
        %v6674 = vunpack.c.l.b16 %v6603
        %v6675 = vunpack.c.l.b16 %v6604
        %v6676 = vunpack.c.l.b16 %v6605
        %v6677 = vunpack.c.l.b16 %v6606
        %v6678 = vunpack.c.l.b16 %v6607
        %v6679 = vunpack.c.l.b16 %v6608
        %v6680 = vunpack.c.l.b16 %v6609
        %v6681 = vunpack.c.l.b16 %v6610
        %v6682 = vunpack.c.l.b16 %v6611
        %v6683 = vunpack.c.l.b16 %v6612
        %v6684 = vunpack.c.l.b16 %v6613
        %v6685 = vunpack.c.l.b16 %v6614
        %v6686 = vunpack.c.l.b16 %v6615
        %v6687 = vunpack.c.l.b16 %v6616
        %v6688 = vunpack.c.l.b16 %v6617
        %v6689 = vunpack.c.l.b16 %v6618
        %v6690 = vunpack.c.l.b16 %v6619
        %v6691 = vunpack.c.l.b16 %v6620
        %v6692 = vunpack.c.l.b16 %v6621
        %v6693 = vunpack.c.l.b16 %v6622
        %v6694 = vunpack.c.l.b16 %v6623
        %v6695 = vunpack.c.l.b16 %v6624
        %v6696 = vunpack.c.l.b16 %v6625
        %v6697 = vunpack.c.l.b16 %v6626
        %v6698 = vunpack.c.l.b16 %v6627
        %v6699 = vunpack.c.l.b16 %v6628
        %v6700 = vunpack.c.l.b16 %v6629
        %v6701 = vunpack.c.l.b16 %v6630
        %v6702 = vpack.c.b16 %v6671, %v6670
        %v6703 = vpack.c.b16 %v6673, %v6672
        %v6704 = vpack.c.b16 %v6675, %v6674
        %v6705 = vpack.c.b16 %v6677, %v6676
        %v6706 = vpack.c.b16 %v6679, %v6678
        %v6707 = vpack.c.b16 %v6681, %v6680
        %v6708 = vpack.c.b16 %v6683, %v6682
        %v6709 = vpack.c.b16 %v6685, %v6684
        %v6710 = vpack.c.b16 %v6687, %v6686
        %v6711 = vpack.c.b16 %v6689, %v6688
        %v6712 = vpack.c.b16 %v6691, %v6690
        %v6713 = vpack.c.b16 %v6693, %v6692
        %v6714 = vpack.c.b16 %v6695, %v6694
        %v6715 = vpack.c.b16 %v6697, %v6696
        %v6716 = vpack.c.b16 %v6699, %v6698
        %v6717 = vpack.c.b16 %v6701, %v6700
        %6734 = vmatprep.subr.bf16.mxu0 0
        %6735 = vmatpush1.bf16.msra.mxu0 %v6709
        %6736 = vmatprep.subr.bf16.mxu0 0
        %6737 = vmatpush1.bf16.msra.mxu0 %v6708
        %6738 = vmatprep.subr.bf16.mxu0 0
        %6739 = vmatpush1.bf16.msra.mxu0 %v6707
        %6740 = vmatprep.subr.bf16.mxu0 0
        %6741 = vmatpush1.bf16.msra.mxu0 %v6706
        %6742 = vmatprep.subr.bf16.mxu0 0
        %6743 = vmatpush1.bf16.msra.mxu0 %v6705
        %6744 = vmatprep.subr.bf16.mxu0 0
        %6745 = vmatpush1.bf16.msra.mxu0 %v6704
        %6746 = vmatprep.subr.bf16.mxu0 0
        %6747 = vmatpush1.bf16.msra.mxu0 %v6703
        %6748 = vmatprep.subr.bf16.mxu0 0
        %6749 = vmatpush1.bf16.msra.mxu0 %v6702
        %6750 = vmatprep.subr.bf16.mxu0 0
        %6751 = vmatpush2.bf16.msra.mxu0 %v6717
        %6752 = vmatprep.subr.bf16.mxu0 0
        %6753 = vmatpush2.bf16.msra.mxu0 %v6716
        %6754 = vmatprep.subr.bf16.mxu0 0
        %6755 = vmatpush2.bf16.msra.mxu0 %v6715
        %6756 = vmatprep.subr.bf16.mxu0 0
        %6757 = vmatpush2.bf16.msra.mxu0 %v6714
        %6758 = vmatprep.subr.bf16.mxu0 0
        %6759 = vmatpush2.bf16.msra.mxu0 %v6713
        %6760 = vmatprep.subr.bf16.mxu0 0
        %6761 = vmatpush2.bf16.msra.mxu0 %v6712
        %6762 = vmatprep.subr.bf16.mxu0 0
        %6763 = vmatpush2.bf16.msra.mxu0 %v6711
        %6764 = vmatprep.subr.bf16.mxu0 0
        %6765 = vmatpush2.bf16.msra.mxu0 %v6710
        %6766 = vmatprep.mubr.bf16.mxu0 %v6592
        %6767 = vmatmul.mubr.bf16.gmra.mxu0 %v6591
        %v6768 = vpop.f32.mrf.mxu0
        %v6769 = vadd.f32 %v6636, %v6768
        %v6770 = vpop.f32.mrf.mxu0
        %v6771 = vpop.f32.mrf.mxu0
        %v6772 = vadd.f32 %v6636, %v6771
        %v6773 = vpop.f32.mrf.mxu0
        %6774 = vmatprep.mubr.bf16.mxu0 %v6594
        %6775 = vmatmul.mubr.bf16.gmra.mxu0 %v6593
        %v6776 = vpop.f32.mrf.mxu0
        %v6777 = vadd.f32 %v6636, %v6776
        %v6778 = vpop.f32.mrf.mxu0
        %v6779 = vpop.f32.mrf.mxu0
        %v6780 = vadd.f32 %v6636, %v6779
        %v6781 = vpop.f32.mrf.mxu0
        %6782 = vmatprep.mubr.bf16.mxu0 %v6596
        %6783 = vmatmul.mubr.bf16.gmra.mxu0 %v6595
        %v6784 = vpop.f32.mrf.mxu0
        %v6785 = vadd.f32 %v6636, %v6784
        %v6786 = vpop.f32.mrf.mxu0
        %v6787 = vpop.f32.mrf.mxu0
        %v6788 = vadd.f32 %v6636, %v6787
        %v6789 = vpop.f32.mrf.mxu0
        %6790 = vmatprep.mubr.bf16.mxu0 %v6598
        %6791 = vmatmul.mubr.bf16.gmra.mxu0 %v6597
        %v6792 = vpop.f32.mrf.mxu0
        %v6793 = vadd.f32 %v6636, %v6792
        %v6794 = vpop.f32.mrf.mxu0
        %v6795 = vpop.f32.mrf.mxu0
        %v6796 = vadd.f32 %v6636, %v6795
        %v6797 = vpop.f32.mrf.mxu0
        %6798 = vdwg.mxu0
        %v6799 = vadd.f32 %v6264, %v6769
        %v6800 = vadd.f32 %v6265, %v6772
        %v6801 = vadd.f32 %v6266, %v6777
        %v6802 = vadd.f32 %v6267, %v6780
        %v6803 = vadd.f32 %v6268, %v6785
        %v6804 = vadd.f32 %v6269, %v6788
        %v6805 = vadd.f32 %v6270, %v6793
        %v6806 = vadd.f32 %v6271, %v6796
        %p6807 = scmp.eq.s32.totalorder %s50, 1
        // Predicated region
        $region121: #{tpu_custom_call.1} parent=83 // pred_check
          %p6808 = pneg %p6807
        $region122: #{tpu_custom_call.1} parent=83 // pred_check_branch
          %6810 = sbr.rel (%p6808) target = $region124
        $region123: #{tpu_custom_call.1} parent=83 // pred_region
          %v6811 = vld [vmem:[%s14] sm:$0x1]
          %v6812 = vld [vmem:[%s15] sm:$0x1]
          %6813 = vadd.xlane.f32.xlu0 %v6799
          %v6814 = vpop.xlane.xlu0 %6813
          %6815 = vadd.xlane.f32.xlu0 %v6800
          %v6816 = vpop.xlane.xlu0 %6815
          %6817 = vadd.xlane.f32.xlu0 %v6801
          %v6818 = vpop.xlane.xlu0 %6817
          %6819 = vadd.xlane.f32.xlu0 %v6802
          %v6820 = vpop.xlane.xlu0 %6819
          %6821 = vadd.xlane.f32.xlu0 %v6803
          %v6822 = vpop.xlane.xlu0 %6821
          %6823 = vadd.xlane.f32.xlu0 %v6804
          %v6824 = vpop.xlane.xlu0 %6823
          %6825 = vadd.xlane.f32.xlu0 %v6805
          %v6826 = vpop.xlane.xlu0 %6825
          %6827 = vadd.xlane.f32.xlu0 %v6806
          %v6828 = vpop.xlane.xlu0 %6827
          %v6829 = vmul.f32 %v6814, %v945
          %v6830 = vmul.f32 %v6816, %v945
          %v6831 = vmul.f32 %v6818, %v945
          %v6832 = vmul.f32 %v6820, %v945
          %v6833 = vmul.f32 %v6822, %v945
          %v6834 = vmul.f32 %v6824, %v945
          %v6835 = vmul.f32 %v6826, %v945
          %v6836 = vmul.f32 %v6828, %v945
          %v6837 = vsub.f32 %v6799, %v6829
          %v6838 = vsub.f32 %v6800, %v6830
          %v6839 = vsub.f32 %v6801, %v6831
          %v6840 = vsub.f32 %v6802, %v6832
          %v6841 = vsub.f32 %v6803, %v6833
          %v6842 = vsub.f32 %v6804, %v6834
          %v6843 = vsub.f32 %v6805, %v6835
          %v6844 = vsub.f32 %v6806, %v6836
          %v6845 = vmul.f32 %v6837, %v6837
          %v6846 = vmul.f32 %v6838, %v6838
          %v6847 = vmul.f32 %v6839, %v6839
          %v6848 = vmul.f32 %v6840, %v6840
          %v6849 = vmul.f32 %v6841, %v6841
          %v6850 = vmul.f32 %v6842, %v6842
          %v6851 = vmul.f32 %v6843, %v6843
          %v6852 = vmul.f32 %v6844, %v6844
          %6853 = vadd.xlane.f32.xlu0 %v6845
          %v6854 = vpop.xlane.xlu0 %6853
          %6855 = vadd.xlane.f32.xlu0 %v6846
          %v6856 = vpop.xlane.xlu0 %6855
          %6857 = vadd.xlane.f32.xlu0 %v6847
          %v6858 = vpop.xlane.xlu0 %6857
          %6859 = vadd.xlane.f32.xlu0 %v6848
          %v6860 = vpop.xlane.xlu0 %6859
          %6861 = vadd.xlane.f32.xlu0 %v6849
          %v6862 = vpop.xlane.xlu0 %6861
          %6863 = vadd.xlane.f32.xlu0 %v6850
          %v6864 = vpop.xlane.xlu0 %6863
          %6865 = vadd.xlane.f32.xlu0 %v6851
          %v6866 = vpop.xlane.xlu0 %6865
          %6867 = vadd.xlane.f32.xlu0 %v6852
          %v6868 = vpop.xlane.xlu0 %6867
          %v6869 = vmul.f32 %v6854, %v945
          %v6870 = vmul.f32 %v6856, %v945
          %v6871 = vmul.f32 %v6858, %v945
          %v6872 = vmul.f32 %v6860, %v945
          %v6873 = vmul.f32 %v6862, %v945
          %v6874 = vmul.f32 %v6864, %v945
          %v6875 = vmul.f32 %v6866, %v945
          %v6876 = vmul.f32 %v6868, %v945
          %v6877 = vadd.f32 %v6869, 1e-05
          %v6878 = vadd.f32 %v6870, 1e-05
          %v6879 = vadd.f32 %v6871, 1e-05
          %v6880 = vadd.f32 %v6872, 1e-05
          %v6881 = vadd.f32 %v6873, 1e-05
          %v6882 = vadd.f32 %v6874, 1e-05
          %v6883 = vadd.f32 %v6875, 1e-05
          %v6884 = vadd.f32 %v6876, 1e-05
          %v6885 = vrsqrt.pop %v6877
          %v6886 = vrsqrt.pop %v6878
          %v6887 = vrsqrt.pop %v6879
          %v6888 = vrsqrt.pop %v6880
          %v6889 = vrsqrt.pop %v6881
          %v6890 = vrsqrt.pop %v6882
          %v6891 = vrsqrt.pop %v6883
          %v6892 = vrsqrt.pop %v6884
          %v6893 = vmul.f32 %v6837, %v6885
          %v6894 = vmul.f32 %v6838, %v6886
          %v6895 = vmul.f32 %v6839, %v6887
          %v6896 = vmul.f32 %v6840, %v6888
          %v6897 = vmul.f32 %v6841, %v6889
          %v6898 = vmul.f32 %v6842, %v6890
          %v6899 = vmul.f32 %v6843, %v6891
          %v6900 = vmul.f32 %v6844, %v6892
          %v6902 = vlaneseq
          %v6903 = vshrl.u32 %v6902, 7
          %v6904 = vsub.s32 0, %v6903
          %v6905 = vrot.slane %v6811, %v6904
          %v6907 = vmul.f32 %v6893, %v6905
          %v6908 = vmul.f32 %v6894, %v6905
          %v6909 = vmul.f32 %v6895, %v6905
          %v6910 = vmul.f32 %v6896, %v6905
          %v6911 = vmul.f32 %v6897, %v6905
          %v6912 = vmul.f32 %v6898, %v6905
          %v6913 = vmul.f32 %v6899, %v6905
          %v6914 = vmul.f32 %v6900, %v6905
          %v6916 = vlaneseq
          %v6917 = vshrl.u32 %v6916, 7
          %v6918 = vsub.s32 0, %v6917
          %v6919 = vrot.slane %v6812, %v6918
          %v6921 = vadd.f32 %v6907, %v6919
          %v6922 = vadd.f32 %v6908, %v6919
          %v6923 = vadd.f32 %v6909, %v6919
          %v6924 = vadd.f32 %v6910, %v6919
          %v6925 = vadd.f32 %v6911, %v6919
          %v6926 = vadd.f32 %v6912, %v6919
          %v6927 = vadd.f32 %v6913, %v6919
          %v6928 = vadd.f32 %v6914, %v6919
          %6929 = vst [vmem:[%s874] sm:$0xff] %v6921
          %6930 = vst [vmem:[%s874 + $0x8] sm:$0xff] %v6922
          %6931 = vst [vmem:[%s874 + $0x10] sm:$0xff] %v6923
          %6932 = vst [vmem:[%s874 + $0x18] sm:$0xff] %v6924
          %6933 = vst [vmem:[%s874 + $0x20] sm:$0xff] %v6925
          %6934 = vst [vmem:[%s874 + $0x28] sm:$0xff] %v6926
          %6935 = vst [vmem:[%s874 + $0x30] sm:$0xff] %v6927
          %6936 = vst [vmem:[%s874 + $0x38] sm:$0xff] %v6928
        $region124: #{tpu_custom_call.1} parent=83 // pred_fallthru
          _
        %p6937 = scmp.lt.s32.totalorder %s50, 1
        // Predicated region
        $region125: #{tpu_custom_call.1} parent=83 // pred_check
          %p6938 = pneg %p6937
        $region126: #{tpu_custom_call.1} parent=83 // pred_check_branch
          %6940 = sbr.rel (%p6938) target = $region128
        $region127: #{tpu_custom_call.1} parent=83 // pred_region
          %6941 = vst [vmem:[%s874] sm:$0xff] %v6799
          %6942 = vst [vmem:[%s874 + $0x8] sm:$0xff] %v6800
          %6943 = vst [vmem:[%s874 + $0x10] sm:$0xff] %v6801
          %6944 = vst [vmem:[%s874 + $0x18] sm:$0xff] %v6802
          %6945 = vst [vmem:[%s874 + $0x20] sm:$0xff] %v6803
          %6946 = vst [vmem:[%s874 + $0x28] sm:$0xff] %v6804
          %6947 = vst [vmem:[%s874 + $0x30] sm:$0xff] %v6805
          %6948 = vst [vmem:[%s874 + $0x38] sm:$0xff] %v6806
        $region128: #{tpu_custom_call.1} parent=83 // pred_fallthru
          _
        %s6949 = sand.u32 %s471, 1
        %s6950 = scalar_lea.sflag [#allocation4], %s6949
        %s6951 = sand.u32 %s471, 1
        %s6952 = smul.addr %s6951, 64
        %s6953 = scalar_lea.vmem [#allocation16], %s6952
        // Predicated region
        $region129: #{tpu_custom_call.1} parent=83 // pred_check
          %p6954 = pneg %p481
        $region130: #{tpu_custom_call.1} parent=83 // pred_check_branch
          %6956 = sbr.rel (%p6954) target = $region132
        $region131: #{tpu_custom_call.1} parent=83 // pred_region
          %s6958 = ssub.s32 1024, 1024
          %6959 = vsyncadd %s6950, %s6958
          %s6960 = smul.addr %s49, 8
          %s6961 = smul.addr %s6960, 128
          %s6962 = scalar_lea.hbm %s16, %s6961
          %s6963 = sshll.u32 %s6953, 4
          %s6964 = int_to_ptr.vmem [resolvable:$true] %s6963
          %6969 = dma.vmem_to_hbm [thread:$0]  %s6964, 1024, %s6962, %s6950, 128, 128, 8
        $region132: #{tpu_custom_call.1} parent=83 // pred_fallthru
          _
      $region84: #{tpu_custom_call.1} parent=5 // pred_fallthru
        _
      %p6970 = scmp.le.s32.totalorder 2, %s40
      // Predicated region
      $region133: #{tpu_custom_call.1} parent=5 // pred_check
        %p6971 = pneg %p6970
      $region134: #{tpu_custom_call.1} parent=5 // pred_check_branch
        %6973 = sbr.rel (%p6971) target = $region136
      $region135: #{tpu_custom_call.1} parent=5 // pred_region
        %s6974 = ssub.s32 %s40, 2
        // Predicated region
        $region137: #{tpu_custom_call.1} parent=135 // pred_check
          %p6975 = pneg %p487
        $region138: #{tpu_custom_call.1} parent=135 // pred_check_branch
          %6977 = sbr.rel (%p6975) target = $region140
        $region139: #{tpu_custom_call.1} parent=135 // pred_region
          %s6978 = sand.u32 %s472, 1
          %s6979 = scalar_lea.sflag [#allocation4], %s6978
          %s6980 = sand.u32 %s472, 1
          %s6981 = smul.addr %s6980, 64
          %s6982 = scalar_lea.vmem [#allocation16], %s6981
          %6983 = dma.done %s6979, 1024
        $region140: #{tpu_custom_call.1} parent=135 // pred_fallthru
          _
      $region136: #{tpu_custom_call.1} parent=5 // pred_fallthru
        _
    $region6: #{tpu_custom_call.1} parent=1 // loop_footer
      %s44 = sadd.s32 1, %s40
    $region7: #{tpu_custom_call.1} parent=1 // loop_footer_branch
      %39 = sbr.rel target = $region3
    $region8: #{tpu_custom_call.1} parent=1 // loop_exit
      _
    %6984 = vsyncpa [#allocation3], 1
    %s6985 = scalar_lea.sflag [#allocation3], 1
    %6986 = vsyncpa %s6985, 1
    %6987 = vsyncpa [#allocation6], 1
    %s6988 = scalar_lea.sflag [#allocation6], 1
    %6989 = vsyncpa %s6988, 1
    %6990 = vsyncpa [#allocation9], 1
    %s6991 = scalar_lea.sflag [#allocation9], 1
    %6992 = vsyncpa %s6991, 1
    %6993 = vsyncpa [#allocation12], 1
    %s6994 = scalar_lea.sflag [#allocation12], 1
    %6995 = vsyncpa %s6994, 1
    %6996 = vsyncpa [#allocation15], 1
    %s6997 = scalar_lea.sflag [#allocation15], 1
    %6998 = vsyncpa %s6997, 1
    %6999 = vsyncpa [#allocation4], 1
    %s7000 = scalar_lea.sflag [#allocation4], 1
    %7001 = vsyncpa %s7000, 1

</llo_original>
